<compile_context>
chip_gen: v6e
topology: v6e:2x2x1
jax: 0.10.0
libtpu: 0.0.40
codegen_flags: <defaults>
</compile_context>

<pallas_src>
import functools

import jax
import jax.numpy as jnp
import numpy as np
from jax.experimental import pallas as pl
from jax.experimental.pallas import tpu as pltpu


def _decoder_kernel(num_layers, hidden_size, input_size, pred_len,
                    h0_ref, c0_ref, *args):
    """Full autoregressive decode in one kernel invocation (no grid).

    args layout (all VMEM-resident, pre-transposed / pre-composed in wrapper):
      wih_s[0..L-1] : (H, 4H)  input->gates (layer 0 has the dense composed in)
      whh_s[0..L-1] : (H, 4H)  hidden->gates
      b_s[0..L-1]   : (1, 4H)  fused (+dense-composed for l=0), 0.5-pre-scaled
      wblk          : (T*H, T*I) block-diagonal dense weight (epilogue)
      bblk          : (1, T*I)   tiled dense bias (epilogue)
      out_ref       : (B, T*I)
    """
    L, H, I, T = num_layers, hidden_size, input_size, pred_len
    wih_refs = args[0:L]
    whh_refs = args[L:2 * L]
    b_refs = args[2 * L:3 * L]
    wblk_ref = args[3 * L]
    bblk_ref = args[3 * L + 1]
    out_ref = args[3 * L + 2]

    B = h0_ref.shape[1]

    # Load gate weights once; hoist bias broadcasts out of the unrolled loop
    # (JAX does not CSE broadcast_in_dim across unrolled iterations).
    wih = [wih_refs[l][...] for l in range(L)]                       # (H, 4H)
    whh = [whh_refs[l][...] for l in range(L)]                       # (H, 4H)
    b = [jnp.broadcast_to(b_refs[l][...], (B, 4 * H)) for l in range(L)]

    # Live hidden / cell state per layer.
    h = [h0_ref[l] for l in range(L)]    # (B, H)
    c = [c0_ref[l] for l in range(L)]    # (B, H)

    tops = []
    for _ in range(T):
        # Layer-0 input is the *previous* step's top hidden state: the output
        # dense is folded into wih[0]/b[0], so dense(y) never sits on the
        # serial dependence chain.  (For the first step this is h0[L-1],
        # matching the PyTorch seed y0 = dense(hidden[0][-1]).)
        inp = h[L - 1]
        for l in range(L):
            # Two independent MXU pushes summed on the VPU -- no per-step
            # lane-axis concat (XLU) in front of the gate matmul.
            g = (jnp.dot(inp, wih[l], preferred_element_type=jnp.float32)
                 + jnp.dot(h[l], whh[l], preferred_element_type=jnp.float32)
                 + b[l])                                             # (B, 4H)
            # Single EUP pass: i/f/o columns were pre-scaled by 0.5 in the
            # wrapper, so sigmoid(x) = 0.5*(tanh(x/2)+1) falls out of one tanh.
            t = jnp.tanh(g)
            i_g = 0.5 * (t[:, 0 * H:1 * H] + 1.0)
            f_g = 0.5 * (t[:, 1 * H:2 * H] + 1.0)
            g_g = t[:, 2 * H:3 * H]
            o_g = 0.5 * (t[:, 3 * H:4 * H] + 1.0)
            c[l] = f_g * c[l] + i_g * g_g
            h[l] = o_g * jnp.tanh(c[l])
            inp = h[l]
        tops.append(h[L - 1])

    # Epilogue (entirely off the dependence chain).  PyTorch prepends outputs,
    # so emit reversed time order: one lane concat of the top hidden states,
    # one batched block-diagonal dense matmul, one lane-dense (B, T*I) store.
    tops_rev = jnp.concatenate(tops[::-1], axis=-1)                  # (B, T*H)
    out_ref[...] = (jnp.dot(tops_rev, wblk_ref[...],
                            preferred_element_type=jnp.float32)
                    + jnp.broadcast_to(bblk_ref[...], (B, T * I)))


def decoder_pallas(h0, c0, params, prediction_length):
    L, B, H = h0.shape
    I = params["w_d"].shape[0]
    T = prediction_length

    # ---- wrapper-side layout plumbing (free, one-time) ----
    # Column scale turning the single in-kernel tanh into sigmoid for i/f/o.
    gate_scale = jnp.concatenate([
        jnp.full((H,), 0.5, jnp.float32),   # i
        jnp.full((H,), 0.5, jnp.float32),   # f
        jnp.ones((H,), jnp.float32),        # g
        jnp.full((H,), 0.5, jnp.float32),   # o
    ])

    wd_t = params["w_d"].T                                           # (H, I)

    wih_s, whh_s, b_s = [], [], []
    for l in range(L):
        wih_t = params["w_ih"][l].T                                  # (in_l, 4H)
        whh_t = params["w_hh"][l].T                                  # (H, 4H)
        bias = params["b_ih"][l] + params["b_hh"][l]                 # (1, 4H)
        if l == 0:
            # Compose the output dense into layer-0 gates:
            #   dense(top) @ W_ih0^T = top @ (W_d^T @ W_ih0^T) + b_d @ W_ih0^T
            bias = bias + params["b_d"] @ wih_t                      # (1, 4H)
            wih_t = wd_t @ wih_t                                     # (H, 4H)
        wih_s.append(wih_t * gate_scale)
        whh_s.append(whh_t * gate_scale)
        b_s.append(bias * gate_scale)

    # Block-diagonal dense weight + tiled bias for the single batched epilogue
    # matmul over the reversed concatenation of top hidden states.
    wblk = jnp.kron(jnp.eye(T, dtype=jnp.float32), wd_t)             # (T*H, T*I)
    bblk = jnp.tile(params["b_d"], (1, T))                           # (1, T*I)

    flat = wih_s + whh_s + b_s + [wblk, bblk]

    kernel = functools.partial(_decoder_kernel, L, H, I, T)
    vmem = pl.BlockSpec(memory_space=pltpu.MemorySpace.VMEM)

    out_flat = pl.pallas_call(
        kernel,
        out_shape=jax.ShapeDtypeStruct((B, T * I), jnp.float32),
        in_specs=[vmem] * (2 + len(flat)),
        out_specs=vmem,
    )(h0, c0, *flat)

    # (B, T*I) -> (B, T, I): metadata-only row-major reshape, no transpose op.
    return out_flat.reshape(B, T, I)


def decoder_ref(h0, c0, params, pred_len):
    """Pure-JAX reference mirroring the PyTorch eval-mode forward (unfused)."""
    L, B, H = h0.shape
    h = [h0[l] for l in range(L)]
    c = [c0[l] for l in range(L)]

    def dense(v):
        return v @ params["w_d"].T + params["b_d"]

    def step(x_in):
        inp = x_in
        for l in range(L):
            gates = (inp @ params["w_ih"][l].T + params["b_ih"][l]
                     + h[l] @ params["w_hh"][l].T + params["b_hh"][l])
            i_g = jax.nn.sigmoid(gates[:, :H])
            f_g = jax.nn.sigmoid(gates[:, H:2 * H])
            g_g = jnp.tanh(gates[:, 2 * H:3 * H])
            o_g = jax.nn.sigmoid(gates[:, 3 * H:])
            c[l] = f_g * c[l] + i_g * g_g
            h[l] = o_g * jnp.tanh(c[l])
            inp = h[l]
        return inp

    y = dense(h[-1])
    outs = []
    for _ in range(pred_len):
        y = dense(step(y))
        outs = [y[:, None, :]] + outs
    return jnp.concatenate(outs, axis=1)


def init_params(key, input_size, hidden_size, num_layers):
    """Deterministic U(-1/sqrt(H), 1/sqrt(H)) init, matching torch.nn.LSTM/Linear shapes."""
    H = hidden_size
    scale = 1.0 / float(np.sqrt(H))
    keys = jax.random.split(key, 4 * num_layers + 2)
    w_ih, w_hh, b_ih, b_hh = [], [], [], []
    k = 0
    for l in range(num_layers):
        in_l = input_size if l == 0 else hidden_size
        w_ih.append(jax.random.uniform(keys[k], (4 * H, in_l), jnp.float32, -scale, scale)); k += 1
        w_hh.append(jax.random.uniform(keys[k], (4 * H, H), jnp.float32, -scale, scale)); k += 1
        b_ih.append(jax.random.uniform(keys[k], (1, 4 * H), jnp.float32, -scale, scale)); k += 1
        b_hh.append(jax.random.uniform(keys[k], (1, 4 * H), jnp.float32, -scale, scale)); k += 1
    w_d = jax.random.uniform(keys[k], (input_size, H), jnp.float32, -scale, scale); k += 1
    b_d = jax.random.uniform(keys[k], (1, input_size), jnp.float32, -scale, scale)
    return dict(w_ih=w_ih, w_hh=w_hh, b_ih=b_ih, b_hh=b_hh, w_d=w_d, b_d=b_d)


if __name__ == "__main__":
    # Small, module-consistent shapes.
    batch = 2
    input_size = 4
    hidden_size = 32
    lstm_layers = 2
    prediction_length = 8
    seq_len = 8  # x is only consumed in training mode (teacher forcing); unused here

    key = jax.random.PRNGKey(0)
    k_p, k_x, k_h, k_c = jax.random.split(key, 4)

    params = init_params(k_p, input_size, hidden_size, lstm_layers)
    x = jax.random.normal(k_x, (batch, seq_len, input_size), jnp.float32)  # unused (eval path)
    h0 = jax.random.normal(k_h, (lstm_layers, batch, hidden_size), jnp.float32)
    c0 = jax.random.normal(k_c, (lstm_layers, batch, hidden_size), jnp.float32)

    out = decoder_pallas(h0, c0, params, prediction_length)
    out = jax.block_until_ready(out)
    assert out.shape == (batch, prediction_length, input_size)

    ref = jax.block_until_ready(decoder_ref(h0, c0, params, prediction_length))
    np.testing.assert_allclose(np.asarray(out), np.asarray(ref), rtol=1e-2, atol=1e-2)

    print("KERNEL_OK")
</pallas_src>

<mosaic_0001>
module attributes {stable_mosaic.version = 11 : i64} {
  func.func @_decoder_kernel(%arg0: memref<2x2x32xf32, #tpu.memory_space<vmem>>, %arg1: memref<2x2x32xf32, #tpu.memory_space<vmem>>, %arg2: memref<32x128xf32, #tpu.memory_space<vmem>>, %arg3: memref<32x128xf32, #tpu.memory_space<vmem>>, %arg4: memref<32x128xf32, #tpu.memory_space<vmem>>, %arg5: memref<32x128xf32, #tpu.memory_space<vmem>>, %arg6: memref<1x128xf32, #tpu.memory_space<vmem>>, %arg7: memref<1x128xf32, #tpu.memory_space<vmem>>, %arg8: memref<256x32xf32, #tpu.memory_space<vmem>>, %arg9: memref<1x32xf32, #tpu.memory_space<vmem>>, %arg10: memref<2x32xf32, #tpu.memory_space<vmem>>) attributes {dimension_semantics = [], scalar_prefetch = 0 : i64, scratch_operands = 0 : i64, tpu.core_type = #tpu.core_type<tc>} {
    %c0 = arith.constant 0 : index
    %c0_0 = arith.constant 0 : index
    %0 = vector.load %arg2[%c0, %c0_0] : memref<32x128xf32, #tpu.memory_space<vmem>>, vector<32x128xf32>
    %c0_1 = arith.constant 0 : index
    %c0_2 = arith.constant 0 : index
    %1 = vector.load %arg3[%c0_1, %c0_2] : memref<32x128xf32, #tpu.memory_space<vmem>>, vector<32x128xf32>
    %c0_3 = arith.constant 0 : index
    %c0_4 = arith.constant 0 : index
    %2 = vector.load %arg4[%c0_3, %c0_4] : memref<32x128xf32, #tpu.memory_space<vmem>>, vector<32x128xf32>
    %c0_5 = arith.constant 0 : index
    %c0_6 = arith.constant 0 : index
    %3 = vector.load %arg5[%c0_5, %c0_6] : memref<32x128xf32, #tpu.memory_space<vmem>>, vector<32x128xf32>
    %c0_7 = arith.constant 0 : index
    %c0_8 = arith.constant 0 : index
    %4 = vector.load %arg6[%c0_7, %c0_8] : memref<1x128xf32, #tpu.memory_space<vmem>>, vector<1x128xf32>
    %5 = vector.shape_cast %4 : vector<1x128xf32> to vector<1x128xf32>
    %6 = vector.broadcast %5 : vector<1x128xf32> to vector<2x128xf32>
    %c0_9 = arith.constant 0 : index
    %c0_10 = arith.constant 0 : index
    %7 = vector.load %arg7[%c0_9, %c0_10] : memref<1x128xf32, #tpu.memory_space<vmem>>, vector<1x128xf32>
    %8 = vector.shape_cast %7 : vector<1x128xf32> to vector<1x128xf32>
    %9 = vector.broadcast %8 : vector<1x128xf32> to vector<2x128xf32>
    %c0_11 = arith.constant 0 : index
    %c0_12 = arith.constant 0 : index
    %c0_13 = arith.constant 0 : index
    %10 = vector.load %arg0[%c0_11, %c0_12, %c0_13] : memref<2x2x32xf32, #tpu.memory_space<vmem>>, vector<1x2x32xf32>
    %11 = vector.shape_cast %10 : vector<1x2x32xf32> to vector<2x32xf32>
    %c1 = arith.constant 1 : index
    %c0_14 = arith.constant 0 : index
    %c0_15 = arith.constant 0 : index
    %12 = vector.load %arg0[%c1, %c0_14, %c0_15] : memref<2x2x32xf32, #tpu.memory_space<vmem>>, vector<1x2x32xf32>
    %13 = vector.shape_cast %12 : vector<1x2x32xf32> to vector<2x32xf32>
    %c0_16 = arith.constant 0 : index
    %c0_17 = arith.constant 0 : index
    %c0_18 = arith.constant 0 : index
    %14 = vector.load %arg1[%c0_16, %c0_17, %c0_18] : memref<2x2x32xf32, #tpu.memory_space<vmem>>, vector<1x2x32xf32>
    %15 = vector.shape_cast %14 : vector<1x2x32xf32> to vector<2x32xf32>
    %c1_19 = arith.constant 1 : index
    %c0_20 = arith.constant 0 : index
    %c0_21 = arith.constant 0 : index
    %16 = vector.load %arg1[%c1_19, %c0_20, %c0_21] : memref<2x2x32xf32, #tpu.memory_space<vmem>>, vector<1x2x32xf32>
    %17 = vector.shape_cast %16 : vector<1x2x32xf32> to vector<2x32xf32>
    %cst = arith.constant dense<0.000000e+00> : vector<2x128xf32>
    %18 = tpu.matmul %13, %0, %cst {dimension_numbers = #tpu.dot_dimension_numbers<[1], [0], [0], [1], [0, 0, 1, 1], [], []>} : vector<2x32xf32>, vector<32x128xf32>, vector<2x128xf32> -> vector<2x128xf32>
    %cst_22 = arith.constant dense<0.000000e+00> : vector<2x128xf32>
    %19 = tpu.matmul %11, %2, %cst_22 {dimension_numbers = #tpu.dot_dimension_numbers<[1], [0], [0], [1], [0, 0, 1, 1], [], []>} : vector<2x32xf32>, vector<32x128xf32>, vector<2x128xf32> -> vector<2x128xf32>
    %20 = arith.addf %18, %19 : vector<2x128xf32>
    %21 = arith.addf %20, %6 : vector<2x128xf32>
    %22 = math.tanh %21 : vector<2x128xf32>
    %23 = vector.extract_strided_slice %22 {offsets = [0, 0], sizes = [2, 32], strides = [1, 1]} : vector<2x128xf32> to vector<2x32xf32>
    %cst_23 = arith.constant 1.000000e+00 : f32
    %24 = vector.broadcast %cst_23 : f32 to vector<2x32xf32>
    %25 = arith.addf %23, %24 : vector<2x32xf32>
    %cst_24 = arith.constant 5.000000e-01 : f32
    %26 = vector.broadcast %cst_24 : f32 to vector<2x32xf32>
    %27 = arith.mulf %26, %25 : vector<2x32xf32>
    %28 = vector.extract_strided_slice %22 {offsets = [0, 32], sizes = [2, 32], strides = [1, 1]} : vector<2x128xf32> to vector<2x32xf32>
    %cst_25 = arith.constant 1.000000e+00 : f32
    %29 = vector.broadcast %cst_25 : f32 to vector<2x32xf32>
    %30 = arith.addf %28, %29 : vector<2x32xf32>
    %cst_26 = arith.constant 5.000000e-01 : f32
    %31 = vector.broadcast %cst_26 : f32 to vector<2x32xf32>
    %32 = arith.mulf %31, %30 : vector<2x32xf32>
    %33 = vector.extract_strided_slice %22 {offsets = [0, 64], sizes = [2, 32], strides = [1, 1]} : vector<2x128xf32> to vector<2x32xf32>
    %34 = vector.extract_strided_slice %22 {offsets = [0, 96], sizes = [2, 32], strides = [1, 1]} : vector<2x128xf32> to vector<2x32xf32>
    %cst_27 = arith.constant 1.000000e+00 : f32
    %35 = vector.broadcast %cst_27 : f32 to vector<2x32xf32>
    %36 = arith.addf %34, %35 : vector<2x32xf32>
    %cst_28 = arith.constant 5.000000e-01 : f32
    %37 = vector.broadcast %cst_28 : f32 to vector<2x32xf32>
    %38 = arith.mulf %37, %36 : vector<2x32xf32>
    %39 = arith.mulf %32, %15 : vector<2x32xf32>
    %40 = arith.mulf %27, %33 : vector<2x32xf32>
    %41 = arith.addf %39, %40 : vector<2x32xf32>
    %42 = math.tanh %41 : vector<2x32xf32>
    %43 = arith.mulf %38, %42 : vector<2x32xf32>
    %cst_29 = arith.constant dense<0.000000e+00> : vector<2x128xf32>
    %44 = tpu.matmul %43, %1, %cst_29 {dimension_numbers = #tpu.dot_dimension_numbers<[1], [0], [0], [1], [0, 0, 1, 1], [], []>} : vector<2x32xf32>, vector<32x128xf32>, vector<2x128xf32> -> vector<2x128xf32>
    %cst_30 = arith.constant dense<0.000000e+00> : vector<2x128xf32>
    %45 = tpu.matmul %13, %3, %cst_30 {dimension_numbers = #tpu.dot_dimension_numbers<[1], [0], [0], [1], [0, 0, 1, 1], [], []>} : vector<2x32xf32>, vector<32x128xf32>, vector<2x128xf32> -> vector<2x128xf32>
    %46 = arith.addf %44, %45 : vector<2x128xf32>
    %47 = arith.addf %46, %9 : vector<2x128xf32>
    %48 = math.tanh %47 : vector<2x128xf32>
    %49 = vector.extract_strided_slice %48 {offsets = [0, 0], sizes = [2, 32], strides = [1, 1]} : vector<2x128xf32> to vector<2x32xf32>
    %cst_31 = arith.constant 1.000000e+00 : f32
    %50 = vector.broadcast %cst_31 : f32 to vector<2x32xf32>
    %51 = arith.addf %49, %50 : vector<2x32xf32>
    %cst_32 = arith.constant 5.000000e-01 : f32
    %52 = vector.broadcast %cst_32 : f32 to vector<2x32xf32>
    %53 = arith.mulf %52, %51 : vector<2x32xf32>
    %54 = vector.extract_strided_slice %48 {offsets = [0, 32], sizes = [2, 32], strides = [1, 1]} : vector<2x128xf32> to vector<2x32xf32>
    %cst_33 = arith.constant 1.000000e+00 : f32
    %55 = vector.broadcast %cst_33 : f32 to vector<2x32xf32>
    %56 = arith.addf %54, %55 : vector<2x32xf32>
    %cst_34 = arith.constant 5.000000e-01 : f32
    %57 = vector.broadcast %cst_34 : f32 to vector<2x32xf32>
    %58 = arith.mulf %57, %56 : vector<2x32xf32>
    %59 = vector.extract_strided_slice %48 {offsets = [0, 64], sizes = [2, 32], strides = [1, 1]} : vector<2x128xf32> to vector<2x32xf32>
    %60 = vector.extract_strided_slice %48 {offsets = [0, 96], sizes = [2, 32], strides = [1, 1]} : vector<2x128xf32> to vector<2x32xf32>
    %cst_35 = arith.constant 1.000000e+00 : f32
    %61 = vector.broadcast %cst_35 : f32 to vector<2x32xf32>
    %62 = arith.addf %60, %61 : vector<2x32xf32>
    %cst_36 = arith.constant 5.000000e-01 : f32
    %63 = vector.broadcast %cst_36 : f32 to vector<2x32xf32>
    %64 = arith.mulf %63, %62 : vector<2x32xf32>
    %65 = arith.mulf %58, %17 : vector<2x32xf32>
    %66 = arith.mulf %53, %59 : vector<2x32xf32>
    %67 = arith.addf %65, %66 : vector<2x32xf32>
    %68 = math.tanh %67 : vector<2x32xf32>
    %69 = arith.mulf %64, %68 : vector<2x32xf32>
    %cst_37 = arith.constant dense<0.000000e+00> : vector<2x128xf32>
    %70 = tpu.matmul %69, %0, %cst_37 {dimension_numbers = #tpu.dot_dimension_numbers<[1], [0], [0], [1], [0, 0, 1, 1], [], []>} : vector<2x32xf32>, vector<32x128xf32>, vector<2x128xf32> -> vector<2x128xf32>
    %cst_38 = arith.constant dense<0.000000e+00> : vector<2x128xf32>
    %71 = tpu.matmul %43, %2, %cst_38 {dimension_numbers = #tpu.dot_dimension_numbers<[1], [0], [0], [1], [0, 0, 1, 1], [], []>} : vector<2x32xf32>, vector<32x128xf32>, vector<2x128xf32> -> vector<2x128xf32>
    %72 = arith.addf %70, %71 : vector<2x128xf32>
    %73 = arith.addf %72, %6 : vector<2x128xf32>
    %74 = math.tanh %73 : vector<2x128xf32>
    %75 = vector.extract_strided_slice %74 {offsets = [0, 0], sizes = [2, 32], strides = [1, 1]} : vector<2x128xf32> to vector<2x32xf32>
    %cst_39 = arith.constant 1.000000e+00 : f32
    %76 = vector.broadcast %cst_39 : f32 to vector<2x32xf32>
    %77 = arith.addf %75, %76 : vector<2x32xf32>
    %cst_40 = arith.constant 5.000000e-01 : f32
    %78 = vector.broadcast %cst_40 : f32 to vector<2x32xf32>
    %79 = arith.mulf %78, %77 : vector<2x32xf32>
    %80 = vector.extract_strided_slice %74 {offsets = [0, 32], sizes = [2, 32], strides = [1, 1]} : vector<2x128xf32> to vector<2x32xf32>
    %cst_41 = arith.constant 1.000000e+00 : f32
    %81 = vector.broadcast %cst_41 : f32 to vector<2x32xf32>
    %82 = arith.addf %80, %81 : vector<2x32xf32>
    %cst_42 = arith.constant 5.000000e-01 : f32
    %83 = vector.broadcast %cst_42 : f32 to vector<2x32xf32>
    %84 = arith.mulf %83, %82 : vector<2x32xf32>
    %85 = vector.extract_strided_slice %74 {offsets = [0, 64], sizes = [2, 32], strides = [1, 1]} : vector<2x128xf32> to vector<2x32xf32>
    %86 = vector.extract_strided_slice %74 {offsets = [0, 96], sizes = [2, 32], strides = [1, 1]} : vector<2x128xf32> to vector<2x32xf32>
    %cst_43 = arith.constant 1.000000e+00 : f32
    %87 = vector.broadcast %cst_43 : f32 to vector<2x32xf32>
    %88 = arith.addf %86, %87 : vector<2x32xf32>
    %cst_44 = arith.constant 5.000000e-01 : f32
    %89 = vector.broadcast %cst_44 : f32 to vector<2x32xf32>
    %90 = arith.mulf %89, %88 : vector<2x32xf32>
    %91 = arith.mulf %84, %41 : vector<2x32xf32>
    %92 = arith.mulf %79, %85 : vector<2x32xf32>
    %93 = arith.addf %91, %92 : vector<2x32xf32>
    %94 = math.tanh %93 : vector<2x32xf32>
    %95 = arith.mulf %90, %94 : vector<2x32xf32>
    %cst_45 = arith.constant dense<0.000000e+00> : vector<2x128xf32>
    %96 = tpu.matmul %95, %1, %cst_45 {dimension_numbers = #tpu.dot_dimension_numbers<[1], [0], [0], [1], [0, 0, 1, 1], [], []>} : vector<2x32xf32>, vector<32x128xf32>, vector<2x128xf32> -> vector<2x128xf32>
    %cst_46 = arith.constant dense<0.000000e+00> : vector<2x128xf32>
    %97 = tpu.matmul %69, %3, %cst_46 {dimension_numbers = #tpu.dot_dimension_numbers<[1], [0], [0], [1], [0, 0, 1, 1], [], []>} : vector<2x32xf32>, vector<32x128xf32>, vector<2x128xf32> -> vector<2x128xf32>
    %98 = arith.addf %96, %97 : vector<2x128xf32>
    %99 = arith.addf %98, %9 : vector<2x128xf32>
    %100 = math.tanh %99 : vector<2x128xf32>
    %101 = vector.extract_strided_slice %100 {offsets = [0, 0], sizes = [2, 32], strides = [1, 1]} : vector<2x128xf32> to vector<2x32xf32>
    %cst_47 = arith.constant 1.000000e+00 : f32
    %102 = vector.broadcast %cst_47 : f32 to vector<2x32xf32>
    %103 = arith.addf %101, %102 : vector<2x32xf32>
    %cst_48 = arith.constant 5.000000e-01 : f32
    %104 = vector.broadcast %cst_48 : f32 to vector<2x32xf32>
    %105 = arith.mulf %104, %103 : vector<2x32xf32>
    %106 = vector.extract_strided_slice %100 {offsets = [0, 32], sizes = [2, 32], strides = [1, 1]} : vector<2x128xf32> to vector<2x32xf32>
    %cst_49 = arith.constant 1.000000e+00 : f32
    %107 = vector.broadcast %cst_49 : f32 to vector<2x32xf32>
    %108 = arith.addf %106, %107 : vector<2x32xf32>
    %cst_50 = arith.constant 5.000000e-01 : f32
    %109 = vector.broadcast %cst_50 : f32 to vector<2x32xf32>
    %110 = arith.mulf %109, %108 : vector<2x32xf32>
    %111 = vector.extract_strided_slice %100 {offsets = [0, 64], sizes = [2, 32], strides = [1, 1]} : vector<2x128xf32> to vector<2x32xf32>
    %112 = vector.extract_strided_slice %100 {offsets = [0, 96], sizes = [2, 32], strides = [1, 1]} : vector<2x128xf32> to vector<2x32xf32>
    %cst_51 = arith.constant 1.000000e+00 : f32
    %113 = vector.broadcast %cst_51 : f32 to vector<2x32xf32>
    %114 = arith.addf %112, %113 : vector<2x32xf32>
    %cst_52 = arith.constant 5.000000e-01 : f32
    %115 = vector.broadcast %cst_52 : f32 to vector<2x32xf32>
    %116 = arith.mulf %115, %114 : vector<2x32xf32>
    %117 = arith.mulf %110, %67 : vector<2x32xf32>
    %118 = arith.mulf %105, %111 : vector<2x32xf32>
    %119 = arith.addf %117, %118 : vector<2x32xf32>
    %120 = math.tanh %119 : vector<2x32xf32>
    %121 = arith.mulf %116, %120 : vector<2x32xf32>
    %cst_53 = arith.constant dense<0.000000e+00> : vector<2x128xf32>
    %122 = tpu.matmul %121, %0, %cst_53 {dimension_numbers = #tpu.dot_dimension_numbers<[1], [0], [0], [1], [0, 0, 1, 1], [], []>} : vector<2x32xf32>, vector<32x128xf32>, vector<2x128xf32> -> vector<2x128xf32>
    %cst_54 = arith.constant dense<0.000000e+00> : vector<2x128xf32>
    %123 = tpu.matmul %95, %2, %cst_54 {dimension_numbers = #tpu.dot_dimension_numbers<[1], [0], [0], [1], [0, 0, 1, 1], [], []>} : vector<2x32xf32>, vector<32x128xf32>, vector<2x128xf32> -> vector<2x128xf32>
    %124 = arith.addf %122, %123 : vector<2x128xf32>
    %125 = arith.addf %124, %6 : vector<2x128xf32>
    %126 = math.tanh %125 : vector<2x128xf32>
    %127 = vector.extract_strided_slice %126 {offsets = [0, 0], sizes = [2, 32], strides = [1, 1]} : vector<2x128xf32> to vector<2x32xf32>
    %cst_55 = arith.constant 1.000000e+00 : f32
    %128 = vector.broadcast %cst_55 : f32 to vector<2x32xf32>
    %129 = arith.addf %127, %128 : vector<2x32xf32>
    %cst_56 = arith.constant 5.000000e-01 : f32
    %130 = vector.broadcast %cst_56 : f32 to vector<2x32xf32>
    %131 = arith.mulf %130, %129 : vector<2x32xf32>
    %132 = vector.extract_strided_slice %126 {offsets = [0, 32], sizes = [2, 32], strides = [1, 1]} : vector<2x128xf32> to vector<2x32xf32>
    %cst_57 = arith.constant 1.000000e+00 : f32
    %133 = vector.broadcast %cst_57 : f32 to vector<2x32xf32>
    %134 = arith.addf %132, %133 : vector<2x32xf32>
    %cst_58 = arith.constant 5.000000e-01 : f32
    %135 = vector.broadcast %cst_58 : f32 to vector<2x32xf32>
    %136 = arith.mulf %135, %134 : vector<2x32xf32>
    %137 = vector.extract_strided_slice %126 {offsets = [0, 64], sizes = [2, 32], strides = [1, 1]} : vector<2x128xf32> to vector<2x32xf32>
    %138 = vector.extract_strided_slice %126 {offsets = [0, 96], sizes = [2, 32], strides = [1, 1]} : vector<2x128xf32> to vector<2x32xf32>
    %cst_59 = arith.constant 1.000000e+00 : f32
    %139 = vector.broadcast %cst_59 : f32 to vector<2x32xf32>
    %140 = arith.addf %138, %139 : vector<2x32xf32>
    %cst_60 = arith.constant 5.000000e-01 : f32
    %141 = vector.broadcast %cst_60 : f32 to vector<2x32xf32>
    %142 = arith.mulf %141, %140 : vector<2x32xf32>
    %143 = arith.mulf %136, %93 : vector<2x32xf32>
    %144 = arith.mulf %131, %137 : vector<2x32xf32>
    %145 = arith.addf %143, %144 : vector<2x32xf32>
    %146 = math.tanh %145 : vector<2x32xf32>
    %147 = arith.mulf %142, %146 : vector<2x32xf32>
    %cst_61 = arith.constant dense<0.000000e+00> : vector<2x128xf32>
    %148 = tpu.matmul %147, %1, %cst_61 {dimension_numbers = #tpu.dot_dimension_numbers<[1], [0], [0], [1], [0, 0, 1, 1], [], []>} : vector<2x32xf32>, vector<32x128xf32>, vector<2x128xf32> -> vector<2x128xf32>
    %cst_62 = arith.constant dense<0.000000e+00> : vector<2x128xf32>
    %149 = tpu.matmul %121, %3, %cst_62 {dimension_numbers = #tpu.dot_dimension_numbers<[1], [0], [0], [1], [0, 0, 1, 1], [], []>} : vector<2x32xf32>, vector<32x128xf32>, vector<2x128xf32> -> vector<2x128xf32>
    %150 = arith.addf %148, %149 : vector<2x128xf32>
    %151 = arith.addf %150, %9 : vector<2x128xf32>
    %152 = math.tanh %151 : vector<2x128xf32>
    %153 = vector.extract_strided_slice %152 {offsets = [0, 0], sizes = [2, 32], strides = [1, 1]} : vector<2x128xf32> to vector<2x32xf32>
    %cst_63 = arith.constant 1.000000e+00 : f32
    %154 = vector.broadcast %cst_63 : f32 to vector<2x32xf32>
    %155 = arith.addf %153, %154 : vector<2x32xf32>
    %cst_64 = arith.constant 5.000000e-01 : f32
    %156 = vector.broadcast %cst_64 : f32 to vector<2x32xf32>
    %157 = arith.mulf %156, %155 : vector<2x32xf32>
    %158 = vector.extract_strided_slice %152 {offsets = [0, 32], sizes = [2, 32], strides = [1, 1]} : vector<2x128xf32> to vector<2x32xf32>
    %cst_65 = arith.constant 1.000000e+00 : f32
    %159 = vector.broadcast %cst_65 : f32 to vector<2x32xf32>
    %160 = arith.addf %158, %159 : vector<2x32xf32>
    %cst_66 = arith.constant 5.000000e-01 : f32
    %161 = vector.broadcast %cst_66 : f32 to vector<2x32xf32>
    %162 = arith.mulf %161, %160 : vector<2x32xf32>
    %163 = vector.extract_strided_slice %152 {offsets = [0, 64], sizes = [2, 32], strides = [1, 1]} : vector<2x128xf32> to vector<2x32xf32>
    %164 = vector.extract_strided_slice %152 {offsets = [0, 96], sizes = [2, 32], strides = [1, 1]} : vector<2x128xf32> to vector<2x32xf32>
    %cst_67 = arith.constant 1.000000e+00 : f32
    %165 = vector.broadcast %cst_67 : f32 to vector<2x32xf32>
    %166 = arith.addf %164, %165 : vector<2x32xf32>
    %cst_68 = arith.constant 5.000000e-01 : f32
    %167 = vector.broadcast %cst_68 : f32 to vector<2x32xf32>
    %168 = arith.mulf %167, %166 : vector<2x32xf32>
    %169 = arith.mulf %162, %119 : vector<2x32xf32>
    %170 = arith.mulf %157, %163 : vector<2x32xf32>
    %171 = arith.addf %169, %170 : vector<2x32xf32>
    %172 = math.tanh %171 : vector<2x32xf32>
    %173 = arith.mulf %168, %172 : vector<2x32xf32>
    %cst_69 = arith.constant dense<0.000000e+00> : vector<2x128xf32>
    %174 = tpu.matmul %173, %0, %cst_69 {dimension_numbers = #tpu.dot_dimension_numbers<[1], [0], [0], [1], [0, 0, 1, 1], [], []>} : vector<2x32xf32>, vector<32x128xf32>, vector<2x128xf32> -> vector<2x128xf32>
    %cst_70 = arith.constant dense<0.000000e+00> : vector<2x128xf32>
    %175 = tpu.matmul %147, %2, %cst_70 {dimension_numbers = #tpu.dot_dimension_numbers<[1], [0], [0], [1], [0, 0, 1, 1], [], []>} : vector<2x32xf32>, vector<32x128xf32>, vector<2x128xf32> -> vector<2x128xf32>
    %176 = arith.addf %174, %175 : vector<2x128xf32>
    %177 = arith.addf %176, %6 : vector<2x128xf32>
    %178 = math.tanh %177 : vector<2x128xf32>
    %179 = vector.extract_strided_slice %178 {offsets = [0, 0], sizes = [2, 32], strides = [1, 1]} : vector<2x128xf32> to vector<2x32xf32>
    %cst_71 = arith.constant 1.000000e+00 : f32
    %180 = vector.broadcast %cst_71 : f32 to vector<2x32xf32>
    %181 = arith.addf %179, %180 : vector<2x32xf32>
    %cst_72 = arith.constant 5.000000e-01 : f32
    %182 = vector.broadcast %cst_72 : f32 to vector<2x32xf32>
    %183 = arith.mulf %182, %181 : vector<2x32xf32>
    %184 = vector.extract_strided_slice %178 {offsets = [0, 32], sizes = [2, 32], strides = [1, 1]} : vector<2x128xf32> to vector<2x32xf32>
    %cst_73 = arith.constant 1.000000e+00 : f32
    %185 = vector.broadcast %cst_73 : f32 to vector<2x32xf32>
    %186 = arith.addf %184, %185 : vector<2x32xf32>
    %cst_74 = arith.constant 5.000000e-01 : f32
    %187 = vector.broadcast %cst_74 : f32 to vector<2x32xf32>
    %188 = arith.mulf %187, %186 : vector<2x32xf32>
    %189 = vector.extract_strided_slice %178 {offsets = [0, 64], sizes = [2, 32], strides = [1, 1]} : vector<2x128xf32> to vector<2x32xf32>
    %190 = vector.extract_strided_slice %178 {offsets = [0, 96], sizes = [2, 32], strides = [1, 1]} : vector<2x128xf32> to vector<2x32xf32>
    %cst_75 = arith.constant 1.000000e+00 : f32
    %191 = vector.broadcast %cst_75 : f32 to vector<2x32xf32>
    %192 = arith.addf %190, %191 : vector<2x32xf32>
    %cst_76 = arith.constant 5.000000e-01 : f32
    %193 = vector.broadcast %cst_76 : f32 to vector<2x32xf32>
    %194 = arith.mulf %193, %192 : vector<2x32xf32>
    %195 = arith.mulf %188, %145 : vector<2x32xf32>
    %196 = arith.mulf %183, %189 : vector<2x32xf32>
    %197 = arith.addf %195, %196 : vector<2x32xf32>
    %198 = math.tanh %197 : vector<2x32xf32>
    %199 = arith.mulf %194, %198 : vector<2x32xf32>
    %cst_77 = arith.constant dense<0.000000e+00> : vector<2x128xf32>
    %200 = tpu.matmul %199, %1, %cst_77 {dimension_numbers = #tpu.dot_dimension_numbers<[1], [0], [0], [1], [0, 0, 1, 1], [], []>} : vector<2x32xf32>, vector<32x128xf32>, vector<2x128xf32> -> vector<2x128xf32>
    %cst_78 = arith.constant dense<0.000000e+00> : vector<2x128xf32>
    %201 = tpu.matmul %173, %3, %cst_78 {dimension_numbers = #tpu.dot_dimension_numbers<[1], [0], [0], [1], [0, 0, 1, 1], [], []>} : vector<2x32xf32>, vector<32x128xf32>, vector<2x128xf32> -> vector<2x128xf32>
    %202 = arith.addf %200, %201 : vector<2x128xf32>
    %203 = arith.addf %202, %9 : vector<2x128xf32>
    %204 = math.tanh %203 : vector<2x128xf32>
    %205 = vector.extract_strided_slice %204 {offsets = [0, 0], sizes = [2, 32], strides = [1, 1]} : vector<2x128xf32> to vector<2x32xf32>
    %cst_79 = arith.constant 1.000000e+00 : f32
    %206 = vector.broadcast %cst_79 : f32 to vector<2x32xf32>
    %207 = arith.addf %205, %206 : vector<2x32xf32>
    %cst_80 = arith.constant 5.000000e-01 : f32
    %208 = vector.broadcast %cst_80 : f32 to vector<2x32xf32>
    %209 = arith.mulf %208, %207 : vector<2x32xf32>
    %210 = vector.extract_strided_slice %204 {offsets = [0, 32], sizes = [2, 32], strides = [1, 1]} : vector<2x128xf32> to vector<2x32xf32>
    %cst_81 = arith.constant 1.000000e+00 : f32
    %211 = vector.broadcast %cst_81 : f32 to vector<2x32xf32>
    %212 = arith.addf %210, %211 : vector<2x32xf32>
    %cst_82 = arith.constant 5.000000e-01 : f32
    %213 = vector.broadcast %cst_82 : f32 to vector<2x32xf32>
    %214 = arith.mulf %213, %212 : vector<2x32xf32>
    %215 = vector.extract_strided_slice %204 {offsets = [0, 64], sizes = [2, 32], strides = [1, 1]} : vector<2x128xf32> to vector<2x32xf32>
    %216 = vector.extract_strided_slice %204 {offsets = [0, 96], sizes = [2, 32], strides = [1, 1]} : vector<2x128xf32> to vector<2x32xf32>
    %cst_83 = arith.constant 1.000000e+00 : f32
    %217 = vector.broadcast %cst_83 : f32 to vector<2x32xf32>
    %218 = arith.addf %216, %217 : vector<2x32xf32>
    %cst_84 = arith.constant 5.000000e-01 : f32
    %219 = vector.broadcast %cst_84 : f32 to vector<2x32xf32>
    %220 = arith.mulf %219, %218 : vector<2x32xf32>
    %221 = arith.mulf %214, %171 : vector<2x32xf32>
    %222 = arith.mulf %209, %215 : vector<2x32xf32>
    %223 = arith.addf %221, %222 : vector<2x32xf32>
    %224 = math.tanh %223 : vector<2x32xf32>
    %225 = arith.mulf %220, %224 : vector<2x32xf32>
    %cst_85 = arith.constant dense<0.000000e+00> : vector<2x128xf32>
    %226 = tpu.matmul %225, %0, %cst_85 {dimension_numbers = #tpu.dot_dimension_numbers<[1], [0], [0], [1], [0, 0, 1, 1], [], []>} : vector<2x32xf32>, vector<32x128xf32>, vector<2x128xf32> -> vector<2x128xf32>
    %cst_86 = arith.constant dense<0.000000e+00> : vector<2x128xf32>
    %227 = tpu.matmul %199, %2, %cst_86 {dimension_numbers = #tpu.dot_dimension_numbers<[1], [0], [0], [1], [0, 0, 1, 1], [], []>} : vector<2x32xf32>, vector<32x128xf32>, vector<2x128xf32> -> vector<2x128xf32>
    %228 = arith.addf %226, %227 : vector<2x128xf32>
    %229 = arith.addf %228, %6 : vector<2x128xf32>
    %230 = math.tanh %229 : vector<2x128xf32>
    %231 = vector.extract_strided_slice %230 {offsets = [0, 0], sizes = [2, 32], strides = [1, 1]} : vector<2x128xf32> to vector<2x32xf32>
    %cst_87 = arith.constant 1.000000e+00 : f32
    %232 = vector.broadcast %cst_87 : f32 to vector<2x32xf32>
    %233 = arith.addf %231, %232 : vector<2x32xf32>
    %cst_88 = arith.constant 5.000000e-01 : f32
    %234 = vector.broadcast %cst_88 : f32 to vector<2x32xf32>
    %235 = arith.mulf %234, %233 : vector<2x32xf32>
    %236 = vector.extract_strided_slice %230 {offsets = [0, 32], sizes = [2, 32], strides = [1, 1]} : vector<2x128xf32> to vector<2x32xf32>
    %cst_89 = arith.constant 1.000000e+00 : f32
    %237 = vector.broadcast %cst_89 : f32 to vector<2x32xf32>
    %238 = arith.addf %236, %237 : vector<2x32xf32>
    %cst_90 = arith.constant 5.000000e-01 : f32
    %239 = vector.broadcast %cst_90 : f32 to vector<2x32xf32>
    %240 = arith.mulf %239, %238 : vector<2x32xf32>
    %241 = vector.extract_strided_slice %230 {offsets = [0, 64], sizes = [2, 32], strides = [1, 1]} : vector<2x128xf32> to vector<2x32xf32>
    %242 = vector.extract_strided_slice %230 {offsets = [0, 96], sizes = [2, 32], strides = [1, 1]} : vector<2x128xf32> to vector<2x32xf32>
    %cst_91 = arith.constant 1.000000e+00 : f32
    %243 = vector.broadcast %cst_91 : f32 to vector<2x32xf32>
    %244 = arith.addf %242, %243 : vector<2x32xf32>
    %cst_92 = arith.constant 5.000000e-01 : f32
    %245 = vector.broadcast %cst_92 : f32 to vector<2x32xf32>
    %246 = arith.mulf %245, %244 : vector<2x32xf32>
    %247 = arith.mulf %240, %197 : vector<2x32xf32>
    %248 = arith.mulf %235, %241 : vector<2x32xf32>
    %249 = arith.addf %247, %248 : vector<2x32xf32>
    %250 = math.tanh %249 : vector<2x32xf32>
    %251 = arith.mulf %246, %250 : vector<2x32xf32>
    %cst_93 = arith.constant dense<0.000000e+00> : vector<2x128xf32>
    %252 = tpu.matmul %251, %1, %cst_93 {dimension_numbers = #tpu.dot_dimension_numbers<[1], [0], [0], [1], [0, 0, 1, 1], [], []>} : vector<2x32xf32>, vector<32x128xf32>, vector<2x128xf32> -> vector<2x128xf32>
    %cst_94 = arith.constant dense<0.000000e+00> : vector<2x128xf32>
    %253 = tpu.matmul %225, %3, %cst_94 {dimension_numbers = #tpu.dot_dimension_numbers<[1], [0], [0], [1], [0, 0, 1, 1], [], []>} : vector<2x32xf32>, vector<32x128xf32>, vector<2x128xf32> -> vector<2x128xf32>
    %254 = arith.addf %252, %253 : vector<2x128xf32>
    %255 = arith.addf %254, %9 : vector<2x128xf32>
    %256 = math.tanh %255 : vector<2x128xf32>
    %257 = vector.extract_strided_slice %256 {offsets = [0, 0], sizes = [2, 32], strides = [1, 1]} : vector<2x128xf32> to vector<2x32xf32>
    %cst_95 = arith.constant 1.000000e+00 : f32
    %258 = vector.broadcast %cst_95 : f32 to vector<2x32xf32>
    %259 = arith.addf %257, %258 : vector<2x32xf32>
    %cst_96 = arith.constant 5.000000e-01 : f32
    %260 = vector.broadcast %cst_96 : f32 to vector<2x32xf32>
    %261 = arith.mulf %260, %259 : vector<2x32xf32>
    %262 = vector.extract_strided_slice %256 {offsets = [0, 32], sizes = [2, 32], strides = [1, 1]} : vector<2x128xf32> to vector<2x32xf32>
    %cst_97 = arith.constant 1.000000e+00 : f32
    %263 = vector.broadcast %cst_97 : f32 to vector<2x32xf32>
    %264 = arith.addf %262, %263 : vector<2x32xf32>
    %cst_98 = arith.constant 5.000000e-01 : f32
    %265 = vector.broadcast %cst_98 : f32 to vector<2x32xf32>
    %266 = arith.mulf %265, %264 : vector<2x32xf32>
    %267 = vector.extract_strided_slice %256 {offsets = [0, 64], sizes = [2, 32], strides = [1, 1]} : vector<2x128xf32> to vector<2x32xf32>
    %268 = vector.extract_strided_slice %256 {offsets = [0, 96], sizes = [2, 32], strides = [1, 1]} : vector<2x128xf32> to vector<2x32xf32>
    %cst_99 = arith.constant 1.000000e+00 : f32
    %269 = vector.broadcast %cst_99 : f32 to vector<2x32xf32>
    %270 = arith.addf %268, %269 : vector<2x32xf32>
    %cst_100 = arith.constant 5.000000e-01 : f32
    %271 = vector.broadcast %cst_100 : f32 to vector<2x32xf32>
    %272 = arith.mulf %271, %270 : vector<2x32xf32>
    %273 = arith.mulf %266, %223 : vector<2x32xf32>
    %274 = arith.mulf %261, %267 : vector<2x32xf32>
    %275 = arith.addf %273, %274 : vector<2x32xf32>
    %276 = math.tanh %275 : vector<2x32xf32>
    %277 = arith.mulf %272, %276 : vector<2x32xf32>
    %cst_101 = arith.constant dense<0.000000e+00> : vector<2x128xf32>
    %278 = tpu.matmul %277, %0, %cst_101 {dimension_numbers = #tpu.dot_dimension_numbers<[1], [0], [0], [1], [0, 0, 1, 1], [], []>} : vector<2x32xf32>, vector<32x128xf32>, vector<2x128xf32> -> vector<2x128xf32>
    %cst_102 = arith.constant dense<0.000000e+00> : vector<2x128xf32>
    %279 = tpu.matmul %251, %2, %cst_102 {dimension_numbers = #tpu.dot_dimension_numbers<[1], [0], [0], [1], [0, 0, 1, 1], [], []>} : vector<2x32xf32>, vector<32x128xf32>, vector<2x128xf32> -> vector<2x128xf32>
    %280 = arith.addf %278, %279 : vector<2x128xf32>
    %281 = arith.addf %280, %6 : vector<2x128xf32>
    %282 = math.tanh %281 : vector<2x128xf32>
    %283 = vector.extract_strided_slice %282 {offsets = [0, 0], sizes = [2, 32], strides = [1, 1]} : vector<2x128xf32> to vector<2x32xf32>
    %cst_103 = arith.constant 1.000000e+00 : f32
    %284 = vector.broadcast %cst_103 : f32 to vector<2x32xf32>
    %285 = arith.addf %283, %284 : vector<2x32xf32>
    %cst_104 = arith.constant 5.000000e-01 : f32
    %286 = vector.broadcast %cst_104 : f32 to vector<2x32xf32>
    %287 = arith.mulf %286, %285 : vector<2x32xf32>
    %288 = vector.extract_strided_slice %282 {offsets = [0, 32], sizes = [2, 32], strides = [1, 1]} : vector<2x128xf32> to vector<2x32xf32>
    %cst_105 = arith.constant 1.000000e+00 : f32
    %289 = vector.broadcast %cst_105 : f32 to vector<2x32xf32>
    %290 = arith.addf %288, %289 : vector<2x32xf32>
    %cst_106 = arith.constant 5.000000e-01 : f32
    %291 = vector.broadcast %cst_106 : f32 to vector<2x32xf32>
    %292 = arith.mulf %291, %290 : vector<2x32xf32>
    %293 = vector.extract_strided_slice %282 {offsets = [0, 64], sizes = [2, 32], strides = [1, 1]} : vector<2x128xf32> to vector<2x32xf32>
    %294 = vector.extract_strided_slice %282 {offsets = [0, 96], sizes = [2, 32], strides = [1, 1]} : vector<2x128xf32> to vector<2x32xf32>
    %cst_107 = arith.constant 1.000000e+00 : f32
    %295 = vector.broadcast %cst_107 : f32 to vector<2x32xf32>
    %296 = arith.addf %294, %295 : vector<2x32xf32>
    %cst_108 = arith.constant 5.000000e-01 : f32
    %297 = vector.broadcast %cst_108 : f32 to vector<2x32xf32>
    %298 = arith.mulf %297, %296 : vector<2x32xf32>
    %299 = arith.mulf %292, %249 : vector<2x32xf32>
    %300 = arith.mulf %287, %293 : vector<2x32xf32>
    %301 = arith.addf %299, %300 : vector<2x32xf32>
    %302 = math.tanh %301 : vector<2x32xf32>
    %303 = arith.mulf %298, %302 : vector<2x32xf32>
    %cst_109 = arith.constant dense<0.000000e+00> : vector<2x128xf32>
    %304 = tpu.matmul %303, %1, %cst_109 {dimension_numbers = #tpu.dot_dimension_numbers<[1], [0], [0], [1], [0, 0, 1, 1], [], []>} : vector<2x32xf32>, vector<32x128xf32>, vector<2x128xf32> -> vector<2x128xf32>
    %cst_110 = arith.constant dense<0.000000e+00> : vector<2x128xf32>
    %305 = tpu.matmul %277, %3, %cst_110 {dimension_numbers = #tpu.dot_dimension_numbers<[1], [0], [0], [1], [0, 0, 1, 1], [], []>} : vector<2x32xf32>, vector<32x128xf32>, vector<2x128xf32> -> vector<2x128xf32>
    %306 = arith.addf %304, %305 : vector<2x128xf32>
    %307 = arith.addf %306, %9 : vector<2x128xf32>
    %308 = math.tanh %307 : vector<2x128xf32>
    %309 = vector.extract_strided_slice %308 {offsets = [0, 0], sizes = [2, 32], strides = [1, 1]} : vector<2x128xf32> to vector<2x32xf32>
    %cst_111 = arith.constant 1.000000e+00 : f32
    %310 = vector.broadcast %cst_111 : f32 to vector<2x32xf32>
    %311 = arith.addf %309, %310 : vector<2x32xf32>
    %cst_112 = arith.constant 5.000000e-01 : f32
    %312 = vector.broadcast %cst_112 : f32 to vector<2x32xf32>
    %313 = arith.mulf %312, %311 : vector<2x32xf32>
    %314 = vector.extract_strided_slice %308 {offsets = [0, 32], sizes = [2, 32], strides = [1, 1]} : vector<2x128xf32> to vector<2x32xf32>
    %cst_113 = arith.constant 1.000000e+00 : f32
    %315 = vector.broadcast %cst_113 : f32 to vector<2x32xf32>
    %316 = arith.addf %314, %315 : vector<2x32xf32>
    %cst_114 = arith.constant 5.000000e-01 : f32
    %317 = vector.broadcast %cst_114 : f32 to vector<2x32xf32>
    %318 = arith.mulf %317, %316 : vector<2x32xf32>
    %319 = vector.extract_strided_slice %308 {offsets = [0, 64], sizes = [2, 32], strides = [1, 1]} : vector<2x128xf32> to vector<2x32xf32>
    %320 = vector.extract_strided_slice %308 {offsets = [0, 96], sizes = [2, 32], strides = [1, 1]} : vector<2x128xf32> to vector<2x32xf32>
    %cst_115 = arith.constant 1.000000e+00 : f32
    %321 = vector.broadcast %cst_115 : f32 to vector<2x32xf32>
    %322 = arith.addf %320, %321 : vector<2x32xf32>
    %cst_116 = arith.constant 5.000000e-01 : f32
    %323 = vector.broadcast %cst_116 : f32 to vector<2x32xf32>
    %324 = arith.mulf %323, %322 : vector<2x32xf32>
    %325 = arith.mulf %318, %275 : vector<2x32xf32>
    %326 = arith.mulf %313, %319 : vector<2x32xf32>
    %327 = arith.addf %325, %326 : vector<2x32xf32>
    %328 = math.tanh %327 : vector<2x32xf32>
    %329 = arith.mulf %324, %328 : vector<2x32xf32>
    %cst_117 = arith.constant dense<0.000000e+00> : vector<2x128xf32>
    %330 = tpu.matmul %329, %0, %cst_117 {dimension_numbers = #tpu.dot_dimension_numbers<[1], [0], [0], [1], [0, 0, 1, 1], [], []>} : vector<2x32xf32>, vector<32x128xf32>, vector<2x128xf32> -> vector<2x128xf32>
    %cst_118 = arith.constant dense<0.000000e+00> : vector<2x128xf32>
    %331 = tpu.matmul %303, %2, %cst_118 {dimension_numbers = #tpu.dot_dimension_numbers<[1], [0], [0], [1], [0, 0, 1, 1], [], []>} : vector<2x32xf32>, vector<32x128xf32>, vector<2x128xf32> -> vector<2x128xf32>
    %332 = arith.addf %330, %331 : vector<2x128xf32>
    %333 = arith.addf %332, %6 : vector<2x128xf32>
    %334 = math.tanh %333 : vector<2x128xf32>
    %335 = vector.extract_strided_slice %334 {offsets = [0, 0], sizes = [2, 32], strides = [1, 1]} : vector<2x128xf32> to vector<2x32xf32>
    %cst_119 = arith.constant 1.000000e+00 : f32
    %336 = vector.broadcast %cst_119 : f32 to vector<2x32xf32>
    %337 = arith.addf %335, %336 : vector<2x32xf32>
    %cst_120 = arith.constant 5.000000e-01 : f32
    %338 = vector.broadcast %cst_120 : f32 to vector<2x32xf32>
    %339 = arith.mulf %338, %337 : vector<2x32xf32>
    %340 = vector.extract_strided_slice %334 {offsets = [0, 32], sizes = [2, 32], strides = [1, 1]} : vector<2x128xf32> to vector<2x32xf32>
    %cst_121 = arith.constant 1.000000e+00 : f32
    %341 = vector.broadcast %cst_121 : f32 to vector<2x32xf32>
    %342 = arith.addf %340, %341 : vector<2x32xf32>
    %cst_122 = arith.constant 5.000000e-01 : f32
    %343 = vector.broadcast %cst_122 : f32 to vector<2x32xf32>
    %344 = arith.mulf %343, %342 : vector<2x32xf32>
    %345 = vector.extract_strided_slice %334 {offsets = [0, 64], sizes = [2, 32], strides = [1, 1]} : vector<2x128xf32> to vector<2x32xf32>
    %346 = vector.extract_strided_slice %334 {offsets = [0, 96], sizes = [2, 32], strides = [1, 1]} : vector<2x128xf32> to vector<2x32xf32>
    %cst_123 = arith.constant 1.000000e+00 : f32
    %347 = vector.broadcast %cst_123 : f32 to vector<2x32xf32>
    %348 = arith.addf %346, %347 : vector<2x32xf32>
    %cst_124 = arith.constant 5.000000e-01 : f32
    %349 = vector.broadcast %cst_124 : f32 to vector<2x32xf32>
    %350 = arith.mulf %349, %348 : vector<2x32xf32>
    %351 = arith.mulf %344, %301 : vector<2x32xf32>
    %352 = arith.mulf %339, %345 : vector<2x32xf32>
    %353 = arith.addf %351, %352 : vector<2x32xf32>
    %354 = math.tanh %353 : vector<2x32xf32>
    %355 = arith.mulf %350, %354 : vector<2x32xf32>
    %cst_125 = arith.constant dense<0.000000e+00> : vector<2x128xf32>
    %356 = tpu.matmul %355, %1, %cst_125 {dimension_numbers = #tpu.dot_dimension_numbers<[1], [0], [0], [1], [0, 0, 1, 1], [], []>} : vector<2x32xf32>, vector<32x128xf32>, vector<2x128xf32> -> vector<2x128xf32>
    %cst_126 = arith.constant dense<0.000000e+00> : vector<2x128xf32>
    %357 = tpu.matmul %329, %3, %cst_126 {dimension_numbers = #tpu.dot_dimension_numbers<[1], [0], [0], [1], [0, 0, 1, 1], [], []>} : vector<2x32xf32>, vector<32x128xf32>, vector<2x128xf32> -> vector<2x128xf32>
    %358 = arith.addf %356, %357 : vector<2x128xf32>
    %359 = arith.addf %358, %9 : vector<2x128xf32>
    %360 = math.tanh %359 : vector<2x128xf32>
    %361 = vector.extract_strided_slice %360 {offsets = [0, 0], sizes = [2, 32], strides = [1, 1]} : vector<2x128xf32> to vector<2x32xf32>
    %cst_127 = arith.constant 1.000000e+00 : f32
    %362 = vector.broadcast %cst_127 : f32 to vector<2x32xf32>
    %363 = arith.addf %361, %362 : vector<2x32xf32>
    %cst_128 = arith.constant 5.000000e-01 : f32
    %364 = vector.broadcast %cst_128 : f32 to vector<2x32xf32>
    %365 = arith.mulf %364, %363 : vector<2x32xf32>
    %366 = vector.extract_strided_slice %360 {offsets = [0, 32], sizes = [2, 32], strides = [1, 1]} : vector<2x128xf32> to vector<2x32xf32>
    %cst_129 = arith.constant 1.000000e+00 : f32
    %367 = vector.broadcast %cst_129 : f32 to vector<2x32xf32>
    %368 = arith.addf %366, %367 : vector<2x32xf32>
    %cst_130 = arith.constant 5.000000e-01 : f32
    %369 = vector.broadcast %cst_130 : f32 to vector<2x32xf32>
    %370 = arith.mulf %369, %368 : vector<2x32xf32>
    %371 = vector.extract_strided_slice %360 {offsets = [0, 64], sizes = [2, 32], strides = [1, 1]} : vector<2x128xf32> to vector<2x32xf32>
    %372 = vector.extract_strided_slice %360 {offsets = [0, 96], sizes = [2, 32], strides = [1, 1]} : vector<2x128xf32> to vector<2x32xf32>
    %cst_131 = arith.constant 1.000000e+00 : f32
    %373 = vector.broadcast %cst_131 : f32 to vector<2x32xf32>
    %374 = arith.addf %372, %373 : vector<2x32xf32>
    %cst_132 = arith.constant 5.000000e-01 : f32
    %375 = vector.broadcast %cst_132 : f32 to vector<2x32xf32>
    %376 = arith.mulf %375, %374 : vector<2x32xf32>
    %377 = arith.mulf %370, %327 : vector<2x32xf32>
    %378 = arith.mulf %365, %371 : vector<2x32xf32>
    %379 = arith.addf %377, %378 : vector<2x32xf32>
    %380 = math.tanh %379 : vector<2x32xf32>
    %381 = arith.mulf %376, %380 : vector<2x32xf32>
    %cst_133 = arith.constant dense<0.000000e+00> : vector<2x128xf32>
    %382 = tpu.matmul %381, %0, %cst_133 {dimension_numbers = #tpu.dot_dimension_numbers<[1], [0], [0], [1], [0, 0, 1, 1], [], []>} : vector<2x32xf32>, vector<32x128xf32>, vector<2x128xf32> -> vector<2x128xf32>
    %cst_134 = arith.constant dense<0.000000e+00> : vector<2x128xf32>
    %383 = tpu.matmul %355, %2, %cst_134 {dimension_numbers = #tpu.dot_dimension_numbers<[1], [0], [0], [1], [0, 0, 1, 1], [], []>} : vector<2x32xf32>, vector<32x128xf32>, vector<2x128xf32> -> vector<2x128xf32>
    %384 = arith.addf %382, %383 : vector<2x128xf32>
    %385 = arith.addf %384, %6 : vector<2x128xf32>
    %386 = math.tanh %385 : vector<2x128xf32>
    %387 = vector.extract_strided_slice %386 {offsets = [0, 0], sizes = [2, 32], strides = [1, 1]} : vector<2x128xf32> to vector<2x32xf32>
    %cst_135 = arith.constant 1.000000e+00 : f32
    %388 = vector.broadcast %cst_135 : f32 to vector<2x32xf32>
    %389 = arith.addf %387, %388 : vector<2x32xf32>
    %cst_136 = arith.constant 5.000000e-01 : f32
    %390 = vector.broadcast %cst_136 : f32 to vector<2x32xf32>
    %391 = arith.mulf %390, %389 : vector<2x32xf32>
    %392 = vector.extract_strided_slice %386 {offsets = [0, 32], sizes = [2, 32], strides = [1, 1]} : vector<2x128xf32> to vector<2x32xf32>
    %cst_137 = arith.constant 1.000000e+00 : f32
    %393 = vector.broadcast %cst_137 : f32 to vector<2x32xf32>
    %394 = arith.addf %392, %393 : vector<2x32xf32>
    %cst_138 = arith.constant 5.000000e-01 : f32
    %395 = vector.broadcast %cst_138 : f32 to vector<2x32xf32>
    %396 = arith.mulf %395, %394 : vector<2x32xf32>
    %397 = vector.extract_strided_slice %386 {offsets = [0, 64], sizes = [2, 32], strides = [1, 1]} : vector<2x128xf32> to vector<2x32xf32>
    %398 = vector.extract_strided_slice %386 {offsets = [0, 96], sizes = [2, 32], strides = [1, 1]} : vector<2x128xf32> to vector<2x32xf32>
    %cst_139 = arith.constant 1.000000e+00 : f32
    %399 = vector.broadcast %cst_139 : f32 to vector<2x32xf32>
    %400 = arith.addf %398, %399 : vector<2x32xf32>
    %cst_140 = arith.constant 5.000000e-01 : f32
    %401 = vector.broadcast %cst_140 : f32 to vector<2x32xf32>
    %402 = arith.mulf %401, %400 : vector<2x32xf32>
    %403 = arith.mulf %396, %353 : vector<2x32xf32>
    %404 = arith.mulf %391, %397 : vector<2x32xf32>
    %405 = arith.addf %403, %404 : vector<2x32xf32>
    %406 = math.tanh %405 : vector<2x32xf32>
    %407 = arith.mulf %402, %406 : vector<2x32xf32>
    %cst_141 = arith.constant dense<0.000000e+00> : vector<2x128xf32>
    %408 = tpu.matmul %407, %1, %cst_141 {dimension_numbers = #tpu.dot_dimension_numbers<[1], [0], [0], [1], [0, 0, 1, 1], [], []>} : vector<2x32xf32>, vector<32x128xf32>, vector<2x128xf32> -> vector<2x128xf32>
    %cst_142 = arith.constant dense<0.000000e+00> : vector<2x128xf32>
    %409 = tpu.matmul %381, %3, %cst_142 {dimension_numbers = #tpu.dot_dimension_numbers<[1], [0], [0], [1], [0, 0, 1, 1], [], []>} : vector<2x32xf32>, vector<32x128xf32>, vector<2x128xf32> -> vector<2x128xf32>
    %410 = arith.addf %408, %409 : vector<2x128xf32>
    %411 = arith.addf %410, %9 : vector<2x128xf32>
    %412 = math.tanh %411 : vector<2x128xf32>
    %413 = vector.extract_strided_slice %412 {offsets = [0, 0], sizes = [2, 32], strides = [1, 1]} : vector<2x128xf32> to vector<2x32xf32>
    %cst_143 = arith.constant 1.000000e+00 : f32
    %414 = vector.broadcast %cst_143 : f32 to vector<2x32xf32>
    %415 = arith.addf %413, %414 : vector<2x32xf32>
    %cst_144 = arith.constant 5.000000e-01 : f32
    %416 = vector.broadcast %cst_144 : f32 to vector<2x32xf32>
    %417 = arith.mulf %416, %415 : vector<2x32xf32>
    %418 = vector.extract_strided_slice %412 {offsets = [0, 32], sizes = [2, 32], strides = [1, 1]} : vector<2x128xf32> to vector<2x32xf32>
    %cst_145 = arith.constant 1.000000e+00 : f32
    %419 = vector.broadcast %cst_145 : f32 to vector<2x32xf32>
    %420 = arith.addf %418, %419 : vector<2x32xf32>
    %cst_146 = arith.constant 5.000000e-01 : f32
    %421 = vector.broadcast %cst_146 : f32 to vector<2x32xf32>
    %422 = arith.mulf %421, %420 : vector<2x32xf32>
    %423 = vector.extract_strided_slice %412 {offsets = [0, 64], sizes = [2, 32], strides = [1, 1]} : vector<2x128xf32> to vector<2x32xf32>
    %424 = vector.extract_strided_slice %412 {offsets = [0, 96], sizes = [2, 32], strides = [1, 1]} : vector<2x128xf32> to vector<2x32xf32>
    %cst_147 = arith.constant 1.000000e+00 : f32
    %425 = vector.broadcast %cst_147 : f32 to vector<2x32xf32>
    %426 = arith.addf %424, %425 : vector<2x32xf32>
    %cst_148 = arith.constant 5.000000e-01 : f32
    %427 = vector.broadcast %cst_148 : f32 to vector<2x32xf32>
    %428 = arith.mulf %427, %426 : vector<2x32xf32>
    %429 = arith.mulf %422, %379 : vector<2x32xf32>
    %430 = arith.mulf %417, %423 : vector<2x32xf32>
    %431 = arith.addf %429, %430 : vector<2x32xf32>
    %432 = math.tanh %431 : vector<2x32xf32>
    %433 = arith.mulf %428, %432 : vector<2x32xf32>
    %434 = tpu.concatenate %433, %381, %329, %277, %225, %173, %121, %69 in 1 : vector<2x32xf32>, vector<2x32xf32>, vector<2x32xf32>, vector<2x32xf32>, vector<2x32xf32>, vector<2x32xf32>, vector<2x32xf32>, vector<2x32xf32> -> vector<2x256xf32>
    %c0_149 = arith.constant 0 : index
    %c0_150 = arith.constant 0 : index
    %435 = vector.load %arg8[%c0_149, %c0_150] : memref<256x32xf32, #tpu.memory_space<vmem>>, vector<256x32xf32>
    %cst_151 = arith.constant dense<0.000000e+00> : vector<2x32xf32>
    %436 = tpu.matmul %434, %435, %cst_151 {dimension_numbers = #tpu.dot_dimension_numbers<[1], [0], [0], [1], [0, 0, 1, 1], [], []>} : vector<2x256xf32>, vector<256x32xf32>, vector<2x32xf32> -> vector<2x32xf32>
    %c0_152 = arith.constant 0 : index
    %c0_153 = arith.constant 0 : index
    %437 = vector.load %arg9[%c0_152, %c0_153] : memref<1x32xf32, #tpu.memory_space<vmem>>, vector<1x32xf32>
    %438 = vector.shape_cast %437 : vector<1x32xf32> to vector<1x32xf32>
    %439 = vector.broadcast %438 : vector<1x32xf32> to vector<2x32xf32>
    %440 = arith.addf %436, %439 : vector<2x32xf32>
    %c0_154 = arith.constant 0 : index
    %c0_155 = arith.constant 0 : index
    %441 = vector.load %arg10[%c0_154, %c0_155] : memref<2x32xf32, #tpu.memory_space<vmem>>, vector<2x32xf32>
    tpu.vector_store %arg10[%c0_154, %c0_155], %440 {strides = array<i32>} : memref<2x32xf32, #tpu.memory_space<vmem>>, vector<2x32xf32>,
    return
  }
}

</mosaic_0001>

<llo_original>
// kernel: tpu_custom_call.1
$region0: #{tpu_custom_call.1}
  #allocation0 [shape = 'u32[]', space=smem, size = 0x4, offset = 0x4, fixed_abs, tag = 'smem constant byte address 0x4 - core index']
  #allocation1 [shape = 'u32[144,128]{1,0:T(1,128)}', space=vmem, size = 0x12000, scoped, tag = 'internal scratch']
  %s0 = inlined_call_operand.vmem [shape: f32[2,2,32], index: 0, kind: input, shape index: {}]
  %s1 = inlined_call_operand.vmem [shape: f32[2,2,32], index: 1, kind: input, shape index: {}]
  %s2 = inlined_call_operand.vmem [shape: f32[32,128], index: 2, kind: input, shape index: {}]
  %s3 = inlined_call_operand.vmem [shape: f32[32,128], index: 3, kind: input, shape index: {}]
  %s4 = inlined_call_operand.vmem [shape: f32[32,128], index: 4, kind: input, shape index: {}]
  %s5 = inlined_call_operand.vmem [shape: f32[32,128], index: 5, kind: input, shape index: {}]
  %s6 = inlined_call_operand.vmem [shape: f32[1,128], index: 6, kind: input, shape index: {}]
  %s7 = inlined_call_operand.vmem [shape: f32[1,128], index: 7, kind: input, shape index: {}]
  %s8 = inlined_call_operand.vmem [shape: f32[256,32], index: 8, kind: input, shape index: {}]
  %s9 = inlined_call_operand.vmem [shape: f32[1,32], index: 9, kind: input, shape index: {}]
  %s10 = inlined_call_operand.hbm [shape: f32[2,32], index: 10, kind: output, shape index: {}]
  %s11 = sld [smem:[#allocation0]]
  $region50: #{tpu_custom_call.1} parent=0
    _
  %s13 = ssub.s32 1, %s11
  %s14 = scalar_select 0, %s13, %s11
  $region1: #{tpu_custom_call.1} parent=0
    #allocation2 [shape = 'u8[1024]{0}', space=vmem, size = 0x400, scoped, tag = 'output window, operand 0, single buffered']
    #allocation3 [shape = 's32[1]{0}', space=sflag, size = 0x4, scoped, tag = 'scoped memory for tpu_custom_call.1']
    %15 = vsyncpa [#allocation3], 0
    // Predicated region
    $region2: #{tpu_custom_call.1} parent=1 // pred_check
      _
    $region3: #{tpu_custom_call.1} parent=1 // pred_check_branch
      %17 = sbr.rel (0) target = $region5
    $region4: #{tpu_custom_call.1} parent=1 // pred_region
      _
    $region5: #{tpu_custom_call.1} parent=1 // pred_fallthru
      _
    // Predicated region
    $region6: #{tpu_custom_call.1} parent=1 // pred_check
      _
    $region7: #{tpu_custom_call.1} parent=1 // pred_check_branch
      %19 = sbr.rel (0) target = $region9
    $region8: #{tpu_custom_call.1} parent=1 // pred_region
      _
    $region9: #{tpu_custom_call.1} parent=1 // pred_fallthru
      _
    // Predicated region
    $region10: #{tpu_custom_call.1} parent=1 // pred_check
      _
    $region11: #{tpu_custom_call.1} parent=1 // pred_check_branch
      %21 = sbr.rel (0) target = $region13
    $region12: #{tpu_custom_call.1} parent=1 // pred_region
      _
    $region13: #{tpu_custom_call.1} parent=1 // pred_fallthru
      _
    // Predicated region
    $region14: #{tpu_custom_call.1} parent=1 // pred_check
      _
    $region15: #{tpu_custom_call.1} parent=1 // pred_check_branch
      %23 = sbr.rel (0) target = $region17
    $region16: #{tpu_custom_call.1} parent=1 // pred_region
      _
    $region17: #{tpu_custom_call.1} parent=1 // pred_fallthru
      _
    // Predicated region
    $region18: #{tpu_custom_call.1} parent=1 // pred_check
      _
    $region19: #{tpu_custom_call.1} parent=1 // pred_check_branch
      %25 = sbr.rel (0) target = $region21
    $region20: #{tpu_custom_call.1} parent=1 // pred_region
      _
    $region21: #{tpu_custom_call.1} parent=1 // pred_fallthru
      _
    // Predicated region
    $region22: #{tpu_custom_call.1} parent=1 // pred_check
      _
    $region23: #{tpu_custom_call.1} parent=1 // pred_check_branch
      %27 = sbr.rel (0) target = $region25
    $region24: #{tpu_custom_call.1} parent=1 // pred_region
      _
    $region25: #{tpu_custom_call.1} parent=1 // pred_fallthru
      _
    // Predicated region
    $region26: #{tpu_custom_call.1} parent=1 // pred_check
      _
    $region27: #{tpu_custom_call.1} parent=1 // pred_check_branch
      %29 = sbr.rel (0) target = $region29
    $region28: #{tpu_custom_call.1} parent=1 // pred_region
      _
    $region29: #{tpu_custom_call.1} parent=1 // pred_fallthru
      _
    // Predicated region
    $region30: #{tpu_custom_call.1} parent=1 // pred_check
      _
    $region31: #{tpu_custom_call.1} parent=1 // pred_check_branch
      %31 = sbr.rel (0) target = $region33
    $region32: #{tpu_custom_call.1} parent=1 // pred_region
      _
    $region33: #{tpu_custom_call.1} parent=1 // pred_fallthru
      _
    // Predicated region
    $region34: #{tpu_custom_call.1} parent=1 // pred_check
      _
    $region35: #{tpu_custom_call.1} parent=1 // pred_check_branch
      %33 = sbr.rel (0) target = $region37
    $region36: #{tpu_custom_call.1} parent=1 // pred_region
      _
    $region37: #{tpu_custom_call.1} parent=1 // pred_fallthru
      _
    // Predicated region
    $region38: #{tpu_custom_call.1} parent=1 // pred_check
      _
    $region39: #{tpu_custom_call.1} parent=1 // pred_check_branch
      %35 = sbr.rel (0) target = $region41
    $region40: #{tpu_custom_call.1} parent=1 // pred_region
      _
    $region41: #{tpu_custom_call.1} parent=1 // pred_fallthru
      _
    %v36 = vld [vmem:[%s2] sm:$0xff]
    %v37 = vld [vmem:[%s2 + $0x8] sm:$0xff]
    %v38 = vld [vmem:[%s2 + $0x10] sm:$0xff]
    %v39 = vld [vmem:[%s2 + $0x18] sm:$0xff]
    %v40 = vld [vmem:[%s3] sm:$0xff]
    %v41 = vld [vmem:[%s3 + $0x8] sm:$0xff]
    %v42 = vld [vmem:[%s3 + $0x10] sm:$0xff]
    %v43 = vld [vmem:[%s3 + $0x18] sm:$0xff]
    %v44 = vld [vmem:[%s4] sm:$0xff]
    %v45 = vld [vmem:[%s4 + $0x8] sm:$0xff]
    %v46 = vld [vmem:[%s4 + $0x10] sm:$0xff]
    %v47 = vld [vmem:[%s4 + $0x18] sm:$0xff]
    %v48 = vld [vmem:[%s5] sm:$0xff]
    %v49 = vld [vmem:[%s5 + $0x8] sm:$0xff]
    %v50 = vld [vmem:[%s5 + $0x10] sm:$0xff]
    %v51 = vld [vmem:[%s5 + $0x18] sm:$0xff]
    %v52 = vld [vmem:[%s6] sm:$0x1]
    %v54 = vlaneseq
    %v55 = vshrl.u32 %v54, 7
    %v56 = vsub.s32 0, %v55
    %v57 = vrot.slane %v52, %v56
    %v59 = vld [vmem:[%s7] sm:$0x1]
    %v61 = vlaneseq
    %v62 = vshrl.u32 %v61, 7
    %v63 = vsub.s32 0, %v62
    %v64 = vrot.slane %v59, %v63
    %v66 = vld [vmem:[%s0] sm:$0x3]
    %s67 = scalar_lea.vmem %s0, 2
    %v68 = vld [vmem:[%s67] sm:$0x3]
    %v69 = vld [vmem:[%s1] sm:$0x3]
    %s70 = scalar_lea.vmem %s1, 2
    %v71 = vld [vmem:[%s70] sm:$0x3]
    %vm72 = vcmask 261120
    %v74 = vsel %vm72, %v66, 0
    %76 = vmatprep.subr.mxu0 0.0
    %77 = vmatpush1.msra.mxu0 0.0
    %78 = vmatprep.subr.mxu0 0.0
    %79 = vmatpush1.msra.mxu0 0.0
    %80 = vmatprep.subr.mxu0 0.0
    %81 = vmatpush1.msra.mxu0 0.0
    %82 = vmatprep.subr.mxu0 0.0
    %83 = vmatpush1.msra.mxu0 0.0
    %84 = vmatprep.subr.mxu0 0.0
    %85 = vmatpush1.msra.mxu0 0.0
    %86 = vmatprep.subr.mxu0 0.0
    %87 = vmatpush1.msra.mxu0 0.0
    %88 = vmatprep.subr.mxu0 0.0
    %89 = vmatpush1.msra.mxu0 0.0
    %90 = vmatprep.subr.mxu0 0.0
    %91 = vmatpush1.msra.mxu0 0.0
    %92 = vmatprep.subr.mxu0 0.0
    %93 = vmatpush1.msra.mxu0 0.0
    %94 = vmatprep.subr.mxu0 0.0
    %95 = vmatpush1.msra.mxu0 0.0
    %96 = vmatprep.subr.mxu0 0.0
    %97 = vmatpush1.msra.mxu0 0.0
    %98 = vmatprep.subr.mxu0 0.0
    %99 = vmatpush1.msra.mxu0 0.0
    %100 = vmatprep.subr.mxu0 0.0
    %101 = vmatpush1.msra.mxu0 %v47
    %102 = vmatprep.subr.mxu0 0.0
    %103 = vmatpush1.msra.mxu0 %v46
    %104 = vmatprep.subr.mxu0 0.0
    %105 = vmatpush1.msra.mxu0 %v45
    %106 = vmatprep.subr.mxu0 0.0
    %107 = vmatpush1.msra.mxu0 %v44
    %108 = vmatprep.subr.mxu0 0.0
    %109 = vmatpush2.msra.mxu0 0.0
    %110 = vmatprep.subr.mxu0 0.0
    %111 = vmatpush2.msra.mxu0 0.0
    %112 = vmatprep.subr.mxu0 0.0
    %113 = vmatpush2.msra.mxu0 0.0
    %114 = vmatprep.subr.mxu0 0.0
    %115 = vmatpush2.msra.mxu0 0.0
    %116 = vmatprep.subr.mxu0 0.0
    %117 = vmatpush2.msra.mxu0 0.0
    %118 = vmatprep.subr.mxu0 0.0
    %119 = vmatpush2.msra.mxu0 0.0
    %120 = vmatprep.subr.mxu0 0.0
    %121 = vmatpush2.msra.mxu0 0.0
    %122 = vmatprep.subr.mxu0 0.0
    %123 = vmatpush2.msra.mxu0 0.0
    %124 = vmatprep.subr.mxu0 0.0
    %125 = vmatpush2.msra.mxu0 0.0
    %126 = vmatprep.subr.mxu0 0.0
    %127 = vmatpush2.msra.mxu0 0.0
    %128 = vmatprep.subr.mxu0 0.0
    %129 = vmatpush2.msra.mxu0 0.0
    %130 = vmatprep.subr.mxu0 0.0
    %131 = vmatpush2.msra.mxu0 0.0
    %132 = vmatprep.subr.mxu0 0.0
    %133 = vmatpush2.msra.mxu0 0.0
    %134 = vmatprep.subr.mxu0 0.0
    %135 = vmatpush2.msra.mxu0 0.0
    %136 = vmatprep.subr.mxu0 0.0
    %137 = vmatpush2.msra.mxu0 0.0
    %138 = vmatprep.subr.mxu0 0.0
    %139 = vmatpush2.msra.mxu0 0.0
    %140 = vmatprep.mubr.f32.mxu0 0.0
    %141 = vmatmul.mubr.f32.gmra.mxu0 %v74
    %v142 = vpop.f32.mrf.mxu0
    %v143 = vadd.f32 0.0, %v142
    %v144 = vpop.f32.mrf.mxu0
    %145 = vdwg.mxu0
    %v147 = vsel %vm72, %v68, 0
    %149 = vmatprep.subr.mxu0 0.0
    %150 = vmatpush1.msra.mxu0 0.0
    %151 = vmatprep.subr.mxu0 0.0
    %152 = vmatpush1.msra.mxu0 0.0
    %153 = vmatprep.subr.mxu0 0.0
    %154 = vmatpush1.msra.mxu0 0.0
    %155 = vmatprep.subr.mxu0 0.0
    %156 = vmatpush1.msra.mxu0 0.0
    %157 = vmatprep.subr.mxu0 0.0
    %158 = vmatpush1.msra.mxu0 0.0
    %159 = vmatprep.subr.mxu0 0.0
    %160 = vmatpush1.msra.mxu0 0.0
    %161 = vmatprep.subr.mxu0 0.0
    %162 = vmatpush1.msra.mxu0 0.0
    %163 = vmatprep.subr.mxu0 0.0
    %164 = vmatpush1.msra.mxu0 0.0
    %165 = vmatprep.subr.mxu0 0.0
    %166 = vmatpush1.msra.mxu0 0.0
    %167 = vmatprep.subr.mxu0 0.0
    %168 = vmatpush1.msra.mxu0 0.0
    %169 = vmatprep.subr.mxu0 0.0
    %170 = vmatpush1.msra.mxu0 0.0
    %171 = vmatprep.subr.mxu0 0.0
    %172 = vmatpush1.msra.mxu0 0.0
    %173 = vmatprep.subr.mxu0 0.0
    %174 = vmatpush1.msra.mxu0 %v39
    %175 = vmatprep.subr.mxu0 0.0
    %176 = vmatpush1.msra.mxu0 %v38
    %177 = vmatprep.subr.mxu0 0.0
    %178 = vmatpush1.msra.mxu0 %v37
    %179 = vmatprep.subr.mxu0 0.0
    %180 = vmatpush1.msra.mxu0 %v36
    %181 = vmatprep.subr.mxu0 0.0
    %182 = vmatpush2.msra.mxu0 0.0
    %183 = vmatprep.subr.mxu0 0.0
    %184 = vmatpush2.msra.mxu0 0.0
    %185 = vmatprep.subr.mxu0 0.0
    %186 = vmatpush2.msra.mxu0 0.0
    %187 = vmatprep.subr.mxu0 0.0
    %188 = vmatpush2.msra.mxu0 0.0
    %189 = vmatprep.subr.mxu0 0.0
    %190 = vmatpush2.msra.mxu0 0.0
    %191 = vmatprep.subr.mxu0 0.0
    %192 = vmatpush2.msra.mxu0 0.0
    %193 = vmatprep.subr.mxu0 0.0
    %194 = vmatpush2.msra.mxu0 0.0
    %195 = vmatprep.subr.mxu0 0.0
    %196 = vmatpush2.msra.mxu0 0.0
    %197 = vmatprep.subr.mxu0 0.0
    %198 = vmatpush2.msra.mxu0 0.0
    %199 = vmatprep.subr.mxu0 0.0
    %200 = vmatpush2.msra.mxu0 0.0
    %201 = vmatprep.subr.mxu0 0.0
    %202 = vmatpush2.msra.mxu0 0.0
    %203 = vmatprep.subr.mxu0 0.0
    %204 = vmatpush2.msra.mxu0 0.0
    %205 = vmatprep.subr.mxu0 0.0
    %206 = vmatpush2.msra.mxu0 0.0
    %207 = vmatprep.subr.mxu0 0.0
    %208 = vmatpush2.msra.mxu0 0.0
    %209 = vmatprep.subr.mxu0 0.0
    %210 = vmatpush2.msra.mxu0 0.0
    %211 = vmatprep.subr.mxu0 0.0
    %212 = vmatpush2.msra.mxu0 0.0
    %213 = vmatprep.mubr.f32.mxu0 0.0
    %214 = vmatmul.mubr.f32.gmra.mxu0 %v147
    %v215 = vpop.f32.mrf.mxu0
    %v216 = vadd.f32 %v143, %v215
    %v217 = vpop.f32.mrf.mxu0
    %218 = vdwg.mxu0
    %v219 = vadd.f32 %v216, %v57
    %v220 = vtanh.pop %v219
    %v221 = vadd.f32 %v220, 1.0
    %v222 = vmul.f32 %v221, 0.5
    %224 = vrot.lane.b32.xlu0 %v69, 32
    %v225 = vpop.permute.xlu0 %224
    %v227 = vmul.f32 %v222, %v225
    %229 = vrot.lane.b32.xlu0 %v220, 64
    %v230 = vpop.permute.xlu0 %229
    %v232 = vmul.f32 %v222, %v230
    %234 = vrot.lane.b32.xlu0 %v232, 32
    %v235 = vpop.permute.xlu0 %234
    %v237 = vadd.f32 %v227, %v235
    %v238 = vtanh.pop %v237
    %240 = vrot.lane.b32.xlu0 %v238, 64
    %v241 = vpop.permute.xlu0 %240
    %v243 = vmul.f32 %v222, %v241
    %244 = vmatprep.subr.mxu0 0.0
    %245 = vmatpush1.msra.mxu0 0.0
    %246 = vmatprep.subr.mxu0 0.0
    %247 = vmatpush1.msra.mxu0 0.0
    %248 = vmatprep.subr.mxu0 0.0
    %249 = vmatpush1.msra.mxu0 0.0
    %250 = vmatprep.subr.mxu0 0.0
    %251 = vmatpush1.msra.mxu0 0.0
    %252 = vmatprep.subr.mxu0 0.0
    %253 = vmatpush1.msra.mxu0 0.0
    %254 = vmatprep.subr.mxu0 0.0
    %255 = vmatpush1.msra.mxu0 0.0
    %256 = vmatprep.subr.mxu0 0.0
    %257 = vmatpush1.msra.mxu0 0.0
    %258 = vmatprep.subr.mxu0 0.0
    %259 = vmatpush1.msra.mxu0 0.0
    %260 = vmatprep.subr.mxu0 0.0
    %261 = vmatpush1.msra.mxu0 0.0
    %262 = vmatprep.subr.mxu0 0.0
    %263 = vmatpush1.msra.mxu0 0.0
    %264 = vmatprep.subr.mxu0 0.0
    %265 = vmatpush1.msra.mxu0 0.0
    %266 = vmatprep.subr.mxu0 0.0
    %267 = vmatpush1.msra.mxu0 0.0
    %268 = vmatprep.subr.mxu0 0.0
    %269 = vmatpush1.msra.mxu0 %v51
    %270 = vmatprep.subr.mxu0 0.0
    %271 = vmatpush1.msra.mxu0 %v50
    %272 = vmatprep.subr.mxu0 0.0
    %273 = vmatpush1.msra.mxu0 %v49
    %274 = vmatprep.subr.mxu0 0.0
    %275 = vmatpush1.msra.mxu0 %v48
    %276 = vmatprep.subr.mxu0 0.0
    %277 = vmatpush2.msra.mxu0 0.0
    %278 = vmatprep.subr.mxu0 0.0
    %279 = vmatpush2.msra.mxu0 0.0
    %280 = vmatprep.subr.mxu0 0.0
    %281 = vmatpush2.msra.mxu0 0.0
    %282 = vmatprep.subr.mxu0 0.0
    %283 = vmatpush2.msra.mxu0 0.0
    %284 = vmatprep.subr.mxu0 0.0
    %285 = vmatpush2.msra.mxu0 0.0
    %286 = vmatprep.subr.mxu0 0.0
    %287 = vmatpush2.msra.mxu0 0.0
    %288 = vmatprep.subr.mxu0 0.0
    %289 = vmatpush2.msra.mxu0 0.0
    %290 = vmatprep.subr.mxu0 0.0
    %291 = vmatpush2.msra.mxu0 0.0
    %292 = vmatprep.subr.mxu0 0.0
    %293 = vmatpush2.msra.mxu0 0.0
    %294 = vmatprep.subr.mxu0 0.0
    %295 = vmatpush2.msra.mxu0 0.0
    %296 = vmatprep.subr.mxu0 0.0
    %297 = vmatpush2.msra.mxu0 0.0
    %298 = vmatprep.subr.mxu0 0.0
    %299 = vmatpush2.msra.mxu0 0.0
    %300 = vmatprep.subr.mxu0 0.0
    %301 = vmatpush2.msra.mxu0 0.0
    %302 = vmatprep.subr.mxu0 0.0
    %303 = vmatpush2.msra.mxu0 0.0
    %304 = vmatprep.subr.mxu0 0.0
    %305 = vmatpush2.msra.mxu0 0.0
    %306 = vmatprep.subr.mxu0 0.0
    %307 = vmatpush2.msra.mxu0 0.0
    %308 = vmatprep.mubr.f32.mxu0 0.0
    %309 = vmatmul.mubr.f32.gmra.mxu0 %v147
    %v310 = vpop.f32.mrf.mxu0
    %v311 = vadd.f32 0.0, %v310
    %v312 = vpop.f32.mrf.mxu0
    %313 = vdwg.mxu0
    %315 = vrot.lane.b32.xlu0 %v243, 32
    %v316 = vpop.permute.xlu0 %315
    %v317 = vsel %vm72, %v316, 0
    %319 = vmatprep.subr.mxu0 0.0
    %320 = vmatpush1.msra.mxu0 0.0
    %321 = vmatprep.subr.mxu0 0.0
    %322 = vmatpush1.msra.mxu0 0.0
    %323 = vmatprep.subr.mxu0 0.0
    %324 = vmatpush1.msra.mxu0 0.0
    %325 = vmatprep.subr.mxu0 0.0
    %326 = vmatpush1.msra.mxu0 0.0
    %327 = vmatprep.subr.mxu0 0.0
    %328 = vmatpush1.msra.mxu0 0.0
    %329 = vmatprep.subr.mxu0 0.0
    %330 = vmatpush1.msra.mxu0 0.0
    %331 = vmatprep.subr.mxu0 0.0
    %332 = vmatpush1.msra.mxu0 0.0
    %333 = vmatprep.subr.mxu0 0.0
    %334 = vmatpush1.msra.mxu0 0.0
    %335 = vmatprep.subr.mxu0 0.0
    %336 = vmatpush1.msra.mxu0 0.0
    %337 = vmatprep.subr.mxu0 0.0
    %338 = vmatpush1.msra.mxu0 0.0
    %339 = vmatprep.subr.mxu0 0.0
    %340 = vmatpush1.msra.mxu0 0.0
    %341 = vmatprep.subr.mxu0 0.0
    %342 = vmatpush1.msra.mxu0 0.0
    %343 = vmatprep.subr.mxu0 0.0
    %344 = vmatpush1.msra.mxu0 %v43
    %345 = vmatprep.subr.mxu0 0.0
    %346 = vmatpush1.msra.mxu0 %v42
    %347 = vmatprep.subr.mxu0 0.0
    %348 = vmatpush1.msra.mxu0 %v41
    %349 = vmatprep.subr.mxu0 0.0
    %350 = vmatpush1.msra.mxu0 %v40
    %351 = vmatprep.subr.mxu0 0.0
    %352 = vmatpush2.msra.mxu0 0.0
    %353 = vmatprep.subr.mxu0 0.0
    %354 = vmatpush2.msra.mxu0 0.0
    %355 = vmatprep.subr.mxu0 0.0
    %356 = vmatpush2.msra.mxu0 0.0
    %357 = vmatprep.subr.mxu0 0.0
    %358 = vmatpush2.msra.mxu0 0.0
    %359 = vmatprep.subr.mxu0 0.0
    %360 = vmatpush2.msra.mxu0 0.0
    %361 = vmatprep.subr.mxu0 0.0
    %362 = vmatpush2.msra.mxu0 0.0
    %363 = vmatprep.subr.mxu0 0.0
    %364 = vmatpush2.msra.mxu0 0.0
    %365 = vmatprep.subr.mxu0 0.0
    %366 = vmatpush2.msra.mxu0 0.0
    %367 = vmatprep.subr.mxu0 0.0
    %368 = vmatpush2.msra.mxu0 0.0
    %369 = vmatprep.subr.mxu0 0.0
    %370 = vmatpush2.msra.mxu0 0.0
    %371 = vmatprep.subr.mxu0 0.0
    %372 = vmatpush2.msra.mxu0 0.0
    %373 = vmatprep.subr.mxu0 0.0
    %374 = vmatpush2.msra.mxu0 0.0
    %375 = vmatprep.subr.mxu0 0.0
    %376 = vmatpush2.msra.mxu0 0.0
    %377 = vmatprep.subr.mxu0 0.0
    %378 = vmatpush2.msra.mxu0 0.0
    %379 = vmatprep.subr.mxu0 0.0
    %380 = vmatpush2.msra.mxu0 0.0
    %381 = vmatprep.subr.mxu0 0.0
    %382 = vmatpush2.msra.mxu0 0.0
    %383 = vmatprep.mubr.f32.mxu0 0.0
    %384 = vmatmul.mubr.f32.gmra.mxu0 %v317
    %v385 = vpop.f32.mrf.mxu0
    %v386 = vadd.f32 %v311, %v385
    %v387 = vpop.f32.mrf.mxu0
    %388 = vdwg.mxu0
    %v389 = vadd.f32 %v386, %v64
    %v390 = vtanh.pop %v389
    %v391 = vadd.f32 %v390, 1.0
    %v392 = vmul.f32 %v391, 0.5
    %394 = vrot.lane.b32.xlu0 %v71, 32
    %v395 = vpop.permute.xlu0 %394
    %v397 = vmul.f32 %v392, %v395
    %399 = vrot.lane.b32.xlu0 %v390, 64
    %v400 = vpop.permute.xlu0 %399
    %v402 = vmul.f32 %v392, %v400
    %404 = vrot.lane.b32.xlu0 %v402, 32
    %v405 = vpop.permute.xlu0 %404
    %v407 = vadd.f32 %v397, %v405
    %v408 = vtanh.pop %v407
    %410 = vrot.lane.b32.xlu0 %v408, 64
    %v411 = vpop.permute.xlu0 %410
    %v413 = vmul.f32 %v392, %v411
    %414 = vmatprep.subr.mxu0 0.0
    %415 = vmatpush1.msra.mxu0 0.0
    %416 = vmatprep.subr.mxu0 0.0
    %417 = vmatpush1.msra.mxu0 0.0
    %418 = vmatprep.subr.mxu0 0.0
    %419 = vmatpush1.msra.mxu0 0.0
    %420 = vmatprep.subr.mxu0 0.0
    %421 = vmatpush1.msra.mxu0 0.0
    %422 = vmatprep.subr.mxu0 0.0
    %423 = vmatpush1.msra.mxu0 0.0
    %424 = vmatprep.subr.mxu0 0.0
    %425 = vmatpush1.msra.mxu0 0.0
    %426 = vmatprep.subr.mxu0 0.0
    %427 = vmatpush1.msra.mxu0 0.0
    %428 = vmatprep.subr.mxu0 0.0
    %429 = vmatpush1.msra.mxu0 0.0
    %430 = vmatprep.subr.mxu0 0.0
    %431 = vmatpush1.msra.mxu0 0.0
    %432 = vmatprep.subr.mxu0 0.0
    %433 = vmatpush1.msra.mxu0 0.0
    %434 = vmatprep.subr.mxu0 0.0
    %435 = vmatpush1.msra.mxu0 0.0
    %436 = vmatprep.subr.mxu0 0.0
    %437 = vmatpush1.msra.mxu0 0.0
    %438 = vmatprep.subr.mxu0 0.0
    %439 = vmatpush1.msra.mxu0 %v47
    %440 = vmatprep.subr.mxu0 0.0
    %441 = vmatpush1.msra.mxu0 %v46
    %442 = vmatprep.subr.mxu0 0.0
    %443 = vmatpush1.msra.mxu0 %v45
    %444 = vmatprep.subr.mxu0 0.0
    %445 = vmatpush1.msra.mxu0 %v44
    %446 = vmatprep.subr.mxu0 0.0
    %447 = vmatpush2.msra.mxu0 0.0
    %448 = vmatprep.subr.mxu0 0.0
    %449 = vmatpush2.msra.mxu0 0.0
    %450 = vmatprep.subr.mxu0 0.0
    %451 = vmatpush2.msra.mxu0 0.0
    %452 = vmatprep.subr.mxu0 0.0
    %453 = vmatpush2.msra.mxu0 0.0
    %454 = vmatprep.subr.mxu0 0.0
    %455 = vmatpush2.msra.mxu0 0.0
    %456 = vmatprep.subr.mxu0 0.0
    %457 = vmatpush2.msra.mxu0 0.0
    %458 = vmatprep.subr.mxu0 0.0
    %459 = vmatpush2.msra.mxu0 0.0
    %460 = vmatprep.subr.mxu0 0.0
    %461 = vmatpush2.msra.mxu0 0.0
    %462 = vmatprep.subr.mxu0 0.0
    %463 = vmatpush2.msra.mxu0 0.0
    %464 = vmatprep.subr.mxu0 0.0
    %465 = vmatpush2.msra.mxu0 0.0
    %466 = vmatprep.subr.mxu0 0.0
    %467 = vmatpush2.msra.mxu0 0.0
    %468 = vmatprep.subr.mxu0 0.0
    %469 = vmatpush2.msra.mxu0 0.0
    %470 = vmatprep.subr.mxu0 0.0
    %471 = vmatpush2.msra.mxu0 0.0
    %472 = vmatprep.subr.mxu0 0.0
    %473 = vmatpush2.msra.mxu0 0.0
    %474 = vmatprep.subr.mxu0 0.0
    %475 = vmatpush2.msra.mxu0 0.0
    %476 = vmatprep.subr.mxu0 0.0
    %477 = vmatpush2.msra.mxu0 0.0
    %478 = vmatprep.mubr.f32.mxu0 0.0
    %479 = vmatmul.mubr.f32.gmra.mxu0 %v317
    %v480 = vpop.f32.mrf.mxu0
    %v481 = vadd.f32 0.0, %v480
    %v482 = vpop.f32.mrf.mxu0
    %483 = vdwg.mxu0
    %485 = vrot.lane.b32.xlu0 %v413, 32
    %v486 = vpop.permute.xlu0 %485
    %v487 = vsel %vm72, %v486, 0
    %489 = vmatprep.subr.mxu0 0.0
    %490 = vmatpush1.msra.mxu0 0.0
    %491 = vmatprep.subr.mxu0 0.0
    %492 = vmatpush1.msra.mxu0 0.0
    %493 = vmatprep.subr.mxu0 0.0
    %494 = vmatpush1.msra.mxu0 0.0
    %495 = vmatprep.subr.mxu0 0.0
    %496 = vmatpush1.msra.mxu0 0.0
    %497 = vmatprep.subr.mxu0 0.0
    %498 = vmatpush1.msra.mxu0 0.0
    %499 = vmatprep.subr.mxu0 0.0
    %500 = vmatpush1.msra.mxu0 0.0
    %501 = vmatprep.subr.mxu0 0.0
    %502 = vmatpush1.msra.mxu0 0.0
    %503 = vmatprep.subr.mxu0 0.0
    %504 = vmatpush1.msra.mxu0 0.0
    %505 = vmatprep.subr.mxu0 0.0
    %506 = vmatpush1.msra.mxu0 0.0
    %507 = vmatprep.subr.mxu0 0.0
    %508 = vmatpush1.msra.mxu0 0.0
    %509 = vmatprep.subr.mxu0 0.0
    %510 = vmatpush1.msra.mxu0 0.0
    %511 = vmatprep.subr.mxu0 0.0
    %512 = vmatpush1.msra.mxu0 0.0
    %513 = vmatprep.subr.mxu0 0.0
    %514 = vmatpush1.msra.mxu0 %v39
    %515 = vmatprep.subr.mxu0 0.0
    %516 = vmatpush1.msra.mxu0 %v38
    %517 = vmatprep.subr.mxu0 0.0
    %518 = vmatpush1.msra.mxu0 %v37
    %519 = vmatprep.subr.mxu0 0.0
    %520 = vmatpush1.msra.mxu0 %v36
    %521 = vmatprep.subr.mxu0 0.0
    %522 = vmatpush2.msra.mxu0 0.0
    %523 = vmatprep.subr.mxu0 0.0
    %524 = vmatpush2.msra.mxu0 0.0
    %525 = vmatprep.subr.mxu0 0.0
    %526 = vmatpush2.msra.mxu0 0.0
    %527 = vmatprep.subr.mxu0 0.0
    %528 = vmatpush2.msra.mxu0 0.0
    %529 = vmatprep.subr.mxu0 0.0
    %530 = vmatpush2.msra.mxu0 0.0
    %531 = vmatprep.subr.mxu0 0.0
    %532 = vmatpush2.msra.mxu0 0.0
    %533 = vmatprep.subr.mxu0 0.0
    %534 = vmatpush2.msra.mxu0 0.0
    %535 = vmatprep.subr.mxu0 0.0
    %536 = vmatpush2.msra.mxu0 0.0
    %537 = vmatprep.subr.mxu0 0.0
    %538 = vmatpush2.msra.mxu0 0.0
    %539 = vmatprep.subr.mxu0 0.0
    %540 = vmatpush2.msra.mxu0 0.0
    %541 = vmatprep.subr.mxu0 0.0
    %542 = vmatpush2.msra.mxu0 0.0
    %543 = vmatprep.subr.mxu0 0.0
    %544 = vmatpush2.msra.mxu0 0.0
    %545 = vmatprep.subr.mxu0 0.0
    %546 = vmatpush2.msra.mxu0 0.0
    %547 = vmatprep.subr.mxu0 0.0
    %548 = vmatpush2.msra.mxu0 0.0
    %549 = vmatprep.subr.mxu0 0.0
    %550 = vmatpush2.msra.mxu0 0.0
    %551 = vmatprep.subr.mxu0 0.0
    %552 = vmatpush2.msra.mxu0 0.0
    %553 = vmatprep.mubr.f32.mxu0 0.0
    %554 = vmatmul.mubr.f32.gmra.mxu0 %v487
    %v555 = vpop.f32.mrf.mxu0
    %v556 = vadd.f32 %v481, %v555
    %v557 = vpop.f32.mrf.mxu0
    %558 = vdwg.mxu0
    %v559 = vadd.f32 %v556, %v57
    %v560 = vtanh.pop %v559
    %v561 = vadd.f32 %v560, 1.0
    %v562 = vmul.f32 %v561, 0.5
    %v563 = vmul.f32 %v562, %v237
    %565 = vrot.lane.b32.xlu0 %v560, 64
    %v566 = vpop.permute.xlu0 %565
    %v568 = vmul.f32 %v562, %v566
    %570 = vrot.lane.b32.xlu0 %v568, 32
    %v571 = vpop.permute.xlu0 %570
    %v573 = vadd.f32 %v563, %v571
    %v574 = vtanh.pop %v573
    %576 = vrot.lane.b32.xlu0 %v574, 64
    %v577 = vpop.permute.xlu0 %576
    %v579 = vmul.f32 %v562, %v577
    %580 = vmatprep.subr.mxu0 0.0
    %581 = vmatpush1.msra.mxu0 0.0
    %582 = vmatprep.subr.mxu0 0.0
    %583 = vmatpush1.msra.mxu0 0.0
    %584 = vmatprep.subr.mxu0 0.0
    %585 = vmatpush1.msra.mxu0 0.0
    %586 = vmatprep.subr.mxu0 0.0
    %587 = vmatpush1.msra.mxu0 0.0
    %588 = vmatprep.subr.mxu0 0.0
    %589 = vmatpush1.msra.mxu0 0.0
    %590 = vmatprep.subr.mxu0 0.0
    %591 = vmatpush1.msra.mxu0 0.0
    %592 = vmatprep.subr.mxu0 0.0
    %593 = vmatpush1.msra.mxu0 0.0
    %594 = vmatprep.subr.mxu0 0.0
    %595 = vmatpush1.msra.mxu0 0.0
    %596 = vmatprep.subr.mxu0 0.0
    %597 = vmatpush1.msra.mxu0 0.0
    %598 = vmatprep.subr.mxu0 0.0
    %599 = vmatpush1.msra.mxu0 0.0
    %600 = vmatprep.subr.mxu0 0.0
    %601 = vmatpush1.msra.mxu0 0.0
    %602 = vmatprep.subr.mxu0 0.0
    %603 = vmatpush1.msra.mxu0 0.0
    %604 = vmatprep.subr.mxu0 0.0
    %605 = vmatpush1.msra.mxu0 %v51
    %606 = vmatprep.subr.mxu0 0.0
    %607 = vmatpush1.msra.mxu0 %v50
    %608 = vmatprep.subr.mxu0 0.0
    %609 = vmatpush1.msra.mxu0 %v49
    %610 = vmatprep.subr.mxu0 0.0
    %611 = vmatpush1.msra.mxu0 %v48
    %612 = vmatprep.subr.mxu0 0.0
    %613 = vmatpush2.msra.mxu0 0.0
    %614 = vmatprep.subr.mxu0 0.0
    %615 = vmatpush2.msra.mxu0 0.0
    %616 = vmatprep.subr.mxu0 0.0
    %617 = vmatpush2.msra.mxu0 0.0
    %618 = vmatprep.subr.mxu0 0.0
    %619 = vmatpush2.msra.mxu0 0.0
    %620 = vmatprep.subr.mxu0 0.0
    %621 = vmatpush2.msra.mxu0 0.0
    %622 = vmatprep.subr.mxu0 0.0
    %623 = vmatpush2.msra.mxu0 0.0
    %624 = vmatprep.subr.mxu0 0.0
    %625 = vmatpush2.msra.mxu0 0.0
    %626 = vmatprep.subr.mxu0 0.0
    %627 = vmatpush2.msra.mxu0 0.0
    %628 = vmatprep.subr.mxu0 0.0
    %629 = vmatpush2.msra.mxu0 0.0
    %630 = vmatprep.subr.mxu0 0.0
    %631 = vmatpush2.msra.mxu0 0.0
    %632 = vmatprep.subr.mxu0 0.0
    %633 = vmatpush2.msra.mxu0 0.0
    %634 = vmatprep.subr.mxu0 0.0
    %635 = vmatpush2.msra.mxu0 0.0
    %636 = vmatprep.subr.mxu0 0.0
    %637 = vmatpush2.msra.mxu0 0.0
    %638 = vmatprep.subr.mxu0 0.0
    %639 = vmatpush2.msra.mxu0 0.0
    %640 = vmatprep.subr.mxu0 0.0
    %641 = vmatpush2.msra.mxu0 0.0
    %642 = vmatprep.subr.mxu0 0.0
    %643 = vmatpush2.msra.mxu0 0.0
    %644 = vmatprep.mubr.f32.mxu0 0.0
    %645 = vmatmul.mubr.f32.gmra.mxu0 %v487
    %v646 = vpop.f32.mrf.mxu0
    %v647 = vadd.f32 0.0, %v646
    %v648 = vpop.f32.mrf.mxu0
    %649 = vdwg.mxu0
    %651 = vrot.lane.b32.xlu0 %v579, 32
    %v652 = vpop.permute.xlu0 %651
    %v653 = vsel %vm72, %v652, 0
    %655 = vmatprep.subr.mxu0 0.0
    %656 = vmatpush1.msra.mxu0 0.0
    %657 = vmatprep.subr.mxu0 0.0
    %658 = vmatpush1.msra.mxu0 0.0
    %659 = vmatprep.subr.mxu0 0.0
    %660 = vmatpush1.msra.mxu0 0.0
    %661 = vmatprep.subr.mxu0 0.0
    %662 = vmatpush1.msra.mxu0 0.0
    %663 = vmatprep.subr.mxu0 0.0
    %664 = vmatpush1.msra.mxu0 0.0
    %665 = vmatprep.subr.mxu0 0.0
    %666 = vmatpush1.msra.mxu0 0.0
    %667 = vmatprep.subr.mxu0 0.0
    %668 = vmatpush1.msra.mxu0 0.0
    %669 = vmatprep.subr.mxu0 0.0
    %670 = vmatpush1.msra.mxu0 0.0
    %671 = vmatprep.subr.mxu0 0.0
    %672 = vmatpush1.msra.mxu0 0.0
    %673 = vmatprep.subr.mxu0 0.0
    %674 = vmatpush1.msra.mxu0 0.0
    %675 = vmatprep.subr.mxu0 0.0
    %676 = vmatpush1.msra.mxu0 0.0
    %677 = vmatprep.subr.mxu0 0.0
    %678 = vmatpush1.msra.mxu0 0.0
    %679 = vmatprep.subr.mxu0 0.0
    %680 = vmatpush1.msra.mxu0 %v43
    %681 = vmatprep.subr.mxu0 0.0
    %682 = vmatpush1.msra.mxu0 %v42
    %683 = vmatprep.subr.mxu0 0.0
    %684 = vmatpush1.msra.mxu0 %v41
    %685 = vmatprep.subr.mxu0 0.0
    %686 = vmatpush1.msra.mxu0 %v40
    %687 = vmatprep.subr.mxu0 0.0
    %688 = vmatpush2.msra.mxu0 0.0
    %689 = vmatprep.subr.mxu0 0.0
    %690 = vmatpush2.msra.mxu0 0.0
    %691 = vmatprep.subr.mxu0 0.0
    %692 = vmatpush2.msra.mxu0 0.0
    %693 = vmatprep.subr.mxu0 0.0
    %694 = vmatpush2.msra.mxu0 0.0
    %695 = vmatprep.subr.mxu0 0.0
    %696 = vmatpush2.msra.mxu0 0.0
    %697 = vmatprep.subr.mxu0 0.0
    %698 = vmatpush2.msra.mxu0 0.0
    %699 = vmatprep.subr.mxu0 0.0
    %700 = vmatpush2.msra.mxu0 0.0
    %701 = vmatprep.subr.mxu0 0.0
    %702 = vmatpush2.msra.mxu0 0.0
    %703 = vmatprep.subr.mxu0 0.0
    %704 = vmatpush2.msra.mxu0 0.0
    %705 = vmatprep.subr.mxu0 0.0
    %706 = vmatpush2.msra.mxu0 0.0
    %707 = vmatprep.subr.mxu0 0.0
    %708 = vmatpush2.msra.mxu0 0.0
    %709 = vmatprep.subr.mxu0 0.0
    %710 = vmatpush2.msra.mxu0 0.0
    %711 = vmatprep.subr.mxu0 0.0
    %712 = vmatpush2.msra.mxu0 0.0
    %713 = vmatprep.subr.mxu0 0.0
    %714 = vmatpush2.msra.mxu0 0.0
    %715 = vmatprep.subr.mxu0 0.0
    %716 = vmatpush2.msra.mxu0 0.0
    %717 = vmatprep.subr.mxu0 0.0
    %718 = vmatpush2.msra.mxu0 0.0
    %719 = vmatprep.mubr.f32.mxu0 0.0
    %720 = vmatmul.mubr.f32.gmra.mxu0 %v653
    %v721 = vpop.f32.mrf.mxu0
    %v722 = vadd.f32 %v647, %v721
    %v723 = vpop.f32.mrf.mxu0
    %724 = vdwg.mxu0
    %v725 = vadd.f32 %v722, %v64
    %v726 = vtanh.pop %v725
    %v727 = vadd.f32 %v726, 1.0
    %v728 = vmul.f32 %v727, 0.5
    %v729 = vmul.f32 %v728, %v407
    %731 = vrot.lane.b32.xlu0 %v726, 64
    %v732 = vpop.permute.xlu0 %731
    %v734 = vmul.f32 %v728, %v732
    %736 = vrot.lane.b32.xlu0 %v734, 32
    %v737 = vpop.permute.xlu0 %736
    %v739 = vadd.f32 %v729, %v737
    %v740 = vtanh.pop %v739
    %742 = vrot.lane.b32.xlu0 %v740, 64
    %v743 = vpop.permute.xlu0 %742
    %v745 = vmul.f32 %v728, %v743
    %746 = vmatprep.subr.mxu0 0.0
    %747 = vmatpush1.msra.mxu0 0.0
    %748 = vmatprep.subr.mxu0 0.0
    %749 = vmatpush1.msra.mxu0 0.0
    %750 = vmatprep.subr.mxu0 0.0
    %751 = vmatpush1.msra.mxu0 0.0
    %752 = vmatprep.subr.mxu0 0.0
    %753 = vmatpush1.msra.mxu0 0.0
    %754 = vmatprep.subr.mxu0 0.0
    %755 = vmatpush1.msra.mxu0 0.0
    %756 = vmatprep.subr.mxu0 0.0
    %757 = vmatpush1.msra.mxu0 0.0
    %758 = vmatprep.subr.mxu0 0.0
    %759 = vmatpush1.msra.mxu0 0.0
    %760 = vmatprep.subr.mxu0 0.0
    %761 = vmatpush1.msra.mxu0 0.0
    %762 = vmatprep.subr.mxu0 0.0
    %763 = vmatpush1.msra.mxu0 0.0
    %764 = vmatprep.subr.mxu0 0.0
    %765 = vmatpush1.msra.mxu0 0.0
    %766 = vmatprep.subr.mxu0 0.0
    %767 = vmatpush1.msra.mxu0 0.0
    %768 = vmatprep.subr.mxu0 0.0
    %769 = vmatpush1.msra.mxu0 0.0
    %770 = vmatprep.subr.mxu0 0.0
    %771 = vmatpush1.msra.mxu0 %v47
    %772 = vmatprep.subr.mxu0 0.0
    %773 = vmatpush1.msra.mxu0 %v46
    %774 = vmatprep.subr.mxu0 0.0
    %775 = vmatpush1.msra.mxu0 %v45
    %776 = vmatprep.subr.mxu0 0.0
    %777 = vmatpush1.msra.mxu0 %v44
    %778 = vmatprep.subr.mxu0 0.0
    %779 = vmatpush2.msra.mxu0 0.0
    %780 = vmatprep.subr.mxu0 0.0
    %781 = vmatpush2.msra.mxu0 0.0
    %782 = vmatprep.subr.mxu0 0.0
    %783 = vmatpush2.msra.mxu0 0.0
    %784 = vmatprep.subr.mxu0 0.0
    %785 = vmatpush2.msra.mxu0 0.0
    %786 = vmatprep.subr.mxu0 0.0
    %787 = vmatpush2.msra.mxu0 0.0
    %788 = vmatprep.subr.mxu0 0.0
    %789 = vmatpush2.msra.mxu0 0.0
    %790 = vmatprep.subr.mxu0 0.0
    %791 = vmatpush2.msra.mxu0 0.0
    %792 = vmatprep.subr.mxu0 0.0
    %793 = vmatpush2.msra.mxu0 0.0
    %794 = vmatprep.subr.mxu0 0.0
    %795 = vmatpush2.msra.mxu0 0.0
    %796 = vmatprep.subr.mxu0 0.0
    %797 = vmatpush2.msra.mxu0 0.0
    %798 = vmatprep.subr.mxu0 0.0
    %799 = vmatpush2.msra.mxu0 0.0
    %800 = vmatprep.subr.mxu0 0.0
    %801 = vmatpush2.msra.mxu0 0.0
    %802 = vmatprep.subr.mxu0 0.0
    %803 = vmatpush2.msra.mxu0 0.0
    %804 = vmatprep.subr.mxu0 0.0
    %805 = vmatpush2.msra.mxu0 0.0
    %806 = vmatprep.subr.mxu0 0.0
    %807 = vmatpush2.msra.mxu0 0.0
    %808 = vmatprep.subr.mxu0 0.0
    %809 = vmatpush2.msra.mxu0 0.0
    %810 = vmatprep.mubr.f32.mxu0 0.0
    %811 = vmatmul.mubr.f32.gmra.mxu0 %v653
    %v812 = vpop.f32.mrf.mxu0
    %v813 = vadd.f32 0.0, %v812
    %v814 = vpop.f32.mrf.mxu0
    %815 = vdwg.mxu0
    %817 = vrot.lane.b32.xlu0 %v745, 32
    %v818 = vpop.permute.xlu0 %817
    %v819 = vsel %vm72, %v818, 0
    %821 = vmatprep.subr.mxu0 0.0
    %822 = vmatpush1.msra.mxu0 0.0
    %823 = vmatprep.subr.mxu0 0.0
    %824 = vmatpush1.msra.mxu0 0.0
    %825 = vmatprep.subr.mxu0 0.0
    %826 = vmatpush1.msra.mxu0 0.0
    %827 = vmatprep.subr.mxu0 0.0
    %828 = vmatpush1.msra.mxu0 0.0
    %829 = vmatprep.subr.mxu0 0.0
    %830 = vmatpush1.msra.mxu0 0.0
    %831 = vmatprep.subr.mxu0 0.0
    %832 = vmatpush1.msra.mxu0 0.0
    %833 = vmatprep.subr.mxu0 0.0
    %834 = vmatpush1.msra.mxu0 0.0
    %835 = vmatprep.subr.mxu0 0.0
    %836 = vmatpush1.msra.mxu0 0.0
    %837 = vmatprep.subr.mxu0 0.0
    %838 = vmatpush1.msra.mxu0 0.0
    %839 = vmatprep.subr.mxu0 0.0
    %840 = vmatpush1.msra.mxu0 0.0
    %841 = vmatprep.subr.mxu0 0.0
    %842 = vmatpush1.msra.mxu0 0.0
    %843 = vmatprep.subr.mxu0 0.0
    %844 = vmatpush1.msra.mxu0 0.0
    %845 = vmatprep.subr.mxu0 0.0
    %846 = vmatpush1.msra.mxu0 %v39
    %847 = vmatprep.subr.mxu0 0.0
    %848 = vmatpush1.msra.mxu0 %v38
    %849 = vmatprep.subr.mxu0 0.0
    %850 = vmatpush1.msra.mxu0 %v37
    %851 = vmatprep.subr.mxu0 0.0
    %852 = vmatpush1.msra.mxu0 %v36
    %853 = vmatprep.subr.mxu0 0.0
    %854 = vmatpush2.msra.mxu0 0.0
    %855 = vmatprep.subr.mxu0 0.0
    %856 = vmatpush2.msra.mxu0 0.0
    %857 = vmatprep.subr.mxu0 0.0
    %858 = vmatpush2.msra.mxu0 0.0
    %859 = vmatprep.subr.mxu0 0.0
    %860 = vmatpush2.msra.mxu0 0.0
    %861 = vmatprep.subr.mxu0 0.0
    %862 = vmatpush2.msra.mxu0 0.0
    %863 = vmatprep.subr.mxu0 0.0
    %864 = vmatpush2.msra.mxu0 0.0
    %865 = vmatprep.subr.mxu0 0.0
    %866 = vmatpush2.msra.mxu0 0.0
    %867 = vmatprep.subr.mxu0 0.0
    %868 = vmatpush2.msra.mxu0 0.0
    %869 = vmatprep.subr.mxu0 0.0
    %870 = vmatpush2.msra.mxu0 0.0
    %871 = vmatprep.subr.mxu0 0.0
    %872 = vmatpush2.msra.mxu0 0.0
    %873 = vmatprep.subr.mxu0 0.0
    %874 = vmatpush2.msra.mxu0 0.0
    %875 = vmatprep.subr.mxu0 0.0
    %876 = vmatpush2.msra.mxu0 0.0
    %877 = vmatprep.subr.mxu0 0.0
    %878 = vmatpush2.msra.mxu0 0.0
    %879 = vmatprep.subr.mxu0 0.0
    %880 = vmatpush2.msra.mxu0 0.0
    %881 = vmatprep.subr.mxu0 0.0
    %882 = vmatpush2.msra.mxu0 0.0
    %883 = vmatprep.subr.mxu0 0.0
    %884 = vmatpush2.msra.mxu0 0.0
    %885 = vmatprep.mubr.f32.mxu0 0.0
    %886 = vmatmul.mubr.f32.gmra.mxu0 %v819
    %v887 = vpop.f32.mrf.mxu0
    %v888 = vadd.f32 %v813, %v887
    %v889 = vpop.f32.mrf.mxu0
    %890 = vdwg.mxu0
    %v891 = vadd.f32 %v888, %v57
    %v892 = vtanh.pop %v891
    %v893 = vadd.f32 %v892, 1.0
    %v894 = vmul.f32 %v893, 0.5
    %v895 = vmul.f32 %v894, %v573
    %897 = vrot.lane.b32.xlu0 %v892, 64
    %v898 = vpop.permute.xlu0 %897
    %v900 = vmul.f32 %v894, %v898
    %902 = vrot.lane.b32.xlu0 %v900, 32
    %v903 = vpop.permute.xlu0 %902
    %v905 = vadd.f32 %v895, %v903
    %v906 = vtanh.pop %v905
    %908 = vrot.lane.b32.xlu0 %v906, 64
    %v909 = vpop.permute.xlu0 %908
    %v911 = vmul.f32 %v894, %v909
    %912 = vmatprep.subr.mxu0 0.0
    %913 = vmatpush1.msra.mxu0 0.0
    %914 = vmatprep.subr.mxu0 0.0
    %915 = vmatpush1.msra.mxu0 0.0
    %916 = vmatprep.subr.mxu0 0.0
    %917 = vmatpush1.msra.mxu0 0.0
    %918 = vmatprep.subr.mxu0 0.0
    %919 = vmatpush1.msra.mxu0 0.0
    %920 = vmatprep.subr.mxu0 0.0
    %921 = vmatpush1.msra.mxu0 0.0
    %922 = vmatprep.subr.mxu0 0.0
    %923 = vmatpush1.msra.mxu0 0.0
    %924 = vmatprep.subr.mxu0 0.0
    %925 = vmatpush1.msra.mxu0 0.0
    %926 = vmatprep.subr.mxu0 0.0
    %927 = vmatpush1.msra.mxu0 0.0
    %928 = vmatprep.subr.mxu0 0.0
    %929 = vmatpush1.msra.mxu0 0.0
    %930 = vmatprep.subr.mxu0 0.0
    %931 = vmatpush1.msra.mxu0 0.0
    %932 = vmatprep.subr.mxu0 0.0
    %933 = vmatpush1.msra.mxu0 0.0
    %934 = vmatprep.subr.mxu0 0.0
    %935 = vmatpush1.msra.mxu0 0.0
    %936 = vmatprep.subr.mxu0 0.0
    %937 = vmatpush1.msra.mxu0 %v51
    %938 = vmatprep.subr.mxu0 0.0
    %939 = vmatpush1.msra.mxu0 %v50
    %940 = vmatprep.subr.mxu0 0.0
    %941 = vmatpush1.msra.mxu0 %v49
    %942 = vmatprep.subr.mxu0 0.0
    %943 = vmatpush1.msra.mxu0 %v48
    %944 = vmatprep.subr.mxu0 0.0
    %945 = vmatpush2.msra.mxu0 0.0
    %946 = vmatprep.subr.mxu0 0.0
    %947 = vmatpush2.msra.mxu0 0.0
    %948 = vmatprep.subr.mxu0 0.0
    %949 = vmatpush2.msra.mxu0 0.0
    %950 = vmatprep.subr.mxu0 0.0
    %951 = vmatpush2.msra.mxu0 0.0
    %952 = vmatprep.subr.mxu0 0.0
    %953 = vmatpush2.msra.mxu0 0.0
    %954 = vmatprep.subr.mxu0 0.0
    %955 = vmatpush2.msra.mxu0 0.0
    %956 = vmatprep.subr.mxu0 0.0
    %957 = vmatpush2.msra.mxu0 0.0
    %958 = vmatprep.subr.mxu0 0.0
    %959 = vmatpush2.msra.mxu0 0.0
    %960 = vmatprep.subr.mxu0 0.0
    %961 = vmatpush2.msra.mxu0 0.0
    %962 = vmatprep.subr.mxu0 0.0
    %963 = vmatpush2.msra.mxu0 0.0
    %964 = vmatprep.subr.mxu0 0.0
    %965 = vmatpush2.msra.mxu0 0.0
    %966 = vmatprep.subr.mxu0 0.0
    %967 = vmatpush2.msra.mxu0 0.0
    %968 = vmatprep.subr.mxu0 0.0
    %969 = vmatpush2.msra.mxu0 0.0
    %970 = vmatprep.subr.mxu0 0.0
    %971 = vmatpush2.msra.mxu0 0.0
    %972 = vmatprep.subr.mxu0 0.0
    %973 = vmatpush2.msra.mxu0 0.0
    %974 = vmatprep.subr.mxu0 0.0
    %975 = vmatpush2.msra.mxu0 0.0
    %976 = vmatprep.mubr.f32.mxu0 0.0
    %977 = vmatmul.mubr.f32.gmra.mxu0 %v819
    %v978 = vpop.f32.mrf.mxu0
    %v979 = vadd.f32 0.0, %v978
    %v980 = vpop.f32.mrf.mxu0
    %981 = vdwg.mxu0
    %983 = vrot.lane.b32.xlu0 %v911, 32
    %v984 = vpop.permute.xlu0 %983
    %v985 = vsel %vm72, %v984, 0
    %987 = vmatprep.subr.mxu0 0.0
    %988 = vmatpush1.msra.mxu0 0.0
    %989 = vmatprep.subr.mxu0 0.0
    %990 = vmatpush1.msra.mxu0 0.0
    %991 = vmatprep.subr.mxu0 0.0
    %992 = vmatpush1.msra.mxu0 0.0
    %993 = vmatprep.subr.mxu0 0.0
    %994 = vmatpush1.msra.mxu0 0.0
    %995 = vmatprep.subr.mxu0 0.0
    %996 = vmatpush1.msra.mxu0 0.0
    %997 = vmatprep.subr.mxu0 0.0
    %998 = vmatpush1.msra.mxu0 0.0
    %999 = vmatprep.subr.mxu0 0.0
    %1000 = vmatpush1.msra.mxu0 0.0
    %1001 = vmatprep.subr.mxu0 0.0
    %1002 = vmatpush1.msra.mxu0 0.0
    %1003 = vmatprep.subr.mxu0 0.0
    %1004 = vmatpush1.msra.mxu0 0.0
    %1005 = vmatprep.subr.mxu0 0.0
    %1006 = vmatpush1.msra.mxu0 0.0
    %1007 = vmatprep.subr.mxu0 0.0
    %1008 = vmatpush1.msra.mxu0 0.0
    %1009 = vmatprep.subr.mxu0 0.0
    %1010 = vmatpush1.msra.mxu0 0.0
    %1011 = vmatprep.subr.mxu0 0.0
    %1012 = vmatpush1.msra.mxu0 %v43
    %1013 = vmatprep.subr.mxu0 0.0
    %1014 = vmatpush1.msra.mxu0 %v42
    %1015 = vmatprep.subr.mxu0 0.0
    %1016 = vmatpush1.msra.mxu0 %v41
    %1017 = vmatprep.subr.mxu0 0.0
    %1018 = vmatpush1.msra.mxu0 %v40
    %1019 = vmatprep.subr.mxu0 0.0
    %1020 = vmatpush2.msra.mxu0 0.0
    %1021 = vmatprep.subr.mxu0 0.0
    %1022 = vmatpush2.msra.mxu0 0.0
    %1023 = vmatprep.subr.mxu0 0.0
    %1024 = vmatpush2.msra.mxu0 0.0
    %1025 = vmatprep.subr.mxu0 0.0
    %1026 = vmatpush2.msra.mxu0 0.0
    %1027 = vmatprep.subr.mxu0 0.0
    %1028 = vmatpush2.msra.mxu0 0.0
    %1029 = vmatprep.subr.mxu0 0.0
    %1030 = vmatpush2.msra.mxu0 0.0
    %1031 = vmatprep.subr.mxu0 0.0
    %1032 = vmatpush2.msra.mxu0 0.0
    %1033 = vmatprep.subr.mxu0 0.0
    %1034 = vmatpush2.msra.mxu0 0.0
    %1035 = vmatprep.subr.mxu0 0.0
    %1036 = vmatpush2.msra.mxu0 0.0
    %1037 = vmatprep.subr.mxu0 0.0
    %1038 = vmatpush2.msra.mxu0 0.0
    %1039 = vmatprep.subr.mxu0 0.0
    %1040 = vmatpush2.msra.mxu0 0.0
    %1041 = vmatprep.subr.mxu0 0.0
    %1042 = vmatpush2.msra.mxu0 0.0
    %1043 = vmatprep.subr.mxu0 0.0
    %1044 = vmatpush2.msra.mxu0 0.0
    %1045 = vmatprep.subr.mxu0 0.0
    %1046 = vmatpush2.msra.mxu0 0.0
    %1047 = vmatprep.subr.mxu0 0.0
    %1048 = vmatpush2.msra.mxu0 0.0
    %1049 = vmatprep.subr.mxu0 0.0
    %1050 = vmatpush2.msra.mxu0 0.0
    %1051 = vmatprep.mubr.f32.mxu0 0.0
    %1052 = vmatmul.mubr.f32.gmra.mxu0 %v985
    %v1053 = vpop.f32.mrf.mxu0
    %v1054 = vadd.f32 %v979, %v1053
    %v1055 = vpop.f32.mrf.mxu0
    %1056 = vdwg.mxu0
    %v1057 = vadd.f32 %v1054, %v64
    %v1058 = vtanh.pop %v1057
    %v1059 = vadd.f32 %v1058, 1.0
    %v1060 = vmul.f32 %v1059, 0.5
    %v1061 = vmul.f32 %v1060, %v739
    %1063 = vrot.lane.b32.xlu0 %v1058, 64
    %v1064 = vpop.permute.xlu0 %1063
    %v1066 = vmul.f32 %v1060, %v1064
    %1068 = vrot.lane.b32.xlu0 %v1066, 32
    %v1069 = vpop.permute.xlu0 %1068
    %v1071 = vadd.f32 %v1061, %v1069
    %v1072 = vtanh.pop %v1071
    %1074 = vrot.lane.b32.xlu0 %v1072, 64
    %v1075 = vpop.permute.xlu0 %1074
    %v1077 = vmul.f32 %v1060, %v1075
    %1078 = vmatprep.subr.mxu0 0.0
    %1079 = vmatpush1.msra.mxu0 0.0
    %1080 = vmatprep.subr.mxu0 0.0
    %1081 = vmatpush1.msra.mxu0 0.0
    %1082 = vmatprep.subr.mxu0 0.0
    %1083 = vmatpush1.msra.mxu0 0.0
    %1084 = vmatprep.subr.mxu0 0.0
    %1085 = vmatpush1.msra.mxu0 0.0
    %1086 = vmatprep.subr.mxu0 0.0
    %1087 = vmatpush1.msra.mxu0 0.0
    %1088 = vmatprep.subr.mxu0 0.0
    %1089 = vmatpush1.msra.mxu0 0.0
    %1090 = vmatprep.subr.mxu0 0.0
    %1091 = vmatpush1.msra.mxu0 0.0
    %1092 = vmatprep.subr.mxu0 0.0
    %1093 = vmatpush1.msra.mxu0 0.0
    %1094 = vmatprep.subr.mxu0 0.0
    %1095 = vmatpush1.msra.mxu0 0.0
    %1096 = vmatprep.subr.mxu0 0.0
    %1097 = vmatpush1.msra.mxu0 0.0
    %1098 = vmatprep.subr.mxu0 0.0
    %1099 = vmatpush1.msra.mxu0 0.0
    %1100 = vmatprep.subr.mxu0 0.0
    %1101 = vmatpush1.msra.mxu0 0.0
    %1102 = vmatprep.subr.mxu0 0.0
    %1103 = vmatpush1.msra.mxu0 %v47
    %1104 = vmatprep.subr.mxu0 0.0
    %1105 = vmatpush1.msra.mxu0 %v46
    %1106 = vmatprep.subr.mxu0 0.0
    %1107 = vmatpush1.msra.mxu0 %v45
    %1108 = vmatprep.subr.mxu0 0.0
    %1109 = vmatpush1.msra.mxu0 %v44
    %1110 = vmatprep.subr.mxu0 0.0
    %1111 = vmatpush2.msra.mxu0 0.0
    %1112 = vmatprep.subr.mxu0 0.0
    %1113 = vmatpush2.msra.mxu0 0.0
    %1114 = vmatprep.subr.mxu0 0.0
    %1115 = vmatpush2.msra.mxu0 0.0
    %1116 = vmatprep.subr.mxu0 0.0
    %1117 = vmatpush2.msra.mxu0 0.0
    %1118 = vmatprep.subr.mxu0 0.0
    %1119 = vmatpush2.msra.mxu0 0.0
    %1120 = vmatprep.subr.mxu0 0.0
    %1121 = vmatpush2.msra.mxu0 0.0
    %1122 = vmatprep.subr.mxu0 0.0
    %1123 = vmatpush2.msra.mxu0 0.0
    %1124 = vmatprep.subr.mxu0 0.0
    %1125 = vmatpush2.msra.mxu0 0.0
    %1126 = vmatprep.subr.mxu0 0.0
    %1127 = vmatpush2.msra.mxu0 0.0
    %1128 = vmatprep.subr.mxu0 0.0
    %1129 = vmatpush2.msra.mxu0 0.0
    %1130 = vmatprep.subr.mxu0 0.0
    %1131 = vmatpush2.msra.mxu0 0.0
    %1132 = vmatprep.subr.mxu0 0.0
    %1133 = vmatpush2.msra.mxu0 0.0
    %1134 = vmatprep.subr.mxu0 0.0
    %1135 = vmatpush2.msra.mxu0 0.0
    %1136 = vmatprep.subr.mxu0 0.0
    %1137 = vmatpush2.msra.mxu0 0.0
    %1138 = vmatprep.subr.mxu0 0.0
    %1139 = vmatpush2.msra.mxu0 0.0
    %1140 = vmatprep.subr.mxu0 0.0
    %1141 = vmatpush2.msra.mxu0 0.0
    %1142 = vmatprep.mubr.f32.mxu0 0.0
    %1143 = vmatmul.mubr.f32.gmra.mxu0 %v985
    %v1144 = vpop.f32.mrf.mxu0
    %v1145 = vadd.f32 0.0, %v1144
    %v1146 = vpop.f32.mrf.mxu0
    %1147 = vdwg.mxu0
    %1149 = vrot.lane.b32.xlu0 %v1077, 32
    %v1150 = vpop.permute.xlu0 %1149
    %v1151 = vsel %vm72, %v1150, 0
    %1153 = vmatprep.subr.mxu0 0.0
    %1154 = vmatpush1.msra.mxu0 0.0
    %1155 = vmatprep.subr.mxu0 0.0
    %1156 = vmatpush1.msra.mxu0 0.0
    %1157 = vmatprep.subr.mxu0 0.0
    %1158 = vmatpush1.msra.mxu0 0.0
    %1159 = vmatprep.subr.mxu0 0.0
    %1160 = vmatpush1.msra.mxu0 0.0
    %1161 = vmatprep.subr.mxu0 0.0
    %1162 = vmatpush1.msra.mxu0 0.0
    %1163 = vmatprep.subr.mxu0 0.0
    %1164 = vmatpush1.msra.mxu0 0.0
    %1165 = vmatprep.subr.mxu0 0.0
    %1166 = vmatpush1.msra.mxu0 0.0
    %1167 = vmatprep.subr.mxu0 0.0
    %1168 = vmatpush1.msra.mxu0 0.0
    %1169 = vmatprep.subr.mxu0 0.0
    %1170 = vmatpush1.msra.mxu0 0.0
    %1171 = vmatprep.subr.mxu0 0.0
    %1172 = vmatpush1.msra.mxu0 0.0
    %1173 = vmatprep.subr.mxu0 0.0
    %1174 = vmatpush1.msra.mxu0 0.0
    %1175 = vmatprep.subr.mxu0 0.0
    %1176 = vmatpush1.msra.mxu0 0.0
    %1177 = vmatprep.subr.mxu0 0.0
    %1178 = vmatpush1.msra.mxu0 %v39
    %1179 = vmatprep.subr.mxu0 0.0
    %1180 = vmatpush1.msra.mxu0 %v38
    %1181 = vmatprep.subr.mxu0 0.0
    %1182 = vmatpush1.msra.mxu0 %v37
    %1183 = vmatprep.subr.mxu0 0.0
    %1184 = vmatpush1.msra.mxu0 %v36
    %1185 = vmatprep.subr.mxu0 0.0
    %1186 = vmatpush2.msra.mxu0 0.0
    %1187 = vmatprep.subr.mxu0 0.0
    %1188 = vmatpush2.msra.mxu0 0.0
    %1189 = vmatprep.subr.mxu0 0.0
    %1190 = vmatpush2.msra.mxu0 0.0
    %1191 = vmatprep.subr.mxu0 0.0
    %1192 = vmatpush2.msra.mxu0 0.0
    %1193 = vmatprep.subr.mxu0 0.0
    %1194 = vmatpush2.msra.mxu0 0.0
    %1195 = vmatprep.subr.mxu0 0.0
    %1196 = vmatpush2.msra.mxu0 0.0
    %1197 = vmatprep.subr.mxu0 0.0
    %1198 = vmatpush2.msra.mxu0 0.0
    %1199 = vmatprep.subr.mxu0 0.0
    %1200 = vmatpush2.msra.mxu0 0.0
    %1201 = vmatprep.subr.mxu0 0.0
    %1202 = vmatpush2.msra.mxu0 0.0
    %1203 = vmatprep.subr.mxu0 0.0
    %1204 = vmatpush2.msra.mxu0 0.0
    %1205 = vmatprep.subr.mxu0 0.0
    %1206 = vmatpush2.msra.mxu0 0.0
    %1207 = vmatprep.subr.mxu0 0.0
    %1208 = vmatpush2.msra.mxu0 0.0
    %1209 = vmatprep.subr.mxu0 0.0
    %1210 = vmatpush2.msra.mxu0 0.0
    %1211 = vmatprep.subr.mxu0 0.0
    %1212 = vmatpush2.msra.mxu0 0.0
    %1213 = vmatprep.subr.mxu0 0.0
    %1214 = vmatpush2.msra.mxu0 0.0
    %1215 = vmatprep.subr.mxu0 0.0
    %1216 = vmatpush2.msra.mxu0 0.0
    %1217 = vmatprep.mubr.f32.mxu0 0.0
    %1218 = vmatmul.mubr.f32.gmra.mxu0 %v1151
    %v1219 = vpop.f32.mrf.mxu0
    %v1220 = vadd.f32 %v1145, %v1219
    %v1221 = vpop.f32.mrf.mxu0
    %1222 = vdwg.mxu0
    %v1223 = vadd.f32 %v1220, %v57
    %v1224 = vtanh.pop %v1223
    %v1225 = vadd.f32 %v1224, 1.0
    %v1226 = vmul.f32 %v1225, 0.5
    %v1227 = vmul.f32 %v1226, %v905
    %1229 = vrot.lane.b32.xlu0 %v1224, 64
    %v1230 = vpop.permute.xlu0 %1229
    %v1232 = vmul.f32 %v1226, %v1230
    %1234 = vrot.lane.b32.xlu0 %v1232, 32
    %v1235 = vpop.permute.xlu0 %1234
    %v1237 = vadd.f32 %v1227, %v1235
    %v1238 = vtanh.pop %v1237
    %1240 = vrot.lane.b32.xlu0 %v1238, 64
    %v1241 = vpop.permute.xlu0 %1240
    %v1243 = vmul.f32 %v1226, %v1241
    %1244 = vmatprep.subr.mxu0 0.0
    %1245 = vmatpush1.msra.mxu0 0.0
    %1246 = vmatprep.subr.mxu0 0.0
    %1247 = vmatpush1.msra.mxu0 0.0
    %1248 = vmatprep.subr.mxu0 0.0
    %1249 = vmatpush1.msra.mxu0 0.0
    %1250 = vmatprep.subr.mxu0 0.0
    %1251 = vmatpush1.msra.mxu0 0.0
    %1252 = vmatprep.subr.mxu0 0.0
    %1253 = vmatpush1.msra.mxu0 0.0
    %1254 = vmatprep.subr.mxu0 0.0
    %1255 = vmatpush1.msra.mxu0 0.0
    %1256 = vmatprep.subr.mxu0 0.0
    %1257 = vmatpush1.msra.mxu0 0.0
    %1258 = vmatprep.subr.mxu0 0.0
    %1259 = vmatpush1.msra.mxu0 0.0
    %1260 = vmatprep.subr.mxu0 0.0
    %1261 = vmatpush1.msra.mxu0 0.0
    %1262 = vmatprep.subr.mxu0 0.0
    %1263 = vmatpush1.msra.mxu0 0.0
    %1264 = vmatprep.subr.mxu0 0.0
    %1265 = vmatpush1.msra.mxu0 0.0
    %1266 = vmatprep.subr.mxu0 0.0
    %1267 = vmatpush1.msra.mxu0 0.0
    %1268 = vmatprep.subr.mxu0 0.0
    %1269 = vmatpush1.msra.mxu0 %v51
    %1270 = vmatprep.subr.mxu0 0.0
    %1271 = vmatpush1.msra.mxu0 %v50
    %1272 = vmatprep.subr.mxu0 0.0
    %1273 = vmatpush1.msra.mxu0 %v49
    %1274 = vmatprep.subr.mxu0 0.0
    %1275 = vmatpush1.msra.mxu0 %v48
    %1276 = vmatprep.subr.mxu0 0.0
    %1277 = vmatpush2.msra.mxu0 0.0
    %1278 = vmatprep.subr.mxu0 0.0
    %1279 = vmatpush2.msra.mxu0 0.0
    %1280 = vmatprep.subr.mxu0 0.0
    %1281 = vmatpush2.msra.mxu0 0.0
    %1282 = vmatprep.subr.mxu0 0.0
    %1283 = vmatpush2.msra.mxu0 0.0
    %1284 = vmatprep.subr.mxu0 0.0
    %1285 = vmatpush2.msra.mxu0 0.0
    %1286 = vmatprep.subr.mxu0 0.0
    %1287 = vmatpush2.msra.mxu0 0.0
    %1288 = vmatprep.subr.mxu0 0.0
    %1289 = vmatpush2.msra.mxu0 0.0
    %1290 = vmatprep.subr.mxu0 0.0
    %1291 = vmatpush2.msra.mxu0 0.0
    %1292 = vmatprep.subr.mxu0 0.0
    %1293 = vmatpush2.msra.mxu0 0.0
    %1294 = vmatprep.subr.mxu0 0.0
    %1295 = vmatpush2.msra.mxu0 0.0
    %1296 = vmatprep.subr.mxu0 0.0
    %1297 = vmatpush2.msra.mxu0 0.0
    %1298 = vmatprep.subr.mxu0 0.0
    %1299 = vmatpush2.msra.mxu0 0.0
    %1300 = vmatprep.subr.mxu0 0.0
    %1301 = vmatpush2.msra.mxu0 0.0
    %1302 = vmatprep.subr.mxu0 0.0
    %1303 = vmatpush2.msra.mxu0 0.0
    %1304 = vmatprep.subr.mxu0 0.0
    %1305 = vmatpush2.msra.mxu0 0.0
    %1306 = vmatprep.subr.mxu0 0.0
    %1307 = vmatpush2.msra.mxu0 0.0
    %1308 = vmatprep.mubr.f32.mxu0 0.0
    %1309 = vmatmul.mubr.f32.gmra.mxu0 %v1151
    %v1310 = vpop.f32.mrf.mxu0
    %v1311 = vadd.f32 0.0, %v1310
    %v1312 = vpop.f32.mrf.mxu0
    %1313 = vdwg.mxu0
    %1315 = vrot.lane.b32.xlu0 %v1243, 32
    %v1316 = vpop.permute.xlu0 %1315
    %v1317 = vsel %vm72, %v1316, 0
    %1319 = vmatprep.subr.mxu0 0.0
    %1320 = vmatpush1.msra.mxu0 0.0
    %1321 = vmatprep.subr.mxu0 0.0
    %1322 = vmatpush1.msra.mxu0 0.0
    %1323 = vmatprep.subr.mxu0 0.0
    %1324 = vmatpush1.msra.mxu0 0.0
    %1325 = vmatprep.subr.mxu0 0.0
    %1326 = vmatpush1.msra.mxu0 0.0
    %1327 = vmatprep.subr.mxu0 0.0
    %1328 = vmatpush1.msra.mxu0 0.0
    %1329 = vmatprep.subr.mxu0 0.0
    %1330 = vmatpush1.msra.mxu0 0.0
    %1331 = vmatprep.subr.mxu0 0.0
    %1332 = vmatpush1.msra.mxu0 0.0
    %1333 = vmatprep.subr.mxu0 0.0
    %1334 = vmatpush1.msra.mxu0 0.0
    %1335 = vmatprep.subr.mxu0 0.0
    %1336 = vmatpush1.msra.mxu0 0.0
    %1337 = vmatprep.subr.mxu0 0.0
    %1338 = vmatpush1.msra.mxu0 0.0
    %1339 = vmatprep.subr.mxu0 0.0
    %1340 = vmatpush1.msra.mxu0 0.0
    %1341 = vmatprep.subr.mxu0 0.0
    %1342 = vmatpush1.msra.mxu0 0.0
    %1343 = vmatprep.subr.mxu0 0.0
    %1344 = vmatpush1.msra.mxu0 %v43
    %1345 = vmatprep.subr.mxu0 0.0
    %1346 = vmatpush1.msra.mxu0 %v42
    %1347 = vmatprep.subr.mxu0 0.0
    %1348 = vmatpush1.msra.mxu0 %v41
    %1349 = vmatprep.subr.mxu0 0.0
    %1350 = vmatpush1.msra.mxu0 %v40
    %1351 = vmatprep.subr.mxu0 0.0
    %1352 = vmatpush2.msra.mxu0 0.0
    %1353 = vmatprep.subr.mxu0 0.0
    %1354 = vmatpush2.msra.mxu0 0.0
    %1355 = vmatprep.subr.mxu0 0.0
    %1356 = vmatpush2.msra.mxu0 0.0
    %1357 = vmatprep.subr.mxu0 0.0
    %1358 = vmatpush2.msra.mxu0 0.0
    %1359 = vmatprep.subr.mxu0 0.0
    %1360 = vmatpush2.msra.mxu0 0.0
    %1361 = vmatprep.subr.mxu0 0.0
    %1362 = vmatpush2.msra.mxu0 0.0
    %1363 = vmatprep.subr.mxu0 0.0
    %1364 = vmatpush2.msra.mxu0 0.0
    %1365 = vmatprep.subr.mxu0 0.0
    %1366 = vmatpush2.msra.mxu0 0.0
    %1367 = vmatprep.subr.mxu0 0.0
    %1368 = vmatpush2.msra.mxu0 0.0
    %1369 = vmatprep.subr.mxu0 0.0
    %1370 = vmatpush2.msra.mxu0 0.0
    %1371 = vmatprep.subr.mxu0 0.0
    %1372 = vmatpush2.msra.mxu0 0.0
    %1373 = vmatprep.subr.mxu0 0.0
    %1374 = vmatpush2.msra.mxu0 0.0
    %1375 = vmatprep.subr.mxu0 0.0
    %1376 = vmatpush2.msra.mxu0 0.0
    %1377 = vmatprep.subr.mxu0 0.0
    %1378 = vmatpush2.msra.mxu0 0.0
    %1379 = vmatprep.subr.mxu0 0.0
    %1380 = vmatpush2.msra.mxu0 0.0
    %1381 = vmatprep.subr.mxu0 0.0
    %1382 = vmatpush2.msra.mxu0 0.0
    %1383 = vmatprep.mubr.f32.mxu0 0.0
    %1384 = vmatmul.mubr.f32.gmra.mxu0 %v1317
    %v1385 = vpop.f32.mrf.mxu0
    %v1386 = vadd.f32 %v1311, %v1385
    %v1387 = vpop.f32.mrf.mxu0
    %1388 = vdwg.mxu0
    %v1389 = vadd.f32 %v1386, %v64
    %v1390 = vtanh.pop %v1389
    %v1391 = vadd.f32 %v1390, 1.0
    %v1392 = vmul.f32 %v1391, 0.5
    %v1393 = vmul.f32 %v1392, %v1071
    %1395 = vrot.lane.b32.xlu0 %v1390, 64
    %v1396 = vpop.permute.xlu0 %1395
    %v1398 = vmul.f32 %v1392, %v1396
    %1400 = vrot.lane.b32.xlu0 %v1398, 32
    %v1401 = vpop.permute.xlu0 %1400
    %v1403 = vadd.f32 %v1393, %v1401
    %v1404 = vtanh.pop %v1403
    %1406 = vrot.lane.b32.xlu0 %v1404, 64
    %v1407 = vpop.permute.xlu0 %1406
    %v1409 = vmul.f32 %v1392, %v1407
    %1410 = vmatprep.subr.mxu0 0.0
    %1411 = vmatpush1.msra.mxu0 0.0
    %1412 = vmatprep.subr.mxu0 0.0
    %1413 = vmatpush1.msra.mxu0 0.0
    %1414 = vmatprep.subr.mxu0 0.0
    %1415 = vmatpush1.msra.mxu0 0.0
    %1416 = vmatprep.subr.mxu0 0.0
    %1417 = vmatpush1.msra.mxu0 0.0
    %1418 = vmatprep.subr.mxu0 0.0
    %1419 = vmatpush1.msra.mxu0 0.0
    %1420 = vmatprep.subr.mxu0 0.0
    %1421 = vmatpush1.msra.mxu0 0.0
    %1422 = vmatprep.subr.mxu0 0.0
    %1423 = vmatpush1.msra.mxu0 0.0
    %1424 = vmatprep.subr.mxu0 0.0
    %1425 = vmatpush1.msra.mxu0 0.0
    %1426 = vmatprep.subr.mxu0 0.0
    %1427 = vmatpush1.msra.mxu0 0.0
    %1428 = vmatprep.subr.mxu0 0.0
    %1429 = vmatpush1.msra.mxu0 0.0
    %1430 = vmatprep.subr.mxu0 0.0
    %1431 = vmatpush1.msra.mxu0 0.0
    %1432 = vmatprep.subr.mxu0 0.0
    %1433 = vmatpush1.msra.mxu0 0.0
    %1434 = vmatprep.subr.mxu0 0.0
    %1435 = vmatpush1.msra.mxu0 %v47
    %1436 = vmatprep.subr.mxu0 0.0
    %1437 = vmatpush1.msra.mxu0 %v46
    %1438 = vmatprep.subr.mxu0 0.0
    %1439 = vmatpush1.msra.mxu0 %v45
    %1440 = vmatprep.subr.mxu0 0.0
    %1441 = vmatpush1.msra.mxu0 %v44
    %1442 = vmatprep.subr.mxu0 0.0
    %1443 = vmatpush2.msra.mxu0 0.0
    %1444 = vmatprep.subr.mxu0 0.0
    %1445 = vmatpush2.msra.mxu0 0.0
    %1446 = vmatprep.subr.mxu0 0.0
    %1447 = vmatpush2.msra.mxu0 0.0
    %1448 = vmatprep.subr.mxu0 0.0
    %1449 = vmatpush2.msra.mxu0 0.0
    %1450 = vmatprep.subr.mxu0 0.0
    %1451 = vmatpush2.msra.mxu0 0.0
    %1452 = vmatprep.subr.mxu0 0.0
    %1453 = vmatpush2.msra.mxu0 0.0
    %1454 = vmatprep.subr.mxu0 0.0
    %1455 = vmatpush2.msra.mxu0 0.0
    %1456 = vmatprep.subr.mxu0 0.0
    %1457 = vmatpush2.msra.mxu0 0.0
    %1458 = vmatprep.subr.mxu0 0.0
    %1459 = vmatpush2.msra.mxu0 0.0
    %1460 = vmatprep.subr.mxu0 0.0
    %1461 = vmatpush2.msra.mxu0 0.0
    %1462 = vmatprep.subr.mxu0 0.0
    %1463 = vmatpush2.msra.mxu0 0.0
    %1464 = vmatprep.subr.mxu0 0.0
    %1465 = vmatpush2.msra.mxu0 0.0
    %1466 = vmatprep.subr.mxu0 0.0
    %1467 = vmatpush2.msra.mxu0 0.0
    %1468 = vmatprep.subr.mxu0 0.0
    %1469 = vmatpush2.msra.mxu0 0.0
    %1470 = vmatprep.subr.mxu0 0.0
    %1471 = vmatpush2.msra.mxu0 0.0
    %1472 = vmatprep.subr.mxu0 0.0
    %1473 = vmatpush2.msra.mxu0 0.0
    %1474 = vmatprep.mubr.f32.mxu0 0.0
    %1475 = vmatmul.mubr.f32.gmra.mxu0 %v1317
    %v1476 = vpop.f32.mrf.mxu0
    %v1477 = vadd.f32 0.0, %v1476
    %v1478 = vpop.f32.mrf.mxu0
    %1479 = vdwg.mxu0
    %1481 = vrot.lane.b32.xlu0 %v1409, 32
    %v1482 = vpop.permute.xlu0 %1481
    %v1483 = vsel %vm72, %v1482, 0
    %1485 = vmatprep.subr.mxu0 0.0
    %1486 = vmatpush1.msra.mxu0 0.0
    %1487 = vmatprep.subr.mxu0 0.0
    %1488 = vmatpush1.msra.mxu0 0.0
    %1489 = vmatprep.subr.mxu0 0.0
    %1490 = vmatpush1.msra.mxu0 0.0
    %1491 = vmatprep.subr.mxu0 0.0
    %1492 = vmatpush1.msra.mxu0 0.0
    %1493 = vmatprep.subr.mxu0 0.0
    %1494 = vmatpush1.msra.mxu0 0.0
    %1495 = vmatprep.subr.mxu0 0.0
    %1496 = vmatpush1.msra.mxu0 0.0
    %1497 = vmatprep.subr.mxu0 0.0
    %1498 = vmatpush1.msra.mxu0 0.0
    %1499 = vmatprep.subr.mxu0 0.0
    %1500 = vmatpush1.msra.mxu0 0.0
    %1501 = vmatprep.subr.mxu0 0.0
    %1502 = vmatpush1.msra.mxu0 0.0
    %1503 = vmatprep.subr.mxu0 0.0
    %1504 = vmatpush1.msra.mxu0 0.0
    %1505 = vmatprep.subr.mxu0 0.0
    %1506 = vmatpush1.msra.mxu0 0.0
    %1507 = vmatprep.subr.mxu0 0.0
    %1508 = vmatpush1.msra.mxu0 0.0
    %1509 = vmatprep.subr.mxu0 0.0
    %1510 = vmatpush1.msra.mxu0 %v39
    %1511 = vmatprep.subr.mxu0 0.0
    %1512 = vmatpush1.msra.mxu0 %v38
    %1513 = vmatprep.subr.mxu0 0.0
    %1514 = vmatpush1.msra.mxu0 %v37
    %1515 = vmatprep.subr.mxu0 0.0
    %1516 = vmatpush1.msra.mxu0 %v36
    %1517 = vmatprep.subr.mxu0 0.0
    %1518 = vmatpush2.msra.mxu0 0.0
    %1519 = vmatprep.subr.mxu0 0.0
    %1520 = vmatpush2.msra.mxu0 0.0
    %1521 = vmatprep.subr.mxu0 0.0
    %1522 = vmatpush2.msra.mxu0 0.0
    %1523 = vmatprep.subr.mxu0 0.0
    %1524 = vmatpush2.msra.mxu0 0.0
    %1525 = vmatprep.subr.mxu0 0.0
    %1526 = vmatpush2.msra.mxu0 0.0
    %1527 = vmatprep.subr.mxu0 0.0
    %1528 = vmatpush2.msra.mxu0 0.0
    %1529 = vmatprep.subr.mxu0 0.0
    %1530 = vmatpush2.msra.mxu0 0.0
    %1531 = vmatprep.subr.mxu0 0.0
    %1532 = vmatpush2.msra.mxu0 0.0
    %1533 = vmatprep.subr.mxu0 0.0
    %1534 = vmatpush2.msra.mxu0 0.0
    %1535 = vmatprep.subr.mxu0 0.0
    %1536 = vmatpush2.msra.mxu0 0.0
    %1537 = vmatprep.subr.mxu0 0.0
    %1538 = vmatpush2.msra.mxu0 0.0
    %1539 = vmatprep.subr.mxu0 0.0
    %1540 = vmatpush2.msra.mxu0 0.0
    %1541 = vmatprep.subr.mxu0 0.0
    %1542 = vmatpush2.msra.mxu0 0.0
    %1543 = vmatprep.subr.mxu0 0.0
    %1544 = vmatpush2.msra.mxu0 0.0
    %1545 = vmatprep.subr.mxu0 0.0
    %1546 = vmatpush2.msra.mxu0 0.0
    %1547 = vmatprep.subr.mxu0 0.0
    %1548 = vmatpush2.msra.mxu0 0.0
    %1549 = vmatprep.mubr.f32.mxu0 0.0
    %1550 = vmatmul.mubr.f32.gmra.mxu0 %v1483
    %v1551 = vpop.f32.mrf.mxu0
    %v1552 = vadd.f32 %v1477, %v1551
    %v1553 = vpop.f32.mrf.mxu0
    %1554 = vdwg.mxu0
    %v1555 = vadd.f32 %v1552, %v57
    %v1556 = vtanh.pop %v1555
    %v1557 = vadd.f32 %v1556, 1.0
    %v1558 = vmul.f32 %v1557, 0.5
    %v1559 = vmul.f32 %v1558, %v1237
    %1561 = vrot.lane.b32.xlu0 %v1556, 64
    %v1562 = vpop.permute.xlu0 %1561
    %v1564 = vmul.f32 %v1558, %v1562
    %1566 = vrot.lane.b32.xlu0 %v1564, 32
    %v1567 = vpop.permute.xlu0 %1566
    %v1569 = vadd.f32 %v1559, %v1567
    %v1570 = vtanh.pop %v1569
    %1572 = vrot.lane.b32.xlu0 %v1570, 64
    %v1573 = vpop.permute.xlu0 %1572
    %v1575 = vmul.f32 %v1558, %v1573
    %1576 = vmatprep.subr.mxu0 0.0
    %1577 = vmatpush1.msra.mxu0 0.0
    %1578 = vmatprep.subr.mxu0 0.0
    %1579 = vmatpush1.msra.mxu0 0.0
    %1580 = vmatprep.subr.mxu0 0.0
    %1581 = vmatpush1.msra.mxu0 0.0
    %1582 = vmatprep.subr.mxu0 0.0
    %1583 = vmatpush1.msra.mxu0 0.0
    %1584 = vmatprep.subr.mxu0 0.0
    %1585 = vmatpush1.msra.mxu0 0.0
    %1586 = vmatprep.subr.mxu0 0.0
    %1587 = vmatpush1.msra.mxu0 0.0
    %1588 = vmatprep.subr.mxu0 0.0
    %1589 = vmatpush1.msra.mxu0 0.0
    %1590 = vmatprep.subr.mxu0 0.0
    %1591 = vmatpush1.msra.mxu0 0.0
    %1592 = vmatprep.subr.mxu0 0.0
    %1593 = vmatpush1.msra.mxu0 0.0
    %1594 = vmatprep.subr.mxu0 0.0
    %1595 = vmatpush1.msra.mxu0 0.0
    %1596 = vmatprep.subr.mxu0 0.0
    %1597 = vmatpush1.msra.mxu0 0.0
    %1598 = vmatprep.subr.mxu0 0.0
    %1599 = vmatpush1.msra.mxu0 0.0
    %1600 = vmatprep.subr.mxu0 0.0
    %1601 = vmatpush1.msra.mxu0 %v51
    %1602 = vmatprep.subr.mxu0 0.0
    %1603 = vmatpush1.msra.mxu0 %v50
    %1604 = vmatprep.subr.mxu0 0.0
    %1605 = vmatpush1.msra.mxu0 %v49
    %1606 = vmatprep.subr.mxu0 0.0
    %1607 = vmatpush1.msra.mxu0 %v48
    %1608 = vmatprep.subr.mxu0 0.0
    %1609 = vmatpush2.msra.mxu0 0.0
    %1610 = vmatprep.subr.mxu0 0.0
    %1611 = vmatpush2.msra.mxu0 0.0
    %1612 = vmatprep.subr.mxu0 0.0
    %1613 = vmatpush2.msra.mxu0 0.0
    %1614 = vmatprep.subr.mxu0 0.0
    %1615 = vmatpush2.msra.mxu0 0.0
    %1616 = vmatprep.subr.mxu0 0.0
    %1617 = vmatpush2.msra.mxu0 0.0
    %1618 = vmatprep.subr.mxu0 0.0
    %1619 = vmatpush2.msra.mxu0 0.0
    %1620 = vmatprep.subr.mxu0 0.0
    %1621 = vmatpush2.msra.mxu0 0.0
    %1622 = vmatprep.subr.mxu0 0.0
    %1623 = vmatpush2.msra.mxu0 0.0
    %1624 = vmatprep.subr.mxu0 0.0
    %1625 = vmatpush2.msra.mxu0 0.0
    %1626 = vmatprep.subr.mxu0 0.0
    %1627 = vmatpush2.msra.mxu0 0.0
    %1628 = vmatprep.subr.mxu0 0.0
    %1629 = vmatpush2.msra.mxu0 0.0
    %1630 = vmatprep.subr.mxu0 0.0
    %1631 = vmatpush2.msra.mxu0 0.0
    %1632 = vmatprep.subr.mxu0 0.0
    %1633 = vmatpush2.msra.mxu0 0.0
    %1634 = vmatprep.subr.mxu0 0.0
    %1635 = vmatpush2.msra.mxu0 0.0
    %1636 = vmatprep.subr.mxu0 0.0
    %1637 = vmatpush2.msra.mxu0 0.0
    %1638 = vmatprep.subr.mxu0 0.0
    %1639 = vmatpush2.msra.mxu0 0.0
    %1640 = vmatprep.mubr.f32.mxu0 0.0
    %1641 = vmatmul.mubr.f32.gmra.mxu0 %v1483
    %v1642 = vpop.f32.mrf.mxu0
    %v1643 = vadd.f32 0.0, %v1642
    %v1644 = vpop.f32.mrf.mxu0
    %1645 = vdwg.mxu0
    %1647 = vrot.lane.b32.xlu0 %v1575, 32
    %v1648 = vpop.permute.xlu0 %1647
    %v1649 = vsel %vm72, %v1648, 0
    %1651 = vmatprep.subr.mxu0 0.0
    %1652 = vmatpush1.msra.mxu0 0.0
    %1653 = vmatprep.subr.mxu0 0.0
    %1654 = vmatpush1.msra.mxu0 0.0
    %1655 = vmatprep.subr.mxu0 0.0
    %1656 = vmatpush1.msra.mxu0 0.0
    %1657 = vmatprep.subr.mxu0 0.0
    %1658 = vmatpush1.msra.mxu0 0.0
    %1659 = vmatprep.subr.mxu0 0.0
    %1660 = vmatpush1.msra.mxu0 0.0
    %1661 = vmatprep.subr.mxu0 0.0
    %1662 = vmatpush1.msra.mxu0 0.0
    %1663 = vmatprep.subr.mxu0 0.0
    %1664 = vmatpush1.msra.mxu0 0.0
    %1665 = vmatprep.subr.mxu0 0.0
    %1666 = vmatpush1.msra.mxu0 0.0
    %1667 = vmatprep.subr.mxu0 0.0
    %1668 = vmatpush1.msra.mxu0 0.0
    %1669 = vmatprep.subr.mxu0 0.0
    %1670 = vmatpush1.msra.mxu0 0.0
    %1671 = vmatprep.subr.mxu0 0.0
    %1672 = vmatpush1.msra.mxu0 0.0
    %1673 = vmatprep.subr.mxu0 0.0
    %1674 = vmatpush1.msra.mxu0 0.0
    %1675 = vmatprep.subr.mxu0 0.0
    %1676 = vmatpush1.msra.mxu0 %v43
    %1677 = vmatprep.subr.mxu0 0.0
    %1678 = vmatpush1.msra.mxu0 %v42
    %1679 = vmatprep.subr.mxu0 0.0
    %1680 = vmatpush1.msra.mxu0 %v41
    %1681 = vmatprep.subr.mxu0 0.0
    %1682 = vmatpush1.msra.mxu0 %v40
    %1683 = vmatprep.subr.mxu0 0.0
    %1684 = vmatpush2.msra.mxu0 0.0
    %1685 = vmatprep.subr.mxu0 0.0
    %1686 = vmatpush2.msra.mxu0 0.0
    %1687 = vmatprep.subr.mxu0 0.0
    %1688 = vmatpush2.msra.mxu0 0.0
    %1689 = vmatprep.subr.mxu0 0.0
    %1690 = vmatpush2.msra.mxu0 0.0
    %1691 = vmatprep.subr.mxu0 0.0
    %1692 = vmatpush2.msra.mxu0 0.0
    %1693 = vmatprep.subr.mxu0 0.0
    %1694 = vmatpush2.msra.mxu0 0.0
    %1695 = vmatprep.subr.mxu0 0.0
    %1696 = vmatpush2.msra.mxu0 0.0
    %1697 = vmatprep.subr.mxu0 0.0
    %1698 = vmatpush2.msra.mxu0 0.0
    %1699 = vmatprep.subr.mxu0 0.0
    %1700 = vmatpush2.msra.mxu0 0.0
    %1701 = vmatprep.subr.mxu0 0.0
    %1702 = vmatpush2.msra.mxu0 0.0
    %1703 = vmatprep.subr.mxu0 0.0
    %1704 = vmatpush2.msra.mxu0 0.0
    %1705 = vmatprep.subr.mxu0 0.0
    %1706 = vmatpush2.msra.mxu0 0.0
    %1707 = vmatprep.subr.mxu0 0.0
    %1708 = vmatpush2.msra.mxu0 0.0
    %1709 = vmatprep.subr.mxu0 0.0
    %1710 = vmatpush2.msra.mxu0 0.0
    %1711 = vmatprep.subr.mxu0 0.0
    %1712 = vmatpush2.msra.mxu0 0.0
    %1713 = vmatprep.subr.mxu0 0.0
    %1714 = vmatpush2.msra.mxu0 0.0
    %1715 = vmatprep.mubr.f32.mxu0 0.0
    %1716 = vmatmul.mubr.f32.gmra.mxu0 %v1649
    %v1717 = vpop.f32.mrf.mxu0
    %v1718 = vadd.f32 %v1643, %v1717
    %v1719 = vpop.f32.mrf.mxu0
    %1720 = vdwg.mxu0
    %v1721 = vadd.f32 %v1718, %v64
    %v1722 = vtanh.pop %v1721
    %v1723 = vadd.f32 %v1722, 1.0
    %v1724 = vmul.f32 %v1723, 0.5
    %v1725 = vmul.f32 %v1724, %v1403
    %1727 = vrot.lane.b32.xlu0 %v1722, 64
    %v1728 = vpop.permute.xlu0 %1727
    %v1730 = vmul.f32 %v1724, %v1728
    %1732 = vrot.lane.b32.xlu0 %v1730, 32
    %v1733 = vpop.permute.xlu0 %1732
    %v1735 = vadd.f32 %v1725, %v1733
    %v1736 = vtanh.pop %v1735
    %1738 = vrot.lane.b32.xlu0 %v1736, 64
    %v1739 = vpop.permute.xlu0 %1738
    %v1741 = vmul.f32 %v1724, %v1739
    %1742 = vmatprep.subr.mxu0 0.0
    %1743 = vmatpush1.msra.mxu0 0.0
    %1744 = vmatprep.subr.mxu0 0.0
    %1745 = vmatpush1.msra.mxu0 0.0
    %1746 = vmatprep.subr.mxu0 0.0
    %1747 = vmatpush1.msra.mxu0 0.0
    %1748 = vmatprep.subr.mxu0 0.0
    %1749 = vmatpush1.msra.mxu0 0.0
    %1750 = vmatprep.subr.mxu0 0.0
    %1751 = vmatpush1.msra.mxu0 0.0
    %1752 = vmatprep.subr.mxu0 0.0
    %1753 = vmatpush1.msra.mxu0 0.0
    %1754 = vmatprep.subr.mxu0 0.0
    %1755 = vmatpush1.msra.mxu0 0.0
    %1756 = vmatprep.subr.mxu0 0.0
    %1757 = vmatpush1.msra.mxu0 0.0
    %1758 = vmatprep.subr.mxu0 0.0
    %1759 = vmatpush1.msra.mxu0 0.0
    %1760 = vmatprep.subr.mxu0 0.0
    %1761 = vmatpush1.msra.mxu0 0.0
    %1762 = vmatprep.subr.mxu0 0.0
    %1763 = vmatpush1.msra.mxu0 0.0
    %1764 = vmatprep.subr.mxu0 0.0
    %1765 = vmatpush1.msra.mxu0 0.0
    %1766 = vmatprep.subr.mxu0 0.0
    %1767 = vmatpush1.msra.mxu0 %v47
    %1768 = vmatprep.subr.mxu0 0.0
    %1769 = vmatpush1.msra.mxu0 %v46
    %1770 = vmatprep.subr.mxu0 0.0
    %1771 = vmatpush1.msra.mxu0 %v45
    %1772 = vmatprep.subr.mxu0 0.0
    %1773 = vmatpush1.msra.mxu0 %v44
    %1774 = vmatprep.subr.mxu0 0.0
    %1775 = vmatpush2.msra.mxu0 0.0
    %1776 = vmatprep.subr.mxu0 0.0
    %1777 = vmatpush2.msra.mxu0 0.0
    %1778 = vmatprep.subr.mxu0 0.0
    %1779 = vmatpush2.msra.mxu0 0.0
    %1780 = vmatprep.subr.mxu0 0.0
    %1781 = vmatpush2.msra.mxu0 0.0
    %1782 = vmatprep.subr.mxu0 0.0
    %1783 = vmatpush2.msra.mxu0 0.0
    %1784 = vmatprep.subr.mxu0 0.0
    %1785 = vmatpush2.msra.mxu0 0.0
    %1786 = vmatprep.subr.mxu0 0.0
    %1787 = vmatpush2.msra.mxu0 0.0
    %1788 = vmatprep.subr.mxu0 0.0
    %1789 = vmatpush2.msra.mxu0 0.0
    %1790 = vmatprep.subr.mxu0 0.0
    %1791 = vmatpush2.msra.mxu0 0.0
    %1792 = vmatprep.subr.mxu0 0.0
    %1793 = vmatpush2.msra.mxu0 0.0
    %1794 = vmatprep.subr.mxu0 0.0
    %1795 = vmatpush2.msra.mxu0 0.0
    %1796 = vmatprep.subr.mxu0 0.0
    %1797 = vmatpush2.msra.mxu0 0.0
    %1798 = vmatprep.subr.mxu0 0.0
    %1799 = vmatpush2.msra.mxu0 0.0
    %1800 = vmatprep.subr.mxu0 0.0
    %1801 = vmatpush2.msra.mxu0 0.0
    %1802 = vmatprep.subr.mxu0 0.0
    %1803 = vmatpush2.msra.mxu0 0.0
    %1804 = vmatprep.subr.mxu0 0.0
    %1805 = vmatpush2.msra.mxu0 0.0
    %1806 = vmatprep.mubr.f32.mxu0 0.0
    %1807 = vmatmul.mubr.f32.gmra.mxu0 %v1649
    %v1808 = vpop.f32.mrf.mxu0
    %v1809 = vadd.f32 0.0, %v1808
    %v1810 = vpop.f32.mrf.mxu0
    %1811 = vdwg.mxu0
    %1813 = vrot.lane.b32.xlu0 %v1741, 32
    %v1814 = vpop.permute.xlu0 %1813
    %v1815 = vsel %vm72, %v1814, 0
    %1817 = vmatprep.subr.mxu0 0.0
    %1818 = vmatpush1.msra.mxu0 0.0
    %1819 = vmatprep.subr.mxu0 0.0
    %1820 = vmatpush1.msra.mxu0 0.0
    %1821 = vmatprep.subr.mxu0 0.0
    %1822 = vmatpush1.msra.mxu0 0.0
    %1823 = vmatprep.subr.mxu0 0.0
    %1824 = vmatpush1.msra.mxu0 0.0
    %1825 = vmatprep.subr.mxu0 0.0
    %1826 = vmatpush1.msra.mxu0 0.0
    %1827 = vmatprep.subr.mxu0 0.0
    %1828 = vmatpush1.msra.mxu0 0.0
    %1829 = vmatprep.subr.mxu0 0.0
    %1830 = vmatpush1.msra.mxu0 0.0
    %1831 = vmatprep.subr.mxu0 0.0
    %1832 = vmatpush1.msra.mxu0 0.0
    %1833 = vmatprep.subr.mxu0 0.0
    %1834 = vmatpush1.msra.mxu0 0.0
    %1835 = vmatprep.subr.mxu0 0.0
    %1836 = vmatpush1.msra.mxu0 0.0
    %1837 = vmatprep.subr.mxu0 0.0
    %1838 = vmatpush1.msra.mxu0 0.0
    %1839 = vmatprep.subr.mxu0 0.0
    %1840 = vmatpush1.msra.mxu0 0.0
    %1841 = vmatprep.subr.mxu0 0.0
    %1842 = vmatpush1.msra.mxu0 %v39
    %1843 = vmatprep.subr.mxu0 0.0
    %1844 = vmatpush1.msra.mxu0 %v38
    %1845 = vmatprep.subr.mxu0 0.0
    %1846 = vmatpush1.msra.mxu0 %v37
    %1847 = vmatprep.subr.mxu0 0.0
    %1848 = vmatpush1.msra.mxu0 %v36
    %1849 = vmatprep.subr.mxu0 0.0
    %1850 = vmatpush2.msra.mxu0 0.0
    %1851 = vmatprep.subr.mxu0 0.0
    %1852 = vmatpush2.msra.mxu0 0.0
    %1853 = vmatprep.subr.mxu0 0.0
    %1854 = vmatpush2.msra.mxu0 0.0
    %1855 = vmatprep.subr.mxu0 0.0
    %1856 = vmatpush2.msra.mxu0 0.0
    %1857 = vmatprep.subr.mxu0 0.0
    %1858 = vmatpush2.msra.mxu0 0.0
    %1859 = vmatprep.subr.mxu0 0.0
    %1860 = vmatpush2.msra.mxu0 0.0
    %1861 = vmatprep.subr.mxu0 0.0
    %1862 = vmatpush2.msra.mxu0 0.0
    %1863 = vmatprep.subr.mxu0 0.0
    %1864 = vmatpush2.msra.mxu0 0.0
    %1865 = vmatprep.subr.mxu0 0.0
    %1866 = vmatpush2.msra.mxu0 0.0
    %1867 = vmatprep.subr.mxu0 0.0
    %1868 = vmatpush2.msra.mxu0 0.0
    %1869 = vmatprep.subr.mxu0 0.0
    %1870 = vmatpush2.msra.mxu0 0.0
    %1871 = vmatprep.subr.mxu0 0.0
    %1872 = vmatpush2.msra.mxu0 0.0
    %1873 = vmatprep.subr.mxu0 0.0
    %1874 = vmatpush2.msra.mxu0 0.0
    %1875 = vmatprep.subr.mxu0 0.0
    %1876 = vmatpush2.msra.mxu0 0.0
    %1877 = vmatprep.subr.mxu0 0.0
    %1878 = vmatpush2.msra.mxu0 0.0
    %1879 = vmatprep.subr.mxu0 0.0
    %1880 = vmatpush2.msra.mxu0 0.0
    %1881 = vmatprep.mubr.f32.mxu0 0.0
    %1882 = vmatmul.mubr.f32.gmra.mxu0 %v1815
    %v1883 = vpop.f32.mrf.mxu0
    %v1884 = vadd.f32 %v1809, %v1883
    %v1885 = vpop.f32.mrf.mxu0
    %1886 = vdwg.mxu0
    %v1887 = vadd.f32 %v1884, %v57
    %v1888 = vtanh.pop %v1887
    %v1889 = vadd.f32 %v1888, 1.0
    %v1890 = vmul.f32 %v1889, 0.5
    %v1891 = vmul.f32 %v1890, %v1569
    %1893 = vrot.lane.b32.xlu0 %v1888, 64
    %v1894 = vpop.permute.xlu0 %1893
    %v1896 = vmul.f32 %v1890, %v1894
    %1898 = vrot.lane.b32.xlu0 %v1896, 32
    %v1899 = vpop.permute.xlu0 %1898
    %v1901 = vadd.f32 %v1891, %v1899
    %v1902 = vtanh.pop %v1901
    %1904 = vrot.lane.b32.xlu0 %v1902, 64
    %v1905 = vpop.permute.xlu0 %1904
    %v1907 = vmul.f32 %v1890, %v1905
    %1908 = vmatprep.subr.mxu0 0.0
    %1909 = vmatpush1.msra.mxu0 0.0
    %1910 = vmatprep.subr.mxu0 0.0
    %1911 = vmatpush1.msra.mxu0 0.0
    %1912 = vmatprep.subr.mxu0 0.0
    %1913 = vmatpush1.msra.mxu0 0.0
    %1914 = vmatprep.subr.mxu0 0.0
    %1915 = vmatpush1.msra.mxu0 0.0
    %1916 = vmatprep.subr.mxu0 0.0
    %1917 = vmatpush1.msra.mxu0 0.0
    %1918 = vmatprep.subr.mxu0 0.0
    %1919 = vmatpush1.msra.mxu0 0.0
    %1920 = vmatprep.subr.mxu0 0.0
    %1921 = vmatpush1.msra.mxu0 0.0
    %1922 = vmatprep.subr.mxu0 0.0
    %1923 = vmatpush1.msra.mxu0 0.0
    %1924 = vmatprep.subr.mxu0 0.0
    %1925 = vmatpush1.msra.mxu0 0.0
    %1926 = vmatprep.subr.mxu0 0.0
    %1927 = vmatpush1.msra.mxu0 0.0
    %1928 = vmatprep.subr.mxu0 0.0
    %1929 = vmatpush1.msra.mxu0 0.0
    %1930 = vmatprep.subr.mxu0 0.0
    %1931 = vmatpush1.msra.mxu0 0.0
    %1932 = vmatprep.subr.mxu0 0.0
    %1933 = vmatpush1.msra.mxu0 %v51
    %1934 = vmatprep.subr.mxu0 0.0
    %1935 = vmatpush1.msra.mxu0 %v50
    %1936 = vmatprep.subr.mxu0 0.0
    %1937 = vmatpush1.msra.mxu0 %v49
    %1938 = vmatprep.subr.mxu0 0.0
    %1939 = vmatpush1.msra.mxu0 %v48
    %1940 = vmatprep.subr.mxu0 0.0
    %1941 = vmatpush2.msra.mxu0 0.0
    %1942 = vmatprep.subr.mxu0 0.0
    %1943 = vmatpush2.msra.mxu0 0.0
    %1944 = vmatprep.subr.mxu0 0.0
    %1945 = vmatpush2.msra.mxu0 0.0
    %1946 = vmatprep.subr.mxu0 0.0
    %1947 = vmatpush2.msra.mxu0 0.0
    %1948 = vmatprep.subr.mxu0 0.0
    %1949 = vmatpush2.msra.mxu0 0.0
    %1950 = vmatprep.subr.mxu0 0.0
    %1951 = vmatpush2.msra.mxu0 0.0
    %1952 = vmatprep.subr.mxu0 0.0
    %1953 = vmatpush2.msra.mxu0 0.0
    %1954 = vmatprep.subr.mxu0 0.0
    %1955 = vmatpush2.msra.mxu0 0.0
    %1956 = vmatprep.subr.mxu0 0.0
    %1957 = vmatpush2.msra.mxu0 0.0
    %1958 = vmatprep.subr.mxu0 0.0
    %1959 = vmatpush2.msra.mxu0 0.0
    %1960 = vmatprep.subr.mxu0 0.0
    %1961 = vmatpush2.msra.mxu0 0.0
    %1962 = vmatprep.subr.mxu0 0.0
    %1963 = vmatpush2.msra.mxu0 0.0
    %1964 = vmatprep.subr.mxu0 0.0
    %1965 = vmatpush2.msra.mxu0 0.0
    %1966 = vmatprep.subr.mxu0 0.0
    %1967 = vmatpush2.msra.mxu0 0.0
    %1968 = vmatprep.subr.mxu0 0.0
    %1969 = vmatpush2.msra.mxu0 0.0
    %1970 = vmatprep.subr.mxu0 0.0
    %1971 = vmatpush2.msra.mxu0 0.0
    %1972 = vmatprep.mubr.f32.mxu0 0.0
    %1973 = vmatmul.mubr.f32.gmra.mxu0 %v1815
    %v1974 = vpop.f32.mrf.mxu0
    %v1975 = vadd.f32 0.0, %v1974
    %v1976 = vpop.f32.mrf.mxu0
    %1977 = vdwg.mxu0
    %1979 = vrot.lane.b32.xlu0 %v1907, 32
    %v1980 = vpop.permute.xlu0 %1979
    %v1981 = vsel %vm72, %v1980, 0
    %1983 = vmatprep.subr.mxu0 0.0
    %1984 = vmatpush1.msra.mxu0 0.0
    %1985 = vmatprep.subr.mxu0 0.0
    %1986 = vmatpush1.msra.mxu0 0.0
    %1987 = vmatprep.subr.mxu0 0.0
    %1988 = vmatpush1.msra.mxu0 0.0
    %1989 = vmatprep.subr.mxu0 0.0
    %1990 = vmatpush1.msra.mxu0 0.0
    %1991 = vmatprep.subr.mxu0 0.0
    %1992 = vmatpush1.msra.mxu0 0.0
    %1993 = vmatprep.subr.mxu0 0.0
    %1994 = vmatpush1.msra.mxu0 0.0
    %1995 = vmatprep.subr.mxu0 0.0
    %1996 = vmatpush1.msra.mxu0 0.0
    %1997 = vmatprep.subr.mxu0 0.0
    %1998 = vmatpush1.msra.mxu0 0.0
    %1999 = vmatprep.subr.mxu0 0.0
    %2000 = vmatpush1.msra.mxu0 0.0
    %2001 = vmatprep.subr.mxu0 0.0
    %2002 = vmatpush1.msra.mxu0 0.0
    %2003 = vmatprep.subr.mxu0 0.0
    %2004 = vmatpush1.msra.mxu0 0.0
    %2005 = vmatprep.subr.mxu0 0.0
    %2006 = vmatpush1.msra.mxu0 0.0
    %2007 = vmatprep.subr.mxu0 0.0
    %2008 = vmatpush1.msra.mxu0 %v43
    %2009 = vmatprep.subr.mxu0 0.0
    %2010 = vmatpush1.msra.mxu0 %v42
    %2011 = vmatprep.subr.mxu0 0.0
    %2012 = vmatpush1.msra.mxu0 %v41
    %2013 = vmatprep.subr.mxu0 0.0
    %2014 = vmatpush1.msra.mxu0 %v40
    %2015 = vmatprep.subr.mxu0 0.0
    %2016 = vmatpush2.msra.mxu0 0.0
    %2017 = vmatprep.subr.mxu0 0.0
    %2018 = vmatpush2.msra.mxu0 0.0
    %2019 = vmatprep.subr.mxu0 0.0
    %2020 = vmatpush2.msra.mxu0 0.0
    %2021 = vmatprep.subr.mxu0 0.0
    %2022 = vmatpush2.msra.mxu0 0.0
    %2023 = vmatprep.subr.mxu0 0.0
    %2024 = vmatpush2.msra.mxu0 0.0
    %2025 = vmatprep.subr.mxu0 0.0
    %2026 = vmatpush2.msra.mxu0 0.0
    %2027 = vmatprep.subr.mxu0 0.0
    %2028 = vmatpush2.msra.mxu0 0.0
    %2029 = vmatprep.subr.mxu0 0.0
    %2030 = vmatpush2.msra.mxu0 0.0
    %2031 = vmatprep.subr.mxu0 0.0
    %2032 = vmatpush2.msra.mxu0 0.0
    %2033 = vmatprep.subr.mxu0 0.0
    %2034 = vmatpush2.msra.mxu0 0.0
    %2035 = vmatprep.subr.mxu0 0.0
    %2036 = vmatpush2.msra.mxu0 0.0
    %2037 = vmatprep.subr.mxu0 0.0
    %2038 = vmatpush2.msra.mxu0 0.0
    %2039 = vmatprep.subr.mxu0 0.0
    %2040 = vmatpush2.msra.mxu0 0.0
    %2041 = vmatprep.subr.mxu0 0.0
    %2042 = vmatpush2.msra.mxu0 0.0
    %2043 = vmatprep.subr.mxu0 0.0
    %2044 = vmatpush2.msra.mxu0 0.0
    %2045 = vmatprep.subr.mxu0 0.0
    %2046 = vmatpush2.msra.mxu0 0.0
    %2047 = vmatprep.mubr.f32.mxu0 0.0
    %2048 = vmatmul.mubr.f32.gmra.mxu0 %v1981
    %v2049 = vpop.f32.mrf.mxu0
    %v2050 = vadd.f32 %v1975, %v2049
    %v2051 = vpop.f32.mrf.mxu0
    %2052 = vdwg.mxu0
    %v2053 = vadd.f32 %v2050, %v64
    %v2054 = vtanh.pop %v2053
    %v2055 = vadd.f32 %v2054, 1.0
    %v2056 = vmul.f32 %v2055, 0.5
    %v2057 = vmul.f32 %v2056, %v1735
    %2059 = vrot.lane.b32.xlu0 %v2054, 64
    %v2060 = vpop.permute.xlu0 %2059
    %v2062 = vmul.f32 %v2056, %v2060
    %2064 = vrot.lane.b32.xlu0 %v2062, 32
    %v2065 = vpop.permute.xlu0 %2064
    %v2067 = vadd.f32 %v2057, %v2065
    %v2068 = vtanh.pop %v2067
    %2070 = vrot.lane.b32.xlu0 %v2068, 64
    %v2071 = vpop.permute.xlu0 %2070
    %v2073 = vmul.f32 %v2056, %v2071
    %2074 = vmatprep.subr.mxu0 0.0
    %2075 = vmatpush1.msra.mxu0 0.0
    %2076 = vmatprep.subr.mxu0 0.0
    %2077 = vmatpush1.msra.mxu0 0.0
    %2078 = vmatprep.subr.mxu0 0.0
    %2079 = vmatpush1.msra.mxu0 0.0
    %2080 = vmatprep.subr.mxu0 0.0
    %2081 = vmatpush1.msra.mxu0 0.0
    %2082 = vmatprep.subr.mxu0 0.0
    %2083 = vmatpush1.msra.mxu0 0.0
    %2084 = vmatprep.subr.mxu0 0.0
    %2085 = vmatpush1.msra.mxu0 0.0
    %2086 = vmatprep.subr.mxu0 0.0
    %2087 = vmatpush1.msra.mxu0 0.0
    %2088 = vmatprep.subr.mxu0 0.0
    %2089 = vmatpush1.msra.mxu0 0.0
    %2090 = vmatprep.subr.mxu0 0.0
    %2091 = vmatpush1.msra.mxu0 0.0
    %2092 = vmatprep.subr.mxu0 0.0
    %2093 = vmatpush1.msra.mxu0 0.0
    %2094 = vmatprep.subr.mxu0 0.0
    %2095 = vmatpush1.msra.mxu0 0.0
    %2096 = vmatprep.subr.mxu0 0.0
    %2097 = vmatpush1.msra.mxu0 0.0
    %2098 = vmatprep.subr.mxu0 0.0
    %2099 = vmatpush1.msra.mxu0 %v47
    %2100 = vmatprep.subr.mxu0 0.0
    %2101 = vmatpush1.msra.mxu0 %v46
    %2102 = vmatprep.subr.mxu0 0.0
    %2103 = vmatpush1.msra.mxu0 %v45
    %2104 = vmatprep.subr.mxu0 0.0
    %2105 = vmatpush1.msra.mxu0 %v44
    %2106 = vmatprep.subr.mxu0 0.0
    %2107 = vmatpush2.msra.mxu0 0.0
    %2108 = vmatprep.subr.mxu0 0.0
    %2109 = vmatpush2.msra.mxu0 0.0
    %2110 = vmatprep.subr.mxu0 0.0
    %2111 = vmatpush2.msra.mxu0 0.0
    %2112 = vmatprep.subr.mxu0 0.0
    %2113 = vmatpush2.msra.mxu0 0.0
    %2114 = vmatprep.subr.mxu0 0.0
    %2115 = vmatpush2.msra.mxu0 0.0
    %2116 = vmatprep.subr.mxu0 0.0
    %2117 = vmatpush2.msra.mxu0 0.0
    %2118 = vmatprep.subr.mxu0 0.0
    %2119 = vmatpush2.msra.mxu0 0.0
    %2120 = vmatprep.subr.mxu0 0.0
    %2121 = vmatpush2.msra.mxu0 0.0
    %2122 = vmatprep.subr.mxu0 0.0
    %2123 = vmatpush2.msra.mxu0 0.0
    %2124 = vmatprep.subr.mxu0 0.0
    %2125 = vmatpush2.msra.mxu0 0.0
    %2126 = vmatprep.subr.mxu0 0.0
    %2127 = vmatpush2.msra.mxu0 0.0
    %2128 = vmatprep.subr.mxu0 0.0
    %2129 = vmatpush2.msra.mxu0 0.0
    %2130 = vmatprep.subr.mxu0 0.0
    %2131 = vmatpush2.msra.mxu0 0.0
    %2132 = vmatprep.subr.mxu0 0.0
    %2133 = vmatpush2.msra.mxu0 0.0
    %2134 = vmatprep.subr.mxu0 0.0
    %2135 = vmatpush2.msra.mxu0 0.0
    %2136 = vmatprep.subr.mxu0 0.0
    %2137 = vmatpush2.msra.mxu0 0.0
    %2138 = vmatprep.mubr.f32.mxu0 0.0
    %2139 = vmatmul.mubr.f32.gmra.mxu0 %v1981
    %v2140 = vpop.f32.mrf.mxu0
    %v2141 = vadd.f32 0.0, %v2140
    %v2142 = vpop.f32.mrf.mxu0
    %2143 = vdwg.mxu0
    %2145 = vrot.lane.b32.xlu0 %v2073, 32
    %v2146 = vpop.permute.xlu0 %2145
    %v2147 = vsel %vm72, %v2146, 0
    %2149 = vmatprep.subr.mxu0 0.0
    %2150 = vmatpush1.msra.mxu0 0.0
    %2151 = vmatprep.subr.mxu0 0.0
    %2152 = vmatpush1.msra.mxu0 0.0
    %2153 = vmatprep.subr.mxu0 0.0
    %2154 = vmatpush1.msra.mxu0 0.0
    %2155 = vmatprep.subr.mxu0 0.0
    %2156 = vmatpush1.msra.mxu0 0.0
    %2157 = vmatprep.subr.mxu0 0.0
    %2158 = vmatpush1.msra.mxu0 0.0
    %2159 = vmatprep.subr.mxu0 0.0
    %2160 = vmatpush1.msra.mxu0 0.0
    %2161 = vmatprep.subr.mxu0 0.0
    %2162 = vmatpush1.msra.mxu0 0.0
    %2163 = vmatprep.subr.mxu0 0.0
    %2164 = vmatpush1.msra.mxu0 0.0
    %2165 = vmatprep.subr.mxu0 0.0
    %2166 = vmatpush1.msra.mxu0 0.0
    %2167 = vmatprep.subr.mxu0 0.0
    %2168 = vmatpush1.msra.mxu0 0.0
    %2169 = vmatprep.subr.mxu0 0.0
    %2170 = vmatpush1.msra.mxu0 0.0
    %2171 = vmatprep.subr.mxu0 0.0
    %2172 = vmatpush1.msra.mxu0 0.0
    %2173 = vmatprep.subr.mxu0 0.0
    %2174 = vmatpush1.msra.mxu0 %v39
    %2175 = vmatprep.subr.mxu0 0.0
    %2176 = vmatpush1.msra.mxu0 %v38
    %2177 = vmatprep.subr.mxu0 0.0
    %2178 = vmatpush1.msra.mxu0 %v37
    %2179 = vmatprep.subr.mxu0 0.0
    %2180 = vmatpush1.msra.mxu0 %v36
    %2181 = vmatprep.subr.mxu0 0.0
    %2182 = vmatpush2.msra.mxu0 0.0
    %2183 = vmatprep.subr.mxu0 0.0
    %2184 = vmatpush2.msra.mxu0 0.0
    %2185 = vmatprep.subr.mxu0 0.0
    %2186 = vmatpush2.msra.mxu0 0.0
    %2187 = vmatprep.subr.mxu0 0.0
    %2188 = vmatpush2.msra.mxu0 0.0
    %2189 = vmatprep.subr.mxu0 0.0
    %2190 = vmatpush2.msra.mxu0 0.0
    %2191 = vmatprep.subr.mxu0 0.0
    %2192 = vmatpush2.msra.mxu0 0.0
    %2193 = vmatprep.subr.mxu0 0.0
    %2194 = vmatpush2.msra.mxu0 0.0
    %2195 = vmatprep.subr.mxu0 0.0
    %2196 = vmatpush2.msra.mxu0 0.0
    %2197 = vmatprep.subr.mxu0 0.0
    %2198 = vmatpush2.msra.mxu0 0.0
    %2199 = vmatprep.subr.mxu0 0.0
    %2200 = vmatpush2.msra.mxu0 0.0
    %2201 = vmatprep.subr.mxu0 0.0
    %2202 = vmatpush2.msra.mxu0 0.0
    %2203 = vmatprep.subr.mxu0 0.0
    %2204 = vmatpush2.msra.mxu0 0.0
    %2205 = vmatprep.subr.mxu0 0.0
    %2206 = vmatpush2.msra.mxu0 0.0
    %2207 = vmatprep.subr.mxu0 0.0
    %2208 = vmatpush2.msra.mxu0 0.0
    %2209 = vmatprep.subr.mxu0 0.0
    %2210 = vmatpush2.msra.mxu0 0.0
    %2211 = vmatprep.subr.mxu0 0.0
    %2212 = vmatpush2.msra.mxu0 0.0
    %2213 = vmatprep.mubr.f32.mxu0 0.0
    %2214 = vmatmul.mubr.f32.gmra.mxu0 %v2147
    %v2215 = vpop.f32.mrf.mxu0
    %v2216 = vadd.f32 %v2141, %v2215
    %v2217 = vpop.f32.mrf.mxu0
    %2218 = vdwg.mxu0
    %v2219 = vadd.f32 %v2216, %v57
    %v2220 = vtanh.pop %v2219
    %v2221 = vadd.f32 %v2220, 1.0
    %v2222 = vmul.f32 %v2221, 0.5
    %v2223 = vmul.f32 %v2222, %v1901
    %2225 = vrot.lane.b32.xlu0 %v2220, 64
    %v2226 = vpop.permute.xlu0 %2225
    %v2228 = vmul.f32 %v2222, %v2226
    %2230 = vrot.lane.b32.xlu0 %v2228, 32
    %v2231 = vpop.permute.xlu0 %2230
    %v2233 = vadd.f32 %v2223, %v2231
    %v2234 = vtanh.pop %v2233
    %2236 = vrot.lane.b32.xlu0 %v2234, 64
    %v2237 = vpop.permute.xlu0 %2236
    %v2239 = vmul.f32 %v2222, %v2237
    %2240 = vmatprep.subr.mxu0 0.0
    %2241 = vmatpush1.msra.mxu0 0.0
    %2242 = vmatprep.subr.mxu0 0.0
    %2243 = vmatpush1.msra.mxu0 0.0
    %2244 = vmatprep.subr.mxu0 0.0
    %2245 = vmatpush1.msra.mxu0 0.0
    %2246 = vmatprep.subr.mxu0 0.0
    %2247 = vmatpush1.msra.mxu0 0.0
    %2248 = vmatprep.subr.mxu0 0.0
    %2249 = vmatpush1.msra.mxu0 0.0
    %2250 = vmatprep.subr.mxu0 0.0
    %2251 = vmatpush1.msra.mxu0 0.0
    %2252 = vmatprep.subr.mxu0 0.0
    %2253 = vmatpush1.msra.mxu0 0.0
    %2254 = vmatprep.subr.mxu0 0.0
    %2255 = vmatpush1.msra.mxu0 0.0
    %2256 = vmatprep.subr.mxu0 0.0
    %2257 = vmatpush1.msra.mxu0 0.0
    %2258 = vmatprep.subr.mxu0 0.0
    %2259 = vmatpush1.msra.mxu0 0.0
    %2260 = vmatprep.subr.mxu0 0.0
    %2261 = vmatpush1.msra.mxu0 0.0
    %2262 = vmatprep.subr.mxu0 0.0
    %2263 = vmatpush1.msra.mxu0 0.0
    %2264 = vmatprep.subr.mxu0 0.0
    %2265 = vmatpush1.msra.mxu0 %v51
    %2266 = vmatprep.subr.mxu0 0.0
    %2267 = vmatpush1.msra.mxu0 %v50
    %2268 = vmatprep.subr.mxu0 0.0
    %2269 = vmatpush1.msra.mxu0 %v49
    %2270 = vmatprep.subr.mxu0 0.0
    %2271 = vmatpush1.msra.mxu0 %v48
    %2272 = vmatprep.subr.mxu0 0.0
    %2273 = vmatpush2.msra.mxu0 0.0
    %2274 = vmatprep.subr.mxu0 0.0
    %2275 = vmatpush2.msra.mxu0 0.0
    %2276 = vmatprep.subr.mxu0 0.0
    %2277 = vmatpush2.msra.mxu0 0.0
    %2278 = vmatprep.subr.mxu0 0.0
    %2279 = vmatpush2.msra.mxu0 0.0
    %2280 = vmatprep.subr.mxu0 0.0
    %2281 = vmatpush2.msra.mxu0 0.0
    %2282 = vmatprep.subr.mxu0 0.0
    %2283 = vmatpush2.msra.mxu0 0.0
    %2284 = vmatprep.subr.mxu0 0.0
    %2285 = vmatpush2.msra.mxu0 0.0
    %2286 = vmatprep.subr.mxu0 0.0
    %2287 = vmatpush2.msra.mxu0 0.0
    %2288 = vmatprep.subr.mxu0 0.0
    %2289 = vmatpush2.msra.mxu0 0.0
    %2290 = vmatprep.subr.mxu0 0.0
    %2291 = vmatpush2.msra.mxu0 0.0
    %2292 = vmatprep.subr.mxu0 0.0
    %2293 = vmatpush2.msra.mxu0 0.0
    %2294 = vmatprep.subr.mxu0 0.0
    %2295 = vmatpush2.msra.mxu0 0.0
    %2296 = vmatprep.subr.mxu0 0.0
    %2297 = vmatpush2.msra.mxu0 0.0
    %2298 = vmatprep.subr.mxu0 0.0
    %2299 = vmatpush2.msra.mxu0 0.0
    %2300 = vmatprep.subr.mxu0 0.0
    %2301 = vmatpush2.msra.mxu0 0.0
    %2302 = vmatprep.subr.mxu0 0.0
    %2303 = vmatpush2.msra.mxu0 0.0
    %2304 = vmatprep.mubr.f32.mxu0 0.0
    %2305 = vmatmul.mubr.f32.gmra.mxu0 %v2147
    %v2306 = vpop.f32.mrf.mxu0
    %v2307 = vadd.f32 0.0, %v2306
    %v2308 = vpop.f32.mrf.mxu0
    %2309 = vdwg.mxu0
    %2311 = vrot.lane.b32.xlu0 %v2239, 32
    %v2312 = vpop.permute.xlu0 %2311
    %v2313 = vsel %vm72, %v2312, 0
    %2315 = vmatprep.subr.mxu0 0.0
    %2316 = vmatpush1.msra.mxu0 0.0
    %2317 = vmatprep.subr.mxu0 0.0
    %2318 = vmatpush1.msra.mxu0 0.0
    %2319 = vmatprep.subr.mxu0 0.0
    %2320 = vmatpush1.msra.mxu0 0.0
    %2321 = vmatprep.subr.mxu0 0.0
    %2322 = vmatpush1.msra.mxu0 0.0
    %2323 = vmatprep.subr.mxu0 0.0
    %2324 = vmatpush1.msra.mxu0 0.0
    %2325 = vmatprep.subr.mxu0 0.0
    %2326 = vmatpush1.msra.mxu0 0.0
    %2327 = vmatprep.subr.mxu0 0.0
    %2328 = vmatpush1.msra.mxu0 0.0
    %2329 = vmatprep.subr.mxu0 0.0
    %2330 = vmatpush1.msra.mxu0 0.0
    %2331 = vmatprep.subr.mxu0 0.0
    %2332 = vmatpush1.msra.mxu0 0.0
    %2333 = vmatprep.subr.mxu0 0.0
    %2334 = vmatpush1.msra.mxu0 0.0
    %2335 = vmatprep.subr.mxu0 0.0
    %2336 = vmatpush1.msra.mxu0 0.0
    %2337 = vmatprep.subr.mxu0 0.0
    %2338 = vmatpush1.msra.mxu0 0.0
    %2339 = vmatprep.subr.mxu0 0.0
    %2340 = vmatpush1.msra.mxu0 %v43
    %2341 = vmatprep.subr.mxu0 0.0
    %2342 = vmatpush1.msra.mxu0 %v42
    %2343 = vmatprep.subr.mxu0 0.0
    %2344 = vmatpush1.msra.mxu0 %v41
    %2345 = vmatprep.subr.mxu0 0.0
    %2346 = vmatpush1.msra.mxu0 %v40
    %2347 = vmatprep.subr.mxu0 0.0
    %2348 = vmatpush2.msra.mxu0 0.0
    %2349 = vmatprep.subr.mxu0 0.0
    %2350 = vmatpush2.msra.mxu0 0.0
    %2351 = vmatprep.subr.mxu0 0.0
    %2352 = vmatpush2.msra.mxu0 0.0
    %2353 = vmatprep.subr.mxu0 0.0
    %2354 = vmatpush2.msra.mxu0 0.0
    %2355 = vmatprep.subr.mxu0 0.0
    %2356 = vmatpush2.msra.mxu0 0.0
    %2357 = vmatprep.subr.mxu0 0.0
    %2358 = vmatpush2.msra.mxu0 0.0
    %2359 = vmatprep.subr.mxu0 0.0
    %2360 = vmatpush2.msra.mxu0 0.0
    %2361 = vmatprep.subr.mxu0 0.0
    %2362 = vmatpush2.msra.mxu0 0.0
    %2363 = vmatprep.subr.mxu0 0.0
    %2364 = vmatpush2.msra.mxu0 0.0
    %2365 = vmatprep.subr.mxu0 0.0
    %2366 = vmatpush2.msra.mxu0 0.0
    %2367 = vmatprep.subr.mxu0 0.0
    %2368 = vmatpush2.msra.mxu0 0.0
    %2369 = vmatprep.subr.mxu0 0.0
    %2370 = vmatpush2.msra.mxu0 0.0
    %2371 = vmatprep.subr.mxu0 0.0
    %2372 = vmatpush2.msra.mxu0 0.0
    %2373 = vmatprep.subr.mxu0 0.0
    %2374 = vmatpush2.msra.mxu0 0.0
    %2375 = vmatprep.subr.mxu0 0.0
    %2376 = vmatpush2.msra.mxu0 0.0
    %2377 = vmatprep.subr.mxu0 0.0
    %2378 = vmatpush2.msra.mxu0 0.0
    %2379 = vmatprep.mubr.f32.mxu0 0.0
    %2380 = vmatmul.mubr.f32.gmra.mxu0 %v2313
    %v2381 = vpop.f32.mrf.mxu0
    %v2382 = vadd.f32 %v2307, %v2381
    %v2383 = vpop.f32.mrf.mxu0
    %2384 = vdwg.mxu0
    %v2385 = vadd.f32 %v2382, %v64
    %v2386 = vtanh.pop %v2385
    %v2387 = vadd.f32 %v2386, 1.0
    %v2388 = vmul.f32 %v2387, 0.5
    %v2389 = vmul.f32 %v2388, %v2067
    %2391 = vrot.lane.b32.xlu0 %v2386, 64
    %v2392 = vpop.permute.xlu0 %2391
    %v2394 = vmul.f32 %v2388, %v2392
    %2396 = vrot.lane.b32.xlu0 %v2394, 32
    %v2397 = vpop.permute.xlu0 %2396
    %v2399 = vadd.f32 %v2389, %v2397
    %v2400 = vtanh.pop %v2399
    %2402 = vrot.lane.b32.xlu0 %v2400, 64
    %v2403 = vpop.permute.xlu0 %2402
    %v2405 = vmul.f32 %v2388, %v2403
    %2406 = vmatprep.subr.mxu0 0.0
    %2407 = vmatpush1.msra.mxu0 0.0
    %2408 = vmatprep.subr.mxu0 0.0
    %2409 = vmatpush1.msra.mxu0 0.0
    %2410 = vmatprep.subr.mxu0 0.0
    %2411 = vmatpush1.msra.mxu0 0.0
    %2412 = vmatprep.subr.mxu0 0.0
    %2413 = vmatpush1.msra.mxu0 0.0
    %2414 = vmatprep.subr.mxu0 0.0
    %2415 = vmatpush1.msra.mxu0 0.0
    %2416 = vmatprep.subr.mxu0 0.0
    %2417 = vmatpush1.msra.mxu0 0.0
    %2418 = vmatprep.subr.mxu0 0.0
    %2419 = vmatpush1.msra.mxu0 0.0
    %2420 = vmatprep.subr.mxu0 0.0
    %2421 = vmatpush1.msra.mxu0 0.0
    %2422 = vmatprep.subr.mxu0 0.0
    %2423 = vmatpush1.msra.mxu0 0.0
    %2424 = vmatprep.subr.mxu0 0.0
    %2425 = vmatpush1.msra.mxu0 0.0
    %2426 = vmatprep.subr.mxu0 0.0
    %2427 = vmatpush1.msra.mxu0 0.0
    %2428 = vmatprep.subr.mxu0 0.0
    %2429 = vmatpush1.msra.mxu0 0.0
    %2430 = vmatprep.subr.mxu0 0.0
    %2431 = vmatpush1.msra.mxu0 %v47
    %2432 = vmatprep.subr.mxu0 0.0
    %2433 = vmatpush1.msra.mxu0 %v46
    %2434 = vmatprep.subr.mxu0 0.0
    %2435 = vmatpush1.msra.mxu0 %v45
    %2436 = vmatprep.subr.mxu0 0.0
    %2437 = vmatpush1.msra.mxu0 %v44
    %2438 = vmatprep.subr.mxu0 0.0
    %2439 = vmatpush2.msra.mxu0 0.0
    %2440 = vmatprep.subr.mxu0 0.0
    %2441 = vmatpush2.msra.mxu0 0.0
    %2442 = vmatprep.subr.mxu0 0.0
    %2443 = vmatpush2.msra.mxu0 0.0
    %2444 = vmatprep.subr.mxu0 0.0
    %2445 = vmatpush2.msra.mxu0 0.0
    %2446 = vmatprep.subr.mxu0 0.0
    %2447 = vmatpush2.msra.mxu0 0.0
    %2448 = vmatprep.subr.mxu0 0.0
    %2449 = vmatpush2.msra.mxu0 0.0
    %2450 = vmatprep.subr.mxu0 0.0
    %2451 = vmatpush2.msra.mxu0 0.0
    %2452 = vmatprep.subr.mxu0 0.0
    %2453 = vmatpush2.msra.mxu0 0.0
    %2454 = vmatprep.subr.mxu0 0.0
    %2455 = vmatpush2.msra.mxu0 0.0
    %2456 = vmatprep.subr.mxu0 0.0
    %2457 = vmatpush2.msra.mxu0 0.0
    %2458 = vmatprep.subr.mxu0 0.0
    %2459 = vmatpush2.msra.mxu0 0.0
    %2460 = vmatprep.subr.mxu0 0.0
    %2461 = vmatpush2.msra.mxu0 0.0
    %2462 = vmatprep.subr.mxu0 0.0
    %2463 = vmatpush2.msra.mxu0 0.0
    %2464 = vmatprep.subr.mxu0 0.0
    %2465 = vmatpush2.msra.mxu0 0.0
    %2466 = vmatprep.subr.mxu0 0.0
    %2467 = vmatpush2.msra.mxu0 0.0
    %2468 = vmatprep.subr.mxu0 0.0
    %2469 = vmatpush2.msra.mxu0 0.0
    %2470 = vmatprep.mubr.f32.mxu0 0.0
    %2471 = vmatmul.mubr.f32.gmra.mxu0 %v2313
    %v2472 = vpop.f32.mrf.mxu0
    %v2473 = vadd.f32 0.0, %v2472
    %v2474 = vpop.f32.mrf.mxu0
    %2475 = vdwg.mxu0
    %2477 = vrot.lane.b32.xlu0 %v2405, 32
    %v2478 = vpop.permute.xlu0 %2477
    %v2479 = vsel %vm72, %v2478, 0
    %2481 = vmatprep.subr.mxu0 0.0
    %2482 = vmatpush1.msra.mxu0 0.0
    %2483 = vmatprep.subr.mxu0 0.0
    %2484 = vmatpush1.msra.mxu0 0.0
    %2485 = vmatprep.subr.mxu0 0.0
    %2486 = vmatpush1.msra.mxu0 0.0
    %2487 = vmatprep.subr.mxu0 0.0
    %2488 = vmatpush1.msra.mxu0 0.0
    %2489 = vmatprep.subr.mxu0 0.0
    %2490 = vmatpush1.msra.mxu0 0.0
    %2491 = vmatprep.subr.mxu0 0.0
    %2492 = vmatpush1.msra.mxu0 0.0
    %2493 = vmatprep.subr.mxu0 0.0
    %2494 = vmatpush1.msra.mxu0 0.0
    %2495 = vmatprep.subr.mxu0 0.0
    %2496 = vmatpush1.msra.mxu0 0.0
    %2497 = vmatprep.subr.mxu0 0.0
    %2498 = vmatpush1.msra.mxu0 0.0
    %2499 = vmatprep.subr.mxu0 0.0
    %2500 = vmatpush1.msra.mxu0 0.0
    %2501 = vmatprep.subr.mxu0 0.0
    %2502 = vmatpush1.msra.mxu0 0.0
    %2503 = vmatprep.subr.mxu0 0.0
    %2504 = vmatpush1.msra.mxu0 0.0
    %2505 = vmatprep.subr.mxu0 0.0
    %2506 = vmatpush1.msra.mxu0 %v39
    %2507 = vmatprep.subr.mxu0 0.0
    %2508 = vmatpush1.msra.mxu0 %v38
    %2509 = vmatprep.subr.mxu0 0.0
    %2510 = vmatpush1.msra.mxu0 %v37
    %2511 = vmatprep.subr.mxu0 0.0
    %2512 = vmatpush1.msra.mxu0 %v36
    %2513 = vmatprep.subr.mxu0 0.0
    %2514 = vmatpush2.msra.mxu0 0.0
    %2515 = vmatprep.subr.mxu0 0.0
    %2516 = vmatpush2.msra.mxu0 0.0
    %2517 = vmatprep.subr.mxu0 0.0
    %2518 = vmatpush2.msra.mxu0 0.0
    %2519 = vmatprep.subr.mxu0 0.0
    %2520 = vmatpush2.msra.mxu0 0.0
    %2521 = vmatprep.subr.mxu0 0.0
    %2522 = vmatpush2.msra.mxu0 0.0
    %2523 = vmatprep.subr.mxu0 0.0
    %2524 = vmatpush2.msra.mxu0 0.0
    %2525 = vmatprep.subr.mxu0 0.0
    %2526 = vmatpush2.msra.mxu0 0.0
    %2527 = vmatprep.subr.mxu0 0.0
    %2528 = vmatpush2.msra.mxu0 0.0
    %2529 = vmatprep.subr.mxu0 0.0
    %2530 = vmatpush2.msra.mxu0 0.0
    %2531 = vmatprep.subr.mxu0 0.0
    %2532 = vmatpush2.msra.mxu0 0.0
    %2533 = vmatprep.subr.mxu0 0.0
    %2534 = vmatpush2.msra.mxu0 0.0
    %2535 = vmatprep.subr.mxu0 0.0
    %2536 = vmatpush2.msra.mxu0 0.0
    %2537 = vmatprep.subr.mxu0 0.0
    %2538 = vmatpush2.msra.mxu0 0.0
    %2539 = vmatprep.subr.mxu0 0.0
    %2540 = vmatpush2.msra.mxu0 0.0
    %2541 = vmatprep.subr.mxu0 0.0
    %2542 = vmatpush2.msra.mxu0 0.0
    %2543 = vmatprep.subr.mxu0 0.0
    %2544 = vmatpush2.msra.mxu0 0.0
    %2545 = vmatprep.mubr.f32.mxu0 0.0
    %2546 = vmatmul.mubr.f32.gmra.mxu0 %v2479
    %v2547 = vpop.f32.mrf.mxu0
    %v2548 = vadd.f32 %v2473, %v2547
    %v2549 = vpop.f32.mrf.mxu0
    %2550 = vdwg.mxu0
    %v2551 = vadd.f32 %v2548, %v57
    %v2552 = vtanh.pop %v2551
    %v2553 = vadd.f32 %v2552, 1.0
    %v2554 = vmul.f32 %v2553, 0.5
    %v2555 = vmul.f32 %v2554, %v2233
    %2557 = vrot.lane.b32.xlu0 %v2552, 64
    %v2558 = vpop.permute.xlu0 %2557
    %v2560 = vmul.f32 %v2554, %v2558
    %2562 = vrot.lane.b32.xlu0 %v2560, 32
    %v2563 = vpop.permute.xlu0 %2562
    %v2565 = vadd.f32 %v2555, %v2563
    %v2566 = vtanh.pop %v2565
    %2568 = vrot.lane.b32.xlu0 %v2566, 64
    %v2569 = vpop.permute.xlu0 %2568
    %v2571 = vmul.f32 %v2554, %v2569
    %2572 = vmatprep.subr.mxu0 0.0
    %2573 = vmatpush1.msra.mxu0 0.0
    %2574 = vmatprep.subr.mxu0 0.0
    %2575 = vmatpush1.msra.mxu0 0.0
    %2576 = vmatprep.subr.mxu0 0.0
    %2577 = vmatpush1.msra.mxu0 0.0
    %2578 = vmatprep.subr.mxu0 0.0
    %2579 = vmatpush1.msra.mxu0 0.0
    %2580 = vmatprep.subr.mxu0 0.0
    %2581 = vmatpush1.msra.mxu0 0.0
    %2582 = vmatprep.subr.mxu0 0.0
    %2583 = vmatpush1.msra.mxu0 0.0
    %2584 = vmatprep.subr.mxu0 0.0
    %2585 = vmatpush1.msra.mxu0 0.0
    %2586 = vmatprep.subr.mxu0 0.0
    %2587 = vmatpush1.msra.mxu0 0.0
    %2588 = vmatprep.subr.mxu0 0.0
    %2589 = vmatpush1.msra.mxu0 0.0
    %2590 = vmatprep.subr.mxu0 0.0
    %2591 = vmatpush1.msra.mxu0 0.0
    %2592 = vmatprep.subr.mxu0 0.0
    %2593 = vmatpush1.msra.mxu0 0.0
    %2594 = vmatprep.subr.mxu0 0.0
    %2595 = vmatpush1.msra.mxu0 0.0
    %2596 = vmatprep.subr.mxu0 0.0
    %2597 = vmatpush1.msra.mxu0 %v51
    %2598 = vmatprep.subr.mxu0 0.0
    %2599 = vmatpush1.msra.mxu0 %v50
    %2600 = vmatprep.subr.mxu0 0.0
    %2601 = vmatpush1.msra.mxu0 %v49
    %2602 = vmatprep.subr.mxu0 0.0
    %2603 = vmatpush1.msra.mxu0 %v48
    %2604 = vmatprep.subr.mxu0 0.0
    %2605 = vmatpush2.msra.mxu0 0.0
    %2606 = vmatprep.subr.mxu0 0.0
    %2607 = vmatpush2.msra.mxu0 0.0
    %2608 = vmatprep.subr.mxu0 0.0
    %2609 = vmatpush2.msra.mxu0 0.0
    %2610 = vmatprep.subr.mxu0 0.0
    %2611 = vmatpush2.msra.mxu0 0.0
    %2612 = vmatprep.subr.mxu0 0.0
    %2613 = vmatpush2.msra.mxu0 0.0
    %2614 = vmatprep.subr.mxu0 0.0
    %2615 = vmatpush2.msra.mxu0 0.0
    %2616 = vmatprep.subr.mxu0 0.0
    %2617 = vmatpush2.msra.mxu0 0.0
    %2618 = vmatprep.subr.mxu0 0.0
    %2619 = vmatpush2.msra.mxu0 0.0
    %2620 = vmatprep.subr.mxu0 0.0
    %2621 = vmatpush2.msra.mxu0 0.0
    %2622 = vmatprep.subr.mxu0 0.0
    %2623 = vmatpush2.msra.mxu0 0.0
    %2624 = vmatprep.subr.mxu0 0.0
    %2625 = vmatpush2.msra.mxu0 0.0
    %2626 = vmatprep.subr.mxu0 0.0
    %2627 = vmatpush2.msra.mxu0 0.0
    %2628 = vmatprep.subr.mxu0 0.0
    %2629 = vmatpush2.msra.mxu0 0.0
    %2630 = vmatprep.subr.mxu0 0.0
    %2631 = vmatpush2.msra.mxu0 0.0
    %2632 = vmatprep.subr.mxu0 0.0
    %2633 = vmatpush2.msra.mxu0 0.0
    %2634 = vmatprep.subr.mxu0 0.0
    %2635 = vmatpush2.msra.mxu0 0.0
    %2636 = vmatprep.mubr.f32.mxu0 0.0
    %2637 = vmatmul.mubr.f32.gmra.mxu0 %v2479
    %v2638 = vpop.f32.mrf.mxu0
    %v2639 = vadd.f32 0.0, %v2638
    %v2640 = vpop.f32.mrf.mxu0
    %2641 = vdwg.mxu0
    %2643 = vrot.lane.b32.xlu0 %v2571, 32
    %v2644 = vpop.permute.xlu0 %2643
    %v2645 = vsel %vm72, %v2644, 0
    %2647 = vmatprep.subr.mxu0 0.0
    %2648 = vmatpush1.msra.mxu0 0.0
    %2649 = vmatprep.subr.mxu0 0.0
    %2650 = vmatpush1.msra.mxu0 0.0
    %2651 = vmatprep.subr.mxu0 0.0
    %2652 = vmatpush1.msra.mxu0 0.0
    %2653 = vmatprep.subr.mxu0 0.0
    %2654 = vmatpush1.msra.mxu0 0.0
    %2655 = vmatprep.subr.mxu0 0.0
    %2656 = vmatpush1.msra.mxu0 0.0
    %2657 = vmatprep.subr.mxu0 0.0
    %2658 = vmatpush1.msra.mxu0 0.0
    %2659 = vmatprep.subr.mxu0 0.0
    %2660 = vmatpush1.msra.mxu0 0.0
    %2661 = vmatprep.subr.mxu0 0.0
    %2662 = vmatpush1.msra.mxu0 0.0
    %2663 = vmatprep.subr.mxu0 0.0
    %2664 = vmatpush1.msra.mxu0 0.0
    %2665 = vmatprep.subr.mxu0 0.0
    %2666 = vmatpush1.msra.mxu0 0.0
    %2667 = vmatprep.subr.mxu0 0.0
    %2668 = vmatpush1.msra.mxu0 0.0
    %2669 = vmatprep.subr.mxu0 0.0
    %2670 = vmatpush1.msra.mxu0 0.0
    %2671 = vmatprep.subr.mxu0 0.0
    %2672 = vmatpush1.msra.mxu0 %v43
    %2673 = vmatprep.subr.mxu0 0.0
    %2674 = vmatpush1.msra.mxu0 %v42
    %2675 = vmatprep.subr.mxu0 0.0
    %2676 = vmatpush1.msra.mxu0 %v41
    %2677 = vmatprep.subr.mxu0 0.0
    %2678 = vmatpush1.msra.mxu0 %v40
    %2679 = vmatprep.subr.mxu0 0.0
    %2680 = vmatpush2.msra.mxu0 0.0
    %2681 = vmatprep.subr.mxu0 0.0
    %2682 = vmatpush2.msra.mxu0 0.0
    %2683 = vmatprep.subr.mxu0 0.0
    %2684 = vmatpush2.msra.mxu0 0.0
    %2685 = vmatprep.subr.mxu0 0.0
    %2686 = vmatpush2.msra.mxu0 0.0
    %2687 = vmatprep.subr.mxu0 0.0
    %2688 = vmatpush2.msra.mxu0 0.0
    %2689 = vmatprep.subr.mxu0 0.0
    %2690 = vmatpush2.msra.mxu0 0.0
    %2691 = vmatprep.subr.mxu0 0.0
    %2692 = vmatpush2.msra.mxu0 0.0
    %2693 = vmatprep.subr.mxu0 0.0
    %2694 = vmatpush2.msra.mxu0 0.0
    %2695 = vmatprep.subr.mxu0 0.0
    %2696 = vmatpush2.msra.mxu0 0.0
    %2697 = vmatprep.subr.mxu0 0.0
    %2698 = vmatpush2.msra.mxu0 0.0
    %2699 = vmatprep.subr.mxu0 0.0
    %2700 = vmatpush2.msra.mxu0 0.0
    %2701 = vmatprep.subr.mxu0 0.0
    %2702 = vmatpush2.msra.mxu0 0.0
    %2703 = vmatprep.subr.mxu0 0.0
    %2704 = vmatpush2.msra.mxu0 0.0
    %2705 = vmatprep.subr.mxu0 0.0
    %2706 = vmatpush2.msra.mxu0 0.0
    %2707 = vmatprep.subr.mxu0 0.0
    %2708 = vmatpush2.msra.mxu0 0.0
    %2709 = vmatprep.subr.mxu0 0.0
    %2710 = vmatpush2.msra.mxu0 0.0
    %2711 = vmatprep.mubr.f32.mxu0 0.0
    %2712 = vmatmul.mubr.f32.gmra.mxu0 %v2645
    %v2713 = vpop.f32.mrf.mxu0
    %v2714 = vadd.f32 %v2639, %v2713
    %v2715 = vpop.f32.mrf.mxu0
    %2716 = vdwg.mxu0
    %v2717 = vadd.f32 %v2714, %v64
    %v2718 = vtanh.pop %v2717
    %v2719 = vadd.f32 %v2718, 1.0
    %v2720 = vmul.f32 %v2719, 0.5
    %v2721 = vmul.f32 %v2720, %v2399
    %2723 = vrot.lane.b32.xlu0 %v2718, 64
    %v2724 = vpop.permute.xlu0 %2723
    %v2726 = vmul.f32 %v2720, %v2724
    %2728 = vrot.lane.b32.xlu0 %v2726, 32
    %v2729 = vpop.permute.xlu0 %2728
    %v2731 = vadd.f32 %v2721, %v2729
    %v2732 = vtanh.pop %v2731
    %2734 = vrot.lane.b32.xlu0 %v2732, 64
    %v2735 = vpop.permute.xlu0 %2734
    %v2737 = vmul.f32 %v2720, %v2735
    %2739 = vrot.lane.b32.xlu0 %v2737, 32
    %v2740 = vpop.permute.xlu0 %2739
    %2742 = vrot.lane.b32.xlu0 %v2405, 64
    %v2743 = vpop.permute.xlu0 %2742
    %2745 = vrot.lane.b32.xlu0 %v2073, 96
    %v2746 = vpop.permute.xlu0 %2745
    %2749 = vrot.lane.b32.xlu0 %v1077, 64
    %v2750 = vpop.permute.xlu0 %2749
    %2752 = vrot.lane.b32.xlu0 %v745, 96
    %v2753 = vpop.permute.xlu0 %2752
    %v2755 = vsel %vm72, %v2740, %v2743
    %vm2756 = vcmask 523264
    %v2757 = vsel %vm2756, %v2755, %v2746
    %vm2758 = vcmask 785408
    %v2759 = vsel %vm2758, %v2757, %v1741
    %v2760 = vsel %vm72, %v1482, %v2750
    %v2761 = vsel %vm2756, %v2760, %v2753
    %v2762 = vsel %vm2758, %v2761, %v413
    %v2763 = vld [vmem:[%s8] sm:$0xff]
    %v2764 = vld [vmem:[%s8 + $0x8] sm:$0xff]
    %v2765 = vld [vmem:[%s8 + $0x10] sm:$0xff]
    %v2766 = vld [vmem:[%s8 + $0x18] sm:$0xff]
    %v2767 = vld [vmem:[%s8 + $0x20] sm:$0xff]
    %v2768 = vld [vmem:[%s8 + $0x28] sm:$0xff]
    %v2769 = vld [vmem:[%s8 + $0x30] sm:$0xff]
    %v2770 = vld [vmem:[%s8 + $0x38] sm:$0xff]
    %v2771 = vld [vmem:[%s8 + $0x40] sm:$0xff]
    %v2772 = vld [vmem:[%s8 + $0x48] sm:$0xff]
    %v2773 = vld [vmem:[%s8 + $0x50] sm:$0xff]
    %v2774 = vld [vmem:[%s8 + $0x58] sm:$0xff]
    %v2775 = vld [vmem:[%s8 + $0x60] sm:$0xff]
    %v2776 = vld [vmem:[%s8 + $0x68] sm:$0xff]
    %v2777 = vld [vmem:[%s8 + $0x70] sm:$0xff]
    %v2778 = vld [vmem:[%s8 + $0x78] sm:$0xff]
    %v2779 = vld [vmem:[%s8 + $0x80] sm:$0xff]
    %v2780 = vld [vmem:[%s8 + $0x88] sm:$0xff]
    %v2781 = vld [vmem:[%s8 + $0x90] sm:$0xff]
    %v2782 = vld [vmem:[%s8 + $0x98] sm:$0xff]
    %v2783 = vld [vmem:[%s8 + $0xa0] sm:$0xff]
    %v2784 = vld [vmem:[%s8 + $0xa8] sm:$0xff]
    %v2785 = vld [vmem:[%s8 + $0xb0] sm:$0xff]
    %v2786 = vld [vmem:[%s8 + $0xb8] sm:$0xff]
    %v2787 = vld [vmem:[%s8 + $0xc0] sm:$0xff]
    %v2788 = vld [vmem:[%s8 + $0xc8] sm:$0xff]
    %v2789 = vld [vmem:[%s8 + $0xd0] sm:$0xff]
    %v2790 = vld [vmem:[%s8 + $0xd8] sm:$0xff]
    %v2791 = vld [vmem:[%s8 + $0xe0] sm:$0xff]
    %v2792 = vld [vmem:[%s8 + $0xe8] sm:$0xff]
    %v2793 = vld [vmem:[%s8 + $0xf0] sm:$0xff]
    %v2794 = vld [vmem:[%s8 + $0xf8] sm:$0xff]
    %v2795 = vld [vmem:[%s9] sm:$0x1]
    %v2797 = vlaneseq
    %v2798 = vshrl.u32 %v2797, 7
    %v2799 = vsub.s32 0, %v2798
    %v2800 = vrot.slane %v2795, %v2799
    %2802 = vmatprep.subr.mxu0 0.0
    %2803 = vmatpush1.msra.mxu0 %v2778
    %2804 = vmatprep.subr.mxu0 0.0
    %2805 = vmatpush1.msra.mxu0 %v2777
    %2806 = vmatprep.subr.mxu0 0.0
    %2807 = vmatpush1.msra.mxu0 %v2776
    %2808 = vmatprep.subr.mxu0 0.0
    %2809 = vmatpush1.msra.mxu0 %v2775
    %2810 = vmatprep.subr.mxu0 0.0
    %2811 = vmatpush1.msra.mxu0 %v2774
    %2812 = vmatprep.subr.mxu0 0.0
    %2813 = vmatpush1.msra.mxu0 %v2773
    %2814 = vmatprep.subr.mxu0 0.0
    %2815 = vmatpush1.msra.mxu0 %v2772
    %2816 = vmatprep.subr.mxu0 0.0
    %2817 = vmatpush1.msra.mxu0 %v2771
    %2818 = vmatprep.subr.mxu0 0.0
    %2819 = vmatpush1.msra.mxu0 %v2770
    %2820 = vmatprep.subr.mxu0 0.0
    %2821 = vmatpush1.msra.mxu0 %v2769
    %2822 = vmatprep.subr.mxu0 0.0
    %2823 = vmatpush1.msra.mxu0 %v2768
    %2824 = vmatprep.subr.mxu0 0.0
    %2825 = vmatpush1.msra.mxu0 %v2767
    %2826 = vmatprep.subr.mxu0 0.0
    %2827 = vmatpush1.msra.mxu0 %v2766
    %2828 = vmatprep.subr.mxu0 0.0
    %2829 = vmatpush1.msra.mxu0 %v2765
    %2830 = vmatprep.subr.mxu0 0.0
    %2831 = vmatpush1.msra.mxu0 %v2764
    %2832 = vmatprep.subr.mxu0 0.0
    %2833 = vmatpush1.msra.mxu0 %v2763
    %2834 = vmatprep.subr.mxu0 0.0
    %2835 = vmatpush2.msra.mxu0 %v2794
    %2836 = vmatprep.subr.mxu0 0.0
    %2837 = vmatpush2.msra.mxu0 %v2793
    %2838 = vmatprep.subr.mxu0 0.0
    %2839 = vmatpush2.msra.mxu0 %v2792
    %2840 = vmatprep.subr.mxu0 0.0
    %2841 = vmatpush2.msra.mxu0 %v2791
    %2842 = vmatprep.subr.mxu0 0.0
    %2843 = vmatpush2.msra.mxu0 %v2790
    %2844 = vmatprep.subr.mxu0 0.0
    %2845 = vmatpush2.msra.mxu0 %v2789
    %2846 = vmatprep.subr.mxu0 0.0
    %2847 = vmatpush2.msra.mxu0 %v2788
    %2848 = vmatprep.subr.mxu0 0.0
    %2849 = vmatpush2.msra.mxu0 %v2787
    %2850 = vmatprep.subr.mxu0 0.0
    %2851 = vmatpush2.msra.mxu0 %v2786
    %2852 = vmatprep.subr.mxu0 0.0
    %2853 = vmatpush2.msra.mxu0 %v2785
    %2854 = vmatprep.subr.mxu0 0.0
    %2855 = vmatpush2.msra.mxu0 %v2784
    %2856 = vmatprep.subr.mxu0 0.0
    %2857 = vmatpush2.msra.mxu0 %v2783
    %2858 = vmatprep.subr.mxu0 0.0
    %2859 = vmatpush2.msra.mxu0 %v2782
    %2860 = vmatprep.subr.mxu0 0.0
    %2861 = vmatpush2.msra.mxu0 %v2781
    %2862 = vmatprep.subr.mxu0 0.0
    %2863 = vmatpush2.msra.mxu0 %v2780
    %2864 = vmatprep.subr.mxu0 0.0
    %2865 = vmatpush2.msra.mxu0 %v2779
    %2866 = vmatprep.mubr.f32.mxu0 %v2762
    %2867 = vmatmul.mubr.f32.gmra.mxu0 %v2759
    %v2868 = vpop.f32.mrf.mxu0
    %v2869 = vadd.f32 %v2800, %v2868
    %v2870 = vpop.f32.mrf.mxu0
    %2871 = vdwg.mxu0
    %vm2872 = vcmask 254976
    %2873 = vst.msk [vmem:[#allocation2] sm:$0x3] %vm2872, %v2869
    // Predicated region
    $region42: #{tpu_custom_call.1} parent=1 // pred_check
      _
    $region43: #{tpu_custom_call.1} parent=1 // pred_check_branch
      %2875 = sbr.rel (0) target = $region45
    $region44: #{tpu_custom_call.1} parent=1 // pred_region
      %s2877 = ssub.s32 32, 32
      %2878 = vsyncadd [#allocation3], %s2877
      %s2880 = sshll.u32 [#allocation2], 4
      %s2881 = int_to_ptr.vmem [resolvable:$true] %s2880
      %2883 = dma.vmem_to_hbm [thread:$0]  %s2881, 32, %s10, [#allocation3]
    $region45: #{tpu_custom_call.1} parent=1 // pred_fallthru
      _
    // Predicated region
    $region46: #{tpu_custom_call.1} parent=1 // pred_check
      _
    $region47: #{tpu_custom_call.1} parent=1 // pred_check_branch
      %2885 = sbr.rel (0) target = $region49
    $region48: #{tpu_custom_call.1} parent=1 // pred_region
      %2886 = dma.done [#allocation3], 32
    $region49: #{tpu_custom_call.1} parent=1 // pred_fallthru
      _
    %2887 = vsyncpa [#allocation3], 1

</llo_original>
